<compile_context>
chip_gen: v7x
topology: tpu7x:2x2x1
jax: 0.10.0
libtpu: 0.0.40
codegen_flags: <defaults>
</compile_context>

<pallas_src>
import functools

import jax
import jax.numpy as jnp
from jax.experimental import pallas as pl
from jax.experimental.pallas import tpu as pltpu


# ----------------------------------------------------------------------------
# Fused network kernel (one batch element per grid step)
# ----------------------------------------------------------------------------
def _net_kernel(x_ref, w1_ref, b1_ref, w2_ref, b2_ref,
                fw1_ref, fb1_ref, fw2_ref, fb2_ref, o_ref, *, conv_dtype):
    f32 = jnp.float32

    def pair_selectors(n_out):
        """(2*n_out, n_out) 0/1 matrices picking even / odd columns."""
        r = jax.lax.broadcasted_iota(jnp.int32, (2 * n_out, n_out), 0)
        c = jax.lax.broadcasted_iota(jnp.int32, (2 * n_out, n_out), 1)
        return (jnp.where(r == 2 * c, 1.0, 0.0),
                jnp.where(r == 2 * c + 1, 1.0, 0.0))

    # ---------------- conv1: Conv2d(1, 20, 5), VALID -------------------------
    # x is the flattened 28x28 image (1, 784); "wide" im2col: column m' = y*28+x
    # of patch row k = i*5+j holds x[(y+i)*28 + (x+j)]  (x < 24 are the valid
    # conv positions, the rest is never read by the pooling below).
    x = x_ref[0].astype(conv_dtype)                              # (1, 784)
    p1 = jnp.concatenate(
        [x[:, i * 28 + j: i * 28 + j + 668]
         for i in range(5) for j in range(5)], axis=0)           # (25, 668)
    y1 = jnp.dot(w1_ref[...], p1, preferred_element_type=f32)    # (20, 668)
    y1 = y1 + b1_ref[...]                                        # bias (20, 1)

    # -------- fused 2x2 maxpool + ReLU epilogue (lane axis = width) ----------
    se1, so1 = pair_selectors(12)                                # (24, 12)
    a1_blocks = []
    for py in range(12):
        top = y1[:, (2 * py) * 28:(2 * py) * 28 + 24]            # (20, 24)
        bot = y1[:, (2 * py + 1) * 28:(2 * py + 1) * 28 + 24]
        v = jnp.maximum(top, bot)                                # height pool
        v = jnp.maximum(jnp.dot(v, se1, preferred_element_type=f32),
                        jnp.dot(v, so1, preferred_element_type=f32))
        a1_blocks.append(jnp.maximum(v, 0.0))                    # (20, 12)
    a1 = jnp.concatenate(a1_blocks, axis=1)                      # (20, 144)

    # ---------------- conv2: Conv2d(20, 20, 5), VALID ------------------------
    # in-kernel im2col: row block k = i*5+j of p2 is a contiguous 92-wide slice
    # of a1 shifted by i*12 + j; row index inside the block is the in-channel.
    a1c = a1.astype(conv_dtype)
    p2 = jnp.concatenate(
        [a1c[:, i * 12 + j: i * 12 + j + 92]
         for i in range(5) for j in range(5)], axis=0)           # (500, 92)
    y2 = jnp.dot(w2_ref[...], p2, preferred_element_type=f32)    # (20, 92)
    y2 = y2 + b2_ref[...]

    # -------- fused 2x2 maxpool + ReLU + flatten (torch (C,H,W) order) -------
    se2, so2 = pair_selectors(4)                                 # (8, 4)
    flat_cols = []
    for py in range(4):
        top = y2[:, (2 * py) * 12:(2 * py) * 12 + 8]             # (20, 8)
        bot = y2[:, (2 * py + 1) * 12:(2 * py + 1) * 12 + 8]
        v = jnp.maximum(top, bot)
        v = jnp.maximum(jnp.dot(v, se2, preferred_element_type=f32),
                        jnp.dot(v, so2, preferred_element_type=f32))
        v = jnp.maximum(v, 0.0)                                  # (20, 4)
        for px in range(4):
            flat_cols.append(v[:, px:px + 1])                    # (20, 1)
    a2 = jnp.concatenate(flat_cols, axis=0)                      # (320, 1)
    # row index of a2 is (h*4+w)*20 + c ; fc1 weights were host-reordered to match

    # ---------------- classifier: 320 -> 50 -> 10, ReLU ----------------------
    h = jnp.dot(fw1_ref[...], a2, preferred_element_type=f32) + fb1_ref[...]
    h = jnp.maximum(h, 0.0)                                      # (50, 1)
    out = jnp.dot(fw2_ref[...], h, preferred_element_type=f32) + fb2_ref[...]
    out = jnp.maximum(out, 0.0)                                  # (10, 1)
    o_ref[0] = out


# ----------------------------------------------------------------------------
# Wrapper: one fused pallas_call over the batch
# ----------------------------------------------------------------------------
def net_forward(x, params, *, conv_dtype=jnp.bfloat16):
    B = x.shape[0]
    assert x.shape[1:] == (1, 28, 28), x.shape
    xin = x.reshape(B, 1, 784)                                   # flatten (h, w)

    # One-time host-side weight re-ordering (matches the in-kernel layouts).
    w1 = params["conv1_w"].reshape(20, 25).astype(conv_dtype)                     # (20, 25)
    b1 = params["conv1_b"].reshape(20, 1).astype(jnp.float32)
    w2 = params["conv2_w"].transpose(0, 2, 3, 1).reshape(20, 500).astype(conv_dtype)  # (20, 500)
    b2 = params["conv2_b"].reshape(20, 1).astype(jnp.float32)
    # fc1: torch column order is c*16 + hw ; kernel flatten order is hw*20 + c.
    fw1 = (params["fc1_w"].reshape(50, 20, 16)
           .transpose(0, 2, 1).reshape(50, 320).astype(jnp.float32))              # (50, 320)
    fb1 = params["fc1_b"].reshape(50, 1).astype(jnp.float32)
    fw2 = params["fc2_w"].astype(jnp.float32)                                     # (10, 50)
    fb2 = params["fc2_b"].reshape(10, 1).astype(jnp.float32)

    kern = functools.partial(_net_kernel, conv_dtype=conv_dtype)
    out = pl.pallas_call(
        kern,
        out_shape=jax.ShapeDtypeStruct((B, 10, 1), jnp.float32),
        grid=(B,),
        in_specs=[
            pl.BlockSpec((1, 1, 784), lambda b: (b, 0, 0)),   # image (flattened)
            pl.BlockSpec((20, 25), lambda b: (0, 0)),         # conv1 weight
            pl.BlockSpec((20, 1), lambda b: (0, 0)),          # conv1 bias
            pl.BlockSpec((20, 500), lambda b: (0, 0)),        # conv2 weight
            pl.BlockSpec((20, 1), lambda b: (0, 0)),          # conv2 bias
            pl.BlockSpec((50, 320), lambda b: (0, 0)),        # fc1 weight
            pl.BlockSpec((50, 1), lambda b: (0, 0)),          # fc1 bias
            pl.BlockSpec((10, 50), lambda b: (0, 0)),         # fc2 weight
            pl.BlockSpec((10, 1), lambda b: (0, 0)),          # fc2 bias
        ],
        out_specs=pl.BlockSpec((1, 10, 1), lambda b: (b, 0, 0)),
        compiler_params=pltpu.CompilerParams(
            dimension_semantics=("parallel",),
            vmem_limit_bytes=32 * 1024 * 1024,
        ),
    )(xin, w1, b1, w2, b2, fw1, fb1, fw2, fb2)
    return out.reshape(B, 10)


# ----------------------------------------------------------------------------
# Plain-JAX reference (for a correctness check only)
# ----------------------------------------------------------------------------
def net_reference(x, params):
    hi = jax.lax.Precision.HIGHEST
    dn1 = jax.lax.conv_dimension_numbers(x.shape, params["conv1_w"].shape,
                                         ("NCHW", "OIHW", "NCHW"))
    y = jax.lax.conv_general_dilated(x, params["conv1_w"], (1, 1), "VALID",
                                     dimension_numbers=dn1, precision=hi)
    y = y + params["conv1_b"].reshape(1, -1, 1, 1)
    y = jax.lax.reduce_window(y, -jnp.inf, jax.lax.max,
                              (1, 1, 2, 2), (1, 1, 2, 2), "VALID")
    y = jnp.maximum(y, 0.0)
    dn2 = jax.lax.conv_dimension_numbers(y.shape, params["conv2_w"].shape,
                                         ("NCHW", "OIHW", "NCHW"))
    y = jax.lax.conv_general_dilated(y, params["conv2_w"], (1, 1), "VALID",
                                     dimension_numbers=dn2, precision=hi)
    y = y + params["conv2_b"].reshape(1, -1, 1, 1)
    y = jax.lax.reduce_window(y, -jnp.inf, jax.lax.max,
                              (1, 1, 2, 2), (1, 1, 2, 2), "VALID")
    y = jnp.maximum(y, 0.0)
    y = y.reshape(x.shape[0], -1)
    y = jnp.maximum(y @ params["fc1_w"].T + params["fc1_b"], 0.0)
    y = jnp.maximum(y @ params["fc2_w"].T + params["fc2_b"], 0.0)
    return y


def init_params(key):
    ks = jax.random.split(key, 8)
    scale = 0.1
    return {
        "conv1_w": scale * jax.random.normal(ks[0], (20, 1, 5, 5), jnp.float32),
        "conv1_b": scale * jax.random.normal(ks[1], (20,), jnp.float32),
        "conv2_w": scale * jax.random.normal(ks[2], (20, 20, 5, 5), jnp.float32),
        "conv2_b": scale * jax.random.normal(ks[3], (20,), jnp.float32),
        "fc1_w": scale * jax.random.normal(ks[4], (50, 320), jnp.float32),
        "fc1_b": scale * jax.random.normal(ks[5], (50,), jnp.float32),
        "fc2_w": scale * jax.random.normal(ks[6], (10, 50), jnp.float32),
        "fc2_b": scale * jax.random.normal(ks[7], (10,), jnp.float32),
    }


if __name__ == "__main__":
    key = jax.random.PRNGKey(0)
    # MNIST-shaped input so the flattened feature size is 320 = 20*4*4.
    x = jax.random.normal(key, (2, 1, 28, 28), jnp.float32)
    params = init_params(jax.random.PRNGKey(42))

    out = jax.jit(net_forward)(x, params)
    out = jax.block_until_ready(out)

    assert out.shape == (2, 10), out.shape
    assert bool(jnp.all(out >= 0.0))  # final ReLU

    # Loose tolerance: conv matmuls run with bf16 operands (f32 accumulation).
    ref = net_reference(x, params)
    assert bool(jnp.allclose(out, ref, rtol=1e-1, atol=1e-1))

    print("KERNEL_OK")
</pallas_src>

<mosaic_0001>
module attributes {stable_mosaic.version = 11 : i64} {
  func.func @_net_kernel(%arg0: i32, %arg1: memref<1x1x784xf32, #tpu.memory_space<vmem>>, %arg2: memref<20x25xbf16, #tpu.memory_space<vmem>>, %arg3: memref<20x1xf32, #tpu.memory_space<vmem>>, %arg4: memref<20x500xbf16, #tpu.memory_space<vmem>>, %arg5: memref<20x1xf32, #tpu.memory_space<vmem>>, %arg6: memref<50x320xf32, #tpu.memory_space<vmem>>, %arg7: memref<50x1xf32, #tpu.memory_space<vmem>>, %arg8: memref<10x50xf32, #tpu.memory_space<vmem>>, %arg9: memref<10x1xf32, #tpu.memory_space<vmem>>, %arg10: memref<1x10x1xf32, #tpu.memory_space<vmem>>) attributes {dimension_semantics = [#tpu.dimension_semantics<parallel>], iteration_bounds = array<i64: 2>, scalar_prefetch = 0 : i64, scratch_operands = 0 : i64, tpu.core_type = #tpu.core_type<tc>, window_params = [{transform_indices = @transform_0, window_bounds = array<i64: 1, 1, 784>}, {pipeline_mode = #tpu.pipeline_mode<synchronous>, transform_indices = @transform_1, window_bounds = array<i64: 20, 25>}, {pipeline_mode = #tpu.pipeline_mode<synchronous>, transform_indices = @transform_2, window_bounds = array<i64: 20, 1>}, {pipeline_mode = #tpu.pipeline_mode<synchronous>, transform_indices = @transform_3, window_bounds = array<i64: 20, 500>}, {pipeline_mode = #tpu.pipeline_mode<synchronous>, transform_indices = @transform_4, window_bounds = array<i64: 20, 1>}, {pipeline_mode = #tpu.pipeline_mode<synchronous>, transform_indices = @transform_5, window_bounds = array<i64: 50, 320>}, {pipeline_mode = #tpu.pipeline_mode<synchronous>, transform_indices = @transform_6, window_bounds = array<i64: 50, 1>}, {pipeline_mode = #tpu.pipeline_mode<synchronous>, transform_indices = @transform_7, window_bounds = array<i64: 10, 50>}, {pipeline_mode = #tpu.pipeline_mode<synchronous>, transform_indices = @transform_8, window_bounds = array<i64: 10, 1>}, {transform_indices = @transform_9, window_bounds = array<i64: 1, 10, 1>}]} {
    %c0 = arith.constant 0 : index
    %c0_0 = arith.constant 0 : index
    %c0_1 = arith.constant 0 : index
    %0 = vector.load %arg1[%c0, %c0_0, %c0_1] : memref<1x1x784xf32, #tpu.memory_space<vmem>>, vector<1x1x784xf32>
    %1 = vector.shape_cast %0 : vector<1x1x784xf32> to vector<1x784xf32>
    %2 = arith.truncf %1 : vector<1x784xf32> to vector<1x784xbf16>
    %3 = vector.extract_strided_slice %2 {offsets = [0, 0], sizes = [1, 668], strides = [1, 1]} : vector<1x784xbf16> to vector<1x668xbf16>
    %4 = vector.extract_strided_slice %2 {offsets = [0, 1], sizes = [1, 668], strides = [1, 1]} : vector<1x784xbf16> to vector<1x668xbf16>
    %5 = vector.extract_strided_slice %2 {offsets = [0, 2], sizes = [1, 668], strides = [1, 1]} : vector<1x784xbf16> to vector<1x668xbf16>
    %6 = vector.extract_strided_slice %2 {offsets = [0, 3], sizes = [1, 668], strides = [1, 1]} : vector<1x784xbf16> to vector<1x668xbf16>
    %7 = vector.extract_strided_slice %2 {offsets = [0, 4], sizes = [1, 668], strides = [1, 1]} : vector<1x784xbf16> to vector<1x668xbf16>
    %8 = vector.extract_strided_slice %2 {offsets = [0, 28], sizes = [1, 668], strides = [1, 1]} : vector<1x784xbf16> to vector<1x668xbf16>
    %9 = vector.extract_strided_slice %2 {offsets = [0, 29], sizes = [1, 668], strides = [1, 1]} : vector<1x784xbf16> to vector<1x668xbf16>
    %10 = vector.extract_strided_slice %2 {offsets = [0, 30], sizes = [1, 668], strides = [1, 1]} : vector<1x784xbf16> to vector<1x668xbf16>
    %11 = vector.extract_strided_slice %2 {offsets = [0, 31], sizes = [1, 668], strides = [1, 1]} : vector<1x784xbf16> to vector<1x668xbf16>
    %12 = vector.extract_strided_slice %2 {offsets = [0, 32], sizes = [1, 668], strides = [1, 1]} : vector<1x784xbf16> to vector<1x668xbf16>
    %13 = vector.extract_strided_slice %2 {offsets = [0, 56], sizes = [1, 668], strides = [1, 1]} : vector<1x784xbf16> to vector<1x668xbf16>
    %14 = vector.extract_strided_slice %2 {offsets = [0, 57], sizes = [1, 668], strides = [1, 1]} : vector<1x784xbf16> to vector<1x668xbf16>
    %15 = vector.extract_strided_slice %2 {offsets = [0, 58], sizes = [1, 668], strides = [1, 1]} : vector<1x784xbf16> to vector<1x668xbf16>
    %16 = vector.extract_strided_slice %2 {offsets = [0, 59], sizes = [1, 668], strides = [1, 1]} : vector<1x784xbf16> to vector<1x668xbf16>
    %17 = vector.extract_strided_slice %2 {offsets = [0, 60], sizes = [1, 668], strides = [1, 1]} : vector<1x784xbf16> to vector<1x668xbf16>
    %18 = vector.extract_strided_slice %2 {offsets = [0, 84], sizes = [1, 668], strides = [1, 1]} : vector<1x784xbf16> to vector<1x668xbf16>
    %19 = vector.extract_strided_slice %2 {offsets = [0, 85], sizes = [1, 668], strides = [1, 1]} : vector<1x784xbf16> to vector<1x668xbf16>
    %20 = vector.extract_strided_slice %2 {offsets = [0, 86], sizes = [1, 668], strides = [1, 1]} : vector<1x784xbf16> to vector<1x668xbf16>
    %21 = vector.extract_strided_slice %2 {offsets = [0, 87], sizes = [1, 668], strides = [1, 1]} : vector<1x784xbf16> to vector<1x668xbf16>
    %22 = vector.extract_strided_slice %2 {offsets = [0, 88], sizes = [1, 668], strides = [1, 1]} : vector<1x784xbf16> to vector<1x668xbf16>
    %23 = vector.extract_strided_slice %2 {offsets = [0, 112], sizes = [1, 668], strides = [1, 1]} : vector<1x784xbf16> to vector<1x668xbf16>
    %24 = vector.extract_strided_slice %2 {offsets = [0, 113], sizes = [1, 668], strides = [1, 1]} : vector<1x784xbf16> to vector<1x668xbf16>
    %25 = vector.extract_strided_slice %2 {offsets = [0, 114], sizes = [1, 668], strides = [1, 1]} : vector<1x784xbf16> to vector<1x668xbf16>
    %26 = vector.extract_strided_slice %2 {offsets = [0, 115], sizes = [1, 668], strides = [1, 1]} : vector<1x784xbf16> to vector<1x668xbf16>
    %27 = vector.extract_strided_slice %2 {offsets = [0, 116], sizes = [1, 668], strides = [1, 1]} : vector<1x784xbf16> to vector<1x668xbf16>
    %28 = tpu.concatenate %3, %4, %5, %6, %7, %8, %9, %10, %11, %12, %13, %14, %15, %16, %17, %18 in 0 : vector<1x668xbf16>, vector<1x668xbf16>, vector<1x668xbf16>, vector<1x668xbf16>, vector<1x668xbf16>, vector<1x668xbf16>, vector<1x668xbf16>, vector<1x668xbf16>, vector<1x668xbf16>, vector<1x668xbf16>, vector<1x668xbf16>, vector<1x668xbf16>, vector<1x668xbf16>, vector<1x668xbf16>, vector<1x668xbf16>, vector<1x668xbf16> -> vector<16x668xbf16>
    %29 = tpu.concatenate %19, %20, %21, %22, %23, %24, %25, %26, %27 in 0 : vector<1x668xbf16>, vector<1x668xbf16>, vector<1x668xbf16>, vector<1x668xbf16>, vector<1x668xbf16>, vector<1x668xbf16>, vector<1x668xbf16>, vector<1x668xbf16>, vector<1x668xbf16> -> vector<9x668xbf16>
    %30 = tpu.concatenate %28, %29 in 0 : vector<16x668xbf16>, vector<9x668xbf16> -> vector<25x668xbf16>
    %c0_2 = arith.constant 0 : index
    %c0_3 = arith.constant 0 : index
    %31 = vector.load %arg2[%c0_2, %c0_3] : memref<20x25xbf16, #tpu.memory_space<vmem>>, vector<20x25xbf16>
    %cst = arith.constant dense<0.000000e+00> : vector<20x668xf32>
    %32 = tpu.matmul %31, %30, %cst {dimension_numbers = #tpu.dot_dimension_numbers<[1], [0], [0], [1], [0, 0, 1, 1], [], []>} : vector<20x25xbf16>, vector<25x668xbf16>, vector<20x668xf32> -> vector<20x668xf32>
    %c0_4 = arith.constant 0 : index
    %c0_5 = arith.constant 0 : index
    %33 = vector.load %arg3[%c0_4, %c0_5] : memref<20x1xf32, #tpu.memory_space<vmem>>, vector<20x1xf32>
    %34 = vector.broadcast %33 : vector<20x1xf32> to vector<20x668xf32>
    %35 = arith.addf %32, %34 : vector<20x668xf32>
    %36 = tpu.iota {dimensions = array<i32: 0>} : vector<24x12xi32>
    %37 = tpu.iota {dimensions = array<i32: 1>} : vector<24x12xi32>
    %c2_i32 = arith.constant 2 : i32
    %38 = vector.broadcast %c2_i32 : i32 to vector<24x12xi32>
    %39 = arith.muli %38, %37 : vector<24x12xi32>
    %40 = arith.cmpi eq, %36, %39 : vector<24x12xi32>
    %cst_6 = arith.constant 1.000000e+00 : f32
    %cst_7 = arith.constant 0.000000e+00 : f32
    %41 = vector.broadcast %cst_6 : f32 to vector<24x12xf32>
    %42 = vector.broadcast %cst_7 : f32 to vector<24x12xf32>
    %43 = arith.select %40, %41, %42 : vector<24x12xi1>, vector<24x12xf32>
    %c2_i32_8 = arith.constant 2 : i32
    %44 = vector.broadcast %c2_i32_8 : i32 to vector<24x12xi32>
    %45 = arith.muli %44, %37 : vector<24x12xi32>
    %c1_i32 = arith.constant 1 : i32
    %46 = vector.broadcast %c1_i32 : i32 to vector<24x12xi32>
    %47 = arith.addi %45, %46 : vector<24x12xi32>
    %48 = arith.cmpi eq, %36, %47 : vector<24x12xi32>
    %cst_9 = arith.constant 1.000000e+00 : f32
    %cst_10 = arith.constant 0.000000e+00 : f32
    %49 = vector.broadcast %cst_9 : f32 to vector<24x12xf32>
    %50 = vector.broadcast %cst_10 : f32 to vector<24x12xf32>
    %51 = arith.select %48, %49, %50 : vector<24x12xi1>, vector<24x12xf32>
    %52 = vector.extract_strided_slice %35 {offsets = [0, 0], sizes = [20, 24], strides = [1, 1]} : vector<20x668xf32> to vector<20x24xf32>
    %53 = vector.extract_strided_slice %35 {offsets = [0, 28], sizes = [20, 24], strides = [1, 1]} : vector<20x668xf32> to vector<20x24xf32>
    %54 = arith.maximumf %52, %53 : vector<20x24xf32>
    %cst_11 = arith.constant dense<0.000000e+00> : vector<20x12xf32>
    %55 = tpu.matmul %54, %43, %cst_11 {dimension_numbers = #tpu.dot_dimension_numbers<[1], [0], [0], [1], [0, 0, 1, 1], [], []>} : vector<20x24xf32>, vector<24x12xf32>, vector<20x12xf32> -> vector<20x12xf32>
    %cst_12 = arith.constant dense<0.000000e+00> : vector<20x12xf32>
    %56 = tpu.matmul %54, %51, %cst_12 {dimension_numbers = #tpu.dot_dimension_numbers<[1], [0], [0], [1], [0, 0, 1, 1], [], []>} : vector<20x24xf32>, vector<24x12xf32>, vector<20x12xf32> -> vector<20x12xf32>
    %57 = arith.maximumf %55, %56 : vector<20x12xf32>
    %cst_13 = arith.constant 0.000000e+00 : f32
    %58 = vector.broadcast %cst_13 : f32 to vector<20x12xf32>
    %59 = arith.maximumf %57, %58 : vector<20x12xf32>
    %60 = vector.extract_strided_slice %35 {offsets = [0, 56], sizes = [20, 24], strides = [1, 1]} : vector<20x668xf32> to vector<20x24xf32>
    %61 = vector.extract_strided_slice %35 {offsets = [0, 84], sizes = [20, 24], strides = [1, 1]} : vector<20x668xf32> to vector<20x24xf32>
    %62 = arith.maximumf %60, %61 : vector<20x24xf32>
    %cst_14 = arith.constant dense<0.000000e+00> : vector<20x12xf32>
    %63 = tpu.matmul %62, %43, %cst_14 {dimension_numbers = #tpu.dot_dimension_numbers<[1], [0], [0], [1], [0, 0, 1, 1], [], []>} : vector<20x24xf32>, vector<24x12xf32>, vector<20x12xf32> -> vector<20x12xf32>
    %cst_15 = arith.constant dense<0.000000e+00> : vector<20x12xf32>
    %64 = tpu.matmul %62, %51, %cst_15 {dimension_numbers = #tpu.dot_dimension_numbers<[1], [0], [0], [1], [0, 0, 1, 1], [], []>} : vector<20x24xf32>, vector<24x12xf32>, vector<20x12xf32> -> vector<20x12xf32>
    %65 = arith.maximumf %63, %64 : vector<20x12xf32>
    %cst_16 = arith.constant 0.000000e+00 : f32
    %66 = vector.broadcast %cst_16 : f32 to vector<20x12xf32>
    %67 = arith.maximumf %65, %66 : vector<20x12xf32>
    %68 = vector.extract_strided_slice %35 {offsets = [0, 112], sizes = [20, 24], strides = [1, 1]} : vector<20x668xf32> to vector<20x24xf32>
    %69 = vector.extract_strided_slice %35 {offsets = [0, 140], sizes = [20, 24], strides = [1, 1]} : vector<20x668xf32> to vector<20x24xf32>
    %70 = arith.maximumf %68, %69 : vector<20x24xf32>
    %cst_17 = arith.constant dense<0.000000e+00> : vector<20x12xf32>
    %71 = tpu.matmul %70, %43, %cst_17 {dimension_numbers = #tpu.dot_dimension_numbers<[1], [0], [0], [1], [0, 0, 1, 1], [], []>} : vector<20x24xf32>, vector<24x12xf32>, vector<20x12xf32> -> vector<20x12xf32>
    %cst_18 = arith.constant dense<0.000000e+00> : vector<20x12xf32>
    %72 = tpu.matmul %70, %51, %cst_18 {dimension_numbers = #tpu.dot_dimension_numbers<[1], [0], [0], [1], [0, 0, 1, 1], [], []>} : vector<20x24xf32>, vector<24x12xf32>, vector<20x12xf32> -> vector<20x12xf32>
    %73 = arith.maximumf %71, %72 : vector<20x12xf32>
    %cst_19 = arith.constant 0.000000e+00 : f32
    %74 = vector.broadcast %cst_19 : f32 to vector<20x12xf32>
    %75 = arith.maximumf %73, %74 : vector<20x12xf32>
    %76 = vector.extract_strided_slice %35 {offsets = [0, 168], sizes = [20, 24], strides = [1, 1]} : vector<20x668xf32> to vector<20x24xf32>
    %77 = vector.extract_strided_slice %35 {offsets = [0, 196], sizes = [20, 24], strides = [1, 1]} : vector<20x668xf32> to vector<20x24xf32>
    %78 = arith.maximumf %76, %77 : vector<20x24xf32>
    %cst_20 = arith.constant dense<0.000000e+00> : vector<20x12xf32>
    %79 = tpu.matmul %78, %43, %cst_20 {dimension_numbers = #tpu.dot_dimension_numbers<[1], [0], [0], [1], [0, 0, 1, 1], [], []>} : vector<20x24xf32>, vector<24x12xf32>, vector<20x12xf32> -> vector<20x12xf32>
    %cst_21 = arith.constant dense<0.000000e+00> : vector<20x12xf32>
    %80 = tpu.matmul %78, %51, %cst_21 {dimension_numbers = #tpu.dot_dimension_numbers<[1], [0], [0], [1], [0, 0, 1, 1], [], []>} : vector<20x24xf32>, vector<24x12xf32>, vector<20x12xf32> -> vector<20x12xf32>
    %81 = arith.maximumf %79, %80 : vector<20x12xf32>
    %cst_22 = arith.constant 0.000000e+00 : f32
    %82 = vector.broadcast %cst_22 : f32 to vector<20x12xf32>
    %83 = arith.maximumf %81, %82 : vector<20x12xf32>
    %84 = vector.extract_strided_slice %35 {offsets = [0, 224], sizes = [20, 24], strides = [1, 1]} : vector<20x668xf32> to vector<20x24xf32>
    %85 = vector.extract_strided_slice %35 {offsets = [0, 252], sizes = [20, 24], strides = [1, 1]} : vector<20x668xf32> to vector<20x24xf32>
    %86 = arith.maximumf %84, %85 : vector<20x24xf32>
    %cst_23 = arith.constant dense<0.000000e+00> : vector<20x12xf32>
    %87 = tpu.matmul %86, %43, %cst_23 {dimension_numbers = #tpu.dot_dimension_numbers<[1], [0], [0], [1], [0, 0, 1, 1], [], []>} : vector<20x24xf32>, vector<24x12xf32>, vector<20x12xf32> -> vector<20x12xf32>
    %cst_24 = arith.constant dense<0.000000e+00> : vector<20x12xf32>
    %88 = tpu.matmul %86, %51, %cst_24 {dimension_numbers = #tpu.dot_dimension_numbers<[1], [0], [0], [1], [0, 0, 1, 1], [], []>} : vector<20x24xf32>, vector<24x12xf32>, vector<20x12xf32> -> vector<20x12xf32>
    %89 = arith.maximumf %87, %88 : vector<20x12xf32>
    %cst_25 = arith.constant 0.000000e+00 : f32
    %90 = vector.broadcast %cst_25 : f32 to vector<20x12xf32>
    %91 = arith.maximumf %89, %90 : vector<20x12xf32>
    %92 = vector.extract_strided_slice %35 {offsets = [0, 280], sizes = [20, 24], strides = [1, 1]} : vector<20x668xf32> to vector<20x24xf32>
    %93 = vector.extract_strided_slice %35 {offsets = [0, 308], sizes = [20, 24], strides = [1, 1]} : vector<20x668xf32> to vector<20x24xf32>
    %94 = arith.maximumf %92, %93 : vector<20x24xf32>
    %cst_26 = arith.constant dense<0.000000e+00> : vector<20x12xf32>
    %95 = tpu.matmul %94, %43, %cst_26 {dimension_numbers = #tpu.dot_dimension_numbers<[1], [0], [0], [1], [0, 0, 1, 1], [], []>} : vector<20x24xf32>, vector<24x12xf32>, vector<20x12xf32> -> vector<20x12xf32>
    %cst_27 = arith.constant dense<0.000000e+00> : vector<20x12xf32>
    %96 = tpu.matmul %94, %51, %cst_27 {dimension_numbers = #tpu.dot_dimension_numbers<[1], [0], [0], [1], [0, 0, 1, 1], [], []>} : vector<20x24xf32>, vector<24x12xf32>, vector<20x12xf32> -> vector<20x12xf32>
    %97 = arith.maximumf %95, %96 : vector<20x12xf32>
    %cst_28 = arith.constant 0.000000e+00 : f32
    %98 = vector.broadcast %cst_28 : f32 to vector<20x12xf32>
    %99 = arith.maximumf %97, %98 : vector<20x12xf32>
    %100 = vector.extract_strided_slice %35 {offsets = [0, 336], sizes = [20, 24], strides = [1, 1]} : vector<20x668xf32> to vector<20x24xf32>
    %101 = vector.extract_strided_slice %35 {offsets = [0, 364], sizes = [20, 24], strides = [1, 1]} : vector<20x668xf32> to vector<20x24xf32>
    %102 = arith.maximumf %100, %101 : vector<20x24xf32>
    %cst_29 = arith.constant dense<0.000000e+00> : vector<20x12xf32>
    %103 = tpu.matmul %102, %43, %cst_29 {dimension_numbers = #tpu.dot_dimension_numbers<[1], [0], [0], [1], [0, 0, 1, 1], [], []>} : vector<20x24xf32>, vector<24x12xf32>, vector<20x12xf32> -> vector<20x12xf32>
    %cst_30 = arith.constant dense<0.000000e+00> : vector<20x12xf32>
    %104 = tpu.matmul %102, %51, %cst_30 {dimension_numbers = #tpu.dot_dimension_numbers<[1], [0], [0], [1], [0, 0, 1, 1], [], []>} : vector<20x24xf32>, vector<24x12xf32>, vector<20x12xf32> -> vector<20x12xf32>
    %105 = arith.maximumf %103, %104 : vector<20x12xf32>
    %cst_31 = arith.constant 0.000000e+00 : f32
    %106 = vector.broadcast %cst_31 : f32 to vector<20x12xf32>
    %107 = arith.maximumf %105, %106 : vector<20x12xf32>
    %108 = vector.extract_strided_slice %35 {offsets = [0, 392], sizes = [20, 24], strides = [1, 1]} : vector<20x668xf32> to vector<20x24xf32>
    %109 = vector.extract_strided_slice %35 {offsets = [0, 420], sizes = [20, 24], strides = [1, 1]} : vector<20x668xf32> to vector<20x24xf32>
    %110 = arith.maximumf %108, %109 : vector<20x24xf32>
    %cst_32 = arith.constant dense<0.000000e+00> : vector<20x12xf32>
    %111 = tpu.matmul %110, %43, %cst_32 {dimension_numbers = #tpu.dot_dimension_numbers<[1], [0], [0], [1], [0, 0, 1, 1], [], []>} : vector<20x24xf32>, vector<24x12xf32>, vector<20x12xf32> -> vector<20x12xf32>
    %cst_33 = arith.constant dense<0.000000e+00> : vector<20x12xf32>
    %112 = tpu.matmul %110, %51, %cst_33 {dimension_numbers = #tpu.dot_dimension_numbers<[1], [0], [0], [1], [0, 0, 1, 1], [], []>} : vector<20x24xf32>, vector<24x12xf32>, vector<20x12xf32> -> vector<20x12xf32>
    %113 = arith.maximumf %111, %112 : vector<20x12xf32>
    %cst_34 = arith.constant 0.000000e+00 : f32
    %114 = vector.broadcast %cst_34 : f32 to vector<20x12xf32>
    %115 = arith.maximumf %113, %114 : vector<20x12xf32>
    %116 = vector.extract_strided_slice %35 {offsets = [0, 448], sizes = [20, 24], strides = [1, 1]} : vector<20x668xf32> to vector<20x24xf32>
    %117 = vector.extract_strided_slice %35 {offsets = [0, 476], sizes = [20, 24], strides = [1, 1]} : vector<20x668xf32> to vector<20x24xf32>
    %118 = arith.maximumf %116, %117 : vector<20x24xf32>
    %cst_35 = arith.constant dense<0.000000e+00> : vector<20x12xf32>
    %119 = tpu.matmul %118, %43, %cst_35 {dimension_numbers = #tpu.dot_dimension_numbers<[1], [0], [0], [1], [0, 0, 1, 1], [], []>} : vector<20x24xf32>, vector<24x12xf32>, vector<20x12xf32> -> vector<20x12xf32>
    %cst_36 = arith.constant dense<0.000000e+00> : vector<20x12xf32>
    %120 = tpu.matmul %118, %51, %cst_36 {dimension_numbers = #tpu.dot_dimension_numbers<[1], [0], [0], [1], [0, 0, 1, 1], [], []>} : vector<20x24xf32>, vector<24x12xf32>, vector<20x12xf32> -> vector<20x12xf32>
    %121 = arith.maximumf %119, %120 : vector<20x12xf32>
    %cst_37 = arith.constant 0.000000e+00 : f32
    %122 = vector.broadcast %cst_37 : f32 to vector<20x12xf32>
    %123 = arith.maximumf %121, %122 : vector<20x12xf32>
    %124 = vector.extract_strided_slice %35 {offsets = [0, 504], sizes = [20, 24], strides = [1, 1]} : vector<20x668xf32> to vector<20x24xf32>
    %125 = vector.extract_strided_slice %35 {offsets = [0, 532], sizes = [20, 24], strides = [1, 1]} : vector<20x668xf32> to vector<20x24xf32>
    %126 = arith.maximumf %124, %125 : vector<20x24xf32>
    %cst_38 = arith.constant dense<0.000000e+00> : vector<20x12xf32>
    %127 = tpu.matmul %126, %43, %cst_38 {dimension_numbers = #tpu.dot_dimension_numbers<[1], [0], [0], [1], [0, 0, 1, 1], [], []>} : vector<20x24xf32>, vector<24x12xf32>, vector<20x12xf32> -> vector<20x12xf32>
    %cst_39 = arith.constant dense<0.000000e+00> : vector<20x12xf32>
    %128 = tpu.matmul %126, %51, %cst_39 {dimension_numbers = #tpu.dot_dimension_numbers<[1], [0], [0], [1], [0, 0, 1, 1], [], []>} : vector<20x24xf32>, vector<24x12xf32>, vector<20x12xf32> -> vector<20x12xf32>
    %129 = arith.maximumf %127, %128 : vector<20x12xf32>
    %cst_40 = arith.constant 0.000000e+00 : f32
    %130 = vector.broadcast %cst_40 : f32 to vector<20x12xf32>
    %131 = arith.maximumf %129, %130 : vector<20x12xf32>
    %132 = vector.extract_strided_slice %35 {offsets = [0, 560], sizes = [20, 24], strides = [1, 1]} : vector<20x668xf32> to vector<20x24xf32>
    %133 = vector.extract_strided_slice %35 {offsets = [0, 588], sizes = [20, 24], strides = [1, 1]} : vector<20x668xf32> to vector<20x24xf32>
    %134 = arith.maximumf %132, %133 : vector<20x24xf32>
    %cst_41 = arith.constant dense<0.000000e+00> : vector<20x12xf32>
    %135 = tpu.matmul %134, %43, %cst_41 {dimension_numbers = #tpu.dot_dimension_numbers<[1], [0], [0], [1], [0, 0, 1, 1], [], []>} : vector<20x24xf32>, vector<24x12xf32>, vector<20x12xf32> -> vector<20x12xf32>
    %cst_42 = arith.constant dense<0.000000e+00> : vector<20x12xf32>
    %136 = tpu.matmul %134, %51, %cst_42 {dimension_numbers = #tpu.dot_dimension_numbers<[1], [0], [0], [1], [0, 0, 1, 1], [], []>} : vector<20x24xf32>, vector<24x12xf32>, vector<20x12xf32> -> vector<20x12xf32>
    %137 = arith.maximumf %135, %136 : vector<20x12xf32>
    %cst_43 = arith.constant 0.000000e+00 : f32
    %138 = vector.broadcast %cst_43 : f32 to vector<20x12xf32>
    %139 = arith.maximumf %137, %138 : vector<20x12xf32>
    %140 = vector.extract_strided_slice %35 {offsets = [0, 616], sizes = [20, 24], strides = [1, 1]} : vector<20x668xf32> to vector<20x24xf32>
    %141 = vector.extract_strided_slice %35 {offsets = [0, 644], sizes = [20, 24], strides = [1, 1]} : vector<20x668xf32> to vector<20x24xf32>
    %142 = arith.maximumf %140, %141 : vector<20x24xf32>
    %cst_44 = arith.constant dense<0.000000e+00> : vector<20x12xf32>
    %143 = tpu.matmul %142, %43, %cst_44 {dimension_numbers = #tpu.dot_dimension_numbers<[1], [0], [0], [1], [0, 0, 1, 1], [], []>} : vector<20x24xf32>, vector<24x12xf32>, vector<20x12xf32> -> vector<20x12xf32>
    %cst_45 = arith.constant dense<0.000000e+00> : vector<20x12xf32>
    %144 = tpu.matmul %142, %51, %cst_45 {dimension_numbers = #tpu.dot_dimension_numbers<[1], [0], [0], [1], [0, 0, 1, 1], [], []>} : vector<20x24xf32>, vector<24x12xf32>, vector<20x12xf32> -> vector<20x12xf32>
    %145 = arith.maximumf %143, %144 : vector<20x12xf32>
    %cst_46 = arith.constant 0.000000e+00 : f32
    %146 = vector.broadcast %cst_46 : f32 to vector<20x12xf32>
    %147 = arith.maximumf %145, %146 : vector<20x12xf32>
    %148 = tpu.concatenate %59, %67, %75, %83, %91, %99, %107, %115, %123, %131, %139, %147 in 1 : vector<20x12xf32>, vector<20x12xf32>, vector<20x12xf32>, vector<20x12xf32>, vector<20x12xf32>, vector<20x12xf32>, vector<20x12xf32>, vector<20x12xf32>, vector<20x12xf32>, vector<20x12xf32>, vector<20x12xf32>, vector<20x12xf32> -> vector<20x144xf32>
    %149 = arith.truncf %148 : vector<20x144xf32> to vector<20x144xbf16>
    %150 = vector.extract_strided_slice %149 {offsets = [0, 0], sizes = [20, 92], strides = [1, 1]} : vector<20x144xbf16> to vector<20x92xbf16>
    %151 = vector.extract_strided_slice %149 {offsets = [0, 1], sizes = [20, 92], strides = [1, 1]} : vector<20x144xbf16> to vector<20x92xbf16>
    %152 = vector.extract_strided_slice %149 {offsets = [0, 2], sizes = [20, 92], strides = [1, 1]} : vector<20x144xbf16> to vector<20x92xbf16>
    %153 = vector.extract_strided_slice %149 {offsets = [0, 3], sizes = [20, 92], strides = [1, 1]} : vector<20x144xbf16> to vector<20x92xbf16>
    %154 = vector.extract_strided_slice %149 {offsets = [0, 4], sizes = [20, 92], strides = [1, 1]} : vector<20x144xbf16> to vector<20x92xbf16>
    %155 = vector.extract_strided_slice %149 {offsets = [0, 12], sizes = [20, 92], strides = [1, 1]} : vector<20x144xbf16> to vector<20x92xbf16>
    %156 = vector.extract_strided_slice %149 {offsets = [0, 13], sizes = [20, 92], strides = [1, 1]} : vector<20x144xbf16> to vector<20x92xbf16>
    %157 = vector.extract_strided_slice %149 {offsets = [0, 14], sizes = [20, 92], strides = [1, 1]} : vector<20x144xbf16> to vector<20x92xbf16>
    %158 = vector.extract_strided_slice %149 {offsets = [0, 15], sizes = [20, 92], strides = [1, 1]} : vector<20x144xbf16> to vector<20x92xbf16>
    %159 = vector.extract_strided_slice %149 {offsets = [0, 16], sizes = [20, 92], strides = [1, 1]} : vector<20x144xbf16> to vector<20x92xbf16>
    %160 = vector.extract_strided_slice %149 {offsets = [0, 24], sizes = [20, 92], strides = [1, 1]} : vector<20x144xbf16> to vector<20x92xbf16>
    %161 = vector.extract_strided_slice %149 {offsets = [0, 25], sizes = [20, 92], strides = [1, 1]} : vector<20x144xbf16> to vector<20x92xbf16>
    %162 = vector.extract_strided_slice %149 {offsets = [0, 26], sizes = [20, 92], strides = [1, 1]} : vector<20x144xbf16> to vector<20x92xbf16>
    %163 = vector.extract_strided_slice %149 {offsets = [0, 27], sizes = [20, 92], strides = [1, 1]} : vector<20x144xbf16> to vector<20x92xbf16>
    %164 = vector.extract_strided_slice %149 {offsets = [0, 28], sizes = [20, 92], strides = [1, 1]} : vector<20x144xbf16> to vector<20x92xbf16>
    %165 = vector.extract_strided_slice %149 {offsets = [0, 36], sizes = [20, 92], strides = [1, 1]} : vector<20x144xbf16> to vector<20x92xbf16>
    %166 = vector.extract_strided_slice %149 {offsets = [0, 37], sizes = [20, 92], strides = [1, 1]} : vector<20x144xbf16> to vector<20x92xbf16>
    %167 = vector.extract_strided_slice %149 {offsets = [0, 38], sizes = [20, 92], strides = [1, 1]} : vector<20x144xbf16> to vector<20x92xbf16>
    %168 = vector.extract_strided_slice %149 {offsets = [0, 39], sizes = [20, 92], strides = [1, 1]} : vector<20x144xbf16> to vector<20x92xbf16>
    %169 = vector.extract_strided_slice %149 {offsets = [0, 40], sizes = [20, 92], strides = [1, 1]} : vector<20x144xbf16> to vector<20x92xbf16>
    %170 = vector.extract_strided_slice %149 {offsets = [0, 48], sizes = [20, 92], strides = [1, 1]} : vector<20x144xbf16> to vector<20x92xbf16>
    %171 = vector.extract_strided_slice %149 {offsets = [0, 49], sizes = [20, 92], strides = [1, 1]} : vector<20x144xbf16> to vector<20x92xbf16>
    %172 = vector.extract_strided_slice %149 {offsets = [0, 50], sizes = [20, 92], strides = [1, 1]} : vector<20x144xbf16> to vector<20x92xbf16>
    %173 = vector.extract_strided_slice %149 {offsets = [0, 51], sizes = [20, 92], strides = [1, 1]} : vector<20x144xbf16> to vector<20x92xbf16>
    %174 = vector.extract_strided_slice %149 {offsets = [0, 52], sizes = [20, 92], strides = [1, 1]} : vector<20x144xbf16> to vector<20x92xbf16>
    %175 = tpu.concatenate %150, %151, %152, %153, %154, %155, %156, %157, %158, %159, %160, %161, %162, %163, %164, %165 in 0 : vector<20x92xbf16>, vector<20x92xbf16>, vector<20x92xbf16>, vector<20x92xbf16>, vector<20x92xbf16>, vector<20x92xbf16>, vector<20x92xbf16>, vector<20x92xbf16>, vector<20x92xbf16>, vector<20x92xbf16>, vector<20x92xbf16>, vector<20x92xbf16>, vector<20x92xbf16>, vector<20x92xbf16>, vector<20x92xbf16>, vector<20x92xbf16> -> vector<320x92xbf16>
    %176 = tpu.concatenate %166, %167, %168, %169, %170, %171, %172, %173, %174 in 0 : vector<20x92xbf16>, vector<20x92xbf16>, vector<20x92xbf16>, vector<20x92xbf16>, vector<20x92xbf16>, vector<20x92xbf16>, vector<20x92xbf16>, vector<20x92xbf16>, vector<20x92xbf16> -> vector<180x92xbf16>
    %177 = tpu.concatenate %175, %176 in 0 : vector<320x92xbf16>, vector<180x92xbf16> -> vector<500x92xbf16>
    %c0_47 = arith.constant 0 : index
    %c0_48 = arith.constant 0 : index
    %178 = vector.load %arg4[%c0_47, %c0_48] : memref<20x500xbf16, #tpu.memory_space<vmem>>, vector<20x500xbf16>
    %cst_49 = arith.constant dense<0.000000e+00> : vector<20x92xf32>
    %179 = tpu.matmul %178, %177, %cst_49 {dimension_numbers = #tpu.dot_dimension_numbers<[1], [0], [0], [1], [0, 0, 1, 1], [], []>} : vector<20x500xbf16>, vector<500x92xbf16>, vector<20x92xf32> -> vector<20x92xf32>
    %c0_50 = arith.constant 0 : index
    %c0_51 = arith.constant 0 : index
    %180 = vector.load %arg5[%c0_50, %c0_51] : memref<20x1xf32, #tpu.memory_space<vmem>>, vector<20x1xf32>
    %181 = vector.broadcast %180 : vector<20x1xf32> to vector<20x92xf32>
    %182 = arith.addf %179, %181 : vector<20x92xf32>
    %183 = tpu.iota {dimensions = array<i32: 0>} : vector<8x4xi32>
    %184 = tpu.iota {dimensions = array<i32: 1>} : vector<8x4xi32>
    %c2_i32_52 = arith.constant 2 : i32
    %185 = vector.broadcast %c2_i32_52 : i32 to vector<8x4xi32>
    %186 = arith.muli %185, %184 : vector<8x4xi32>
    %187 = arith.cmpi eq, %183, %186 : vector<8x4xi32>
    %cst_53 = arith.constant 1.000000e+00 : f32
    %cst_54 = arith.constant 0.000000e+00 : f32
    %188 = vector.broadcast %cst_53 : f32 to vector<8x4xf32>
    %189 = vector.broadcast %cst_54 : f32 to vector<8x4xf32>
    %190 = arith.select %187, %188, %189 : vector<8x4xi1>, vector<8x4xf32>
    %c2_i32_55 = arith.constant 2 : i32
    %191 = vector.broadcast %c2_i32_55 : i32 to vector<8x4xi32>
    %192 = arith.muli %191, %184 : vector<8x4xi32>
    %c1_i32_56 = arith.constant 1 : i32
    %193 = vector.broadcast %c1_i32_56 : i32 to vector<8x4xi32>
    %194 = arith.addi %192, %193 : vector<8x4xi32>
    %195 = arith.cmpi eq, %183, %194 : vector<8x4xi32>
    %cst_57 = arith.constant 1.000000e+00 : f32
    %cst_58 = arith.constant 0.000000e+00 : f32
    %196 = vector.broadcast %cst_57 : f32 to vector<8x4xf32>
    %197 = vector.broadcast %cst_58 : f32 to vector<8x4xf32>
    %198 = arith.select %195, %196, %197 : vector<8x4xi1>, vector<8x4xf32>
    %199 = vector.extract_strided_slice %182 {offsets = [0, 0], sizes = [20, 8], strides = [1, 1]} : vector<20x92xf32> to vector<20x8xf32>
    %200 = vector.extract_strided_slice %182 {offsets = [0, 12], sizes = [20, 8], strides = [1, 1]} : vector<20x92xf32> to vector<20x8xf32>
    %201 = arith.maximumf %199, %200 : vector<20x8xf32>
    %cst_59 = arith.constant dense<0.000000e+00> : vector<20x4xf32>
    %202 = tpu.matmul %201, %190, %cst_59 {dimension_numbers = #tpu.dot_dimension_numbers<[1], [0], [0], [1], [0, 0, 1, 1], [], []>} : vector<20x8xf32>, vector<8x4xf32>, vector<20x4xf32> -> vector<20x4xf32>
    %cst_60 = arith.constant dense<0.000000e+00> : vector<20x4xf32>
    %203 = tpu.matmul %201, %198, %cst_60 {dimension_numbers = #tpu.dot_dimension_numbers<[1], [0], [0], [1], [0, 0, 1, 1], [], []>} : vector<20x8xf32>, vector<8x4xf32>, vector<20x4xf32> -> vector<20x4xf32>
    %204 = arith.maximumf %202, %203 : vector<20x4xf32>
    %cst_61 = arith.constant 0.000000e+00 : f32
    %205 = vector.broadcast %cst_61 : f32 to vector<20x4xf32>
    %206 = arith.maximumf %204, %205 : vector<20x4xf32>
    %207 = vector.extract_strided_slice %206 {offsets = [0, 0], sizes = [20, 1], strides = [1, 1]} : vector<20x4xf32> to vector<20x1xf32>
    %208 = vector.extract_strided_slice %206 {offsets = [0, 1], sizes = [20, 1], strides = [1, 1]} : vector<20x4xf32> to vector<20x1xf32>
    %209 = vector.extract_strided_slice %206 {offsets = [0, 2], sizes = [20, 1], strides = [1, 1]} : vector<20x4xf32> to vector<20x1xf32>
    %210 = vector.extract_strided_slice %206 {offsets = [0, 3], sizes = [20, 1], strides = [1, 1]} : vector<20x4xf32> to vector<20x1xf32>
    %211 = vector.extract_strided_slice %182 {offsets = [0, 24], sizes = [20, 8], strides = [1, 1]} : vector<20x92xf32> to vector<20x8xf32>
    %212 = vector.extract_strided_slice %182 {offsets = [0, 36], sizes = [20, 8], strides = [1, 1]} : vector<20x92xf32> to vector<20x8xf32>
    %213 = arith.maximumf %211, %212 : vector<20x8xf32>
    %cst_62 = arith.constant dense<0.000000e+00> : vector<20x4xf32>
    %214 = tpu.matmul %213, %190, %cst_62 {dimension_numbers = #tpu.dot_dimension_numbers<[1], [0], [0], [1], [0, 0, 1, 1], [], []>} : vector<20x8xf32>, vector<8x4xf32>, vector<20x4xf32> -> vector<20x4xf32>
    %cst_63 = arith.constant dense<0.000000e+00> : vector<20x4xf32>
    %215 = tpu.matmul %213, %198, %cst_63 {dimension_numbers = #tpu.dot_dimension_numbers<[1], [0], [0], [1], [0, 0, 1, 1], [], []>} : vector<20x8xf32>, vector<8x4xf32>, vector<20x4xf32> -> vector<20x4xf32>
    %216 = arith.maximumf %214, %215 : vector<20x4xf32>
    %cst_64 = arith.constant 0.000000e+00 : f32
    %217 = vector.broadcast %cst_64 : f32 to vector<20x4xf32>
    %218 = arith.maximumf %216, %217 : vector<20x4xf32>
    %219 = vector.extract_strided_slice %218 {offsets = [0, 0], sizes = [20, 1], strides = [1, 1]} : vector<20x4xf32> to vector<20x1xf32>
    %220 = vector.extract_strided_slice %218 {offsets = [0, 1], sizes = [20, 1], strides = [1, 1]} : vector<20x4xf32> to vector<20x1xf32>
    %221 = vector.extract_strided_slice %218 {offsets = [0, 2], sizes = [20, 1], strides = [1, 1]} : vector<20x4xf32> to vector<20x1xf32>
    %222 = vector.extract_strided_slice %218 {offsets = [0, 3], sizes = [20, 1], strides = [1, 1]} : vector<20x4xf32> to vector<20x1xf32>
    %223 = vector.extract_strided_slice %182 {offsets = [0, 48], sizes = [20, 8], strides = [1, 1]} : vector<20x92xf32> to vector<20x8xf32>
    %224 = vector.extract_strided_slice %182 {offsets = [0, 60], sizes = [20, 8], strides = [1, 1]} : vector<20x92xf32> to vector<20x8xf32>
    %225 = arith.maximumf %223, %224 : vector<20x8xf32>
    %cst_65 = arith.constant dense<0.000000e+00> : vector<20x4xf32>
    %226 = tpu.matmul %225, %190, %cst_65 {dimension_numbers = #tpu.dot_dimension_numbers<[1], [0], [0], [1], [0, 0, 1, 1], [], []>} : vector<20x8xf32>, vector<8x4xf32>, vector<20x4xf32> -> vector<20x4xf32>
    %cst_66 = arith.constant dense<0.000000e+00> : vector<20x4xf32>
    %227 = tpu.matmul %225, %198, %cst_66 {dimension_numbers = #tpu.dot_dimension_numbers<[1], [0], [0], [1], [0, 0, 1, 1], [], []>} : vector<20x8xf32>, vector<8x4xf32>, vector<20x4xf32> -> vector<20x4xf32>
    %228 = arith.maximumf %226, %227 : vector<20x4xf32>
    %cst_67 = arith.constant 0.000000e+00 : f32
    %229 = vector.broadcast %cst_67 : f32 to vector<20x4xf32>
    %230 = arith.maximumf %228, %229 : vector<20x4xf32>
    %231 = vector.extract_strided_slice %230 {offsets = [0, 0], sizes = [20, 1], strides = [1, 1]} : vector<20x4xf32> to vector<20x1xf32>
    %232 = vector.extract_strided_slice %230 {offsets = [0, 1], sizes = [20, 1], strides = [1, 1]} : vector<20x4xf32> to vector<20x1xf32>
    %233 = vector.extract_strided_slice %230 {offsets = [0, 2], sizes = [20, 1], strides = [1, 1]} : vector<20x4xf32> to vector<20x1xf32>
    %234 = vector.extract_strided_slice %230 {offsets = [0, 3], sizes = [20, 1], strides = [1, 1]} : vector<20x4xf32> to vector<20x1xf32>
    %235 = vector.extract_strided_slice %182 {offsets = [0, 72], sizes = [20, 8], strides = [1, 1]} : vector<20x92xf32> to vector<20x8xf32>
    %236 = vector.extract_strided_slice %182 {offsets = [0, 84], sizes = [20, 8], strides = [1, 1]} : vector<20x92xf32> to vector<20x8xf32>
    %237 = arith.maximumf %235, %236 : vector<20x8xf32>
    %cst_68 = arith.constant dense<0.000000e+00> : vector<20x4xf32>
    %238 = tpu.matmul %237, %190, %cst_68 {dimension_numbers = #tpu.dot_dimension_numbers<[1], [0], [0], [1], [0, 0, 1, 1], [], []>} : vector<20x8xf32>, vector<8x4xf32>, vector<20x4xf32> -> vector<20x4xf32>
    %cst_69 = arith.constant dense<0.000000e+00> : vector<20x4xf32>
    %239 = tpu.matmul %237, %198, %cst_69 {dimension_numbers = #tpu.dot_dimension_numbers<[1], [0], [0], [1], [0, 0, 1, 1], [], []>} : vector<20x8xf32>, vector<8x4xf32>, vector<20x4xf32> -> vector<20x4xf32>
    %240 = arith.maximumf %238, %239 : vector<20x4xf32>
    %cst_70 = arith.constant 0.000000e+00 : f32
    %241 = vector.broadcast %cst_70 : f32 to vector<20x4xf32>
    %242 = arith.maximumf %240, %241 : vector<20x4xf32>
    %243 = vector.extract_strided_slice %242 {offsets = [0, 0], sizes = [20, 1], strides = [1, 1]} : vector<20x4xf32> to vector<20x1xf32>
    %244 = vector.extract_strided_slice %242 {offsets = [0, 1], sizes = [20, 1], strides = [1, 1]} : vector<20x4xf32> to vector<20x1xf32>
    %245 = vector.extract_strided_slice %242 {offsets = [0, 2], sizes = [20, 1], strides = [1, 1]} : vector<20x4xf32> to vector<20x1xf32>
    %246 = vector.extract_strided_slice %242 {offsets = [0, 3], sizes = [20, 1], strides = [1, 1]} : vector<20x4xf32> to vector<20x1xf32>
    %247 = tpu.concatenate %207, %208, %209, %210, %219, %220, %221, %222, %231, %232, %233, %234, %243, %244, %245, %246 in 0 : vector<20x1xf32>, vector<20x1xf32>, vector<20x1xf32>, vector<20x1xf32>, vector<20x1xf32>, vector<20x1xf32>, vector<20x1xf32>, vector<20x1xf32>, vector<20x1xf32>, vector<20x1xf32>, vector<20x1xf32>, vector<20x1xf32>, vector<20x1xf32>, vector<20x1xf32>, vector<20x1xf32>, vector<20x1xf32> -> vector<320x1xf32>
    %c0_71 = arith.constant 0 : index
    %c0_72 = arith.constant 0 : index
    %248 = vector.load %arg6[%c0_71, %c0_72] : memref<50x320xf32, #tpu.memory_space<vmem>>, vector<50x320xf32>
    %cst_73 = arith.constant dense<0.000000e+00> : vector<50x1xf32>
    %249 = tpu.matmul %248, %247, %cst_73 {dimension_numbers = #tpu.dot_dimension_numbers<[1], [0], [0], [1], [0, 0, 1, 1], [], []>} : vector<50x320xf32>, vector<320x1xf32>, vector<50x1xf32> -> vector<50x1xf32>
    %c0_74 = arith.constant 0 : index
    %c0_75 = arith.constant 0 : index
    %250 = vector.load %arg7[%c0_74, %c0_75] : memref<50x1xf32, #tpu.memory_space<vmem>>, vector<50x1xf32>
    %251 = arith.addf %249, %250 : vector<50x1xf32>
    %cst_76 = arith.constant 0.000000e+00 : f32
    %252 = vector.broadcast %cst_76 : f32 to vector<50x1xf32>
    %253 = arith.maximumf %251, %252 : vector<50x1xf32>
    %c0_77 = arith.constant 0 : index
    %c0_78 = arith.constant 0 : index
    %254 = vector.load %arg8[%c0_77, %c0_78] : memref<10x50xf32, #tpu.memory_space<vmem>>, vector<10x50xf32>
    %cst_79 = arith.constant dense<0.000000e+00> : vector<10x1xf32>
    %255 = tpu.matmul %254, %253, %cst_79 {dimension_numbers = #tpu.dot_dimension_numbers<[1], [0], [0], [1], [0, 0, 1, 1], [], []>} : vector<10x50xf32>, vector<50x1xf32>, vector<10x1xf32> -> vector<10x1xf32>
    %c0_80 = arith.constant 0 : index
    %c0_81 = arith.constant 0 : index
    %256 = vector.load %arg9[%c0_80, %c0_81] : memref<10x1xf32, #tpu.memory_space<vmem>>, vector<10x1xf32>
    %257 = arith.addf %255, %256 : vector<10x1xf32>
    %cst_82 = arith.constant 0.000000e+00 : f32
    %258 = vector.broadcast %cst_82 : f32 to vector<10x1xf32>
    %259 = arith.maximumf %257, %258 : vector<10x1xf32>
    %c0_83 = arith.constant 0 : index
    %c0_84 = arith.constant 0 : index
    %c0_85 = arith.constant 0 : index
    %260 = vector.load %arg10[%c0_83, %c0_84, %c0_85] : memref<1x10x1xf32, #tpu.memory_space<vmem>>, vector<1x10x1xf32>
    %261 = vector.shape_cast %260 : vector<1x10x1xf32> to vector<10x1xf32>
    %262 = vector.shape_cast %259 : vector<10x1xf32> to vector<1x10x1xf32>
    tpu.vector_store %arg10[%c0_83, %c0_84, %c0_85], %262 {strides = array<i32>} : memref<1x10x1xf32, #tpu.memory_space<vmem>>, vector<1x10x1xf32>,
    return
  }
  func.func @transform_0(%arg0: i32) -> (i32, i32, i32) {
    %c0_i32 = arith.constant 0 : i32
    %c0_i32_0 = arith.constant 0 : i32
    %c0_i32_1 = arith.constant 0 : i32
    return %arg0, %c0_i32, %c0_i32_0 : i32, i32, i32
  }
  func.func @transform_1(%arg0: i32) -> (i32, i32) {
    %c0_i32 = arith.constant 0 : i32
    %c0_i32_0 = arith.constant 0 : i32
    %c0_i32_1 = arith.constant 0 : i32
    return %c0_i32, %c0_i32_0 : i32, i32
  }
  func.func @transform_2(%arg0: i32) -> (i32, i32) {
    %c0_i32 = arith.constant 0 : i32
    %c0_i32_0 = arith.constant 0 : i32
    %c0_i32_1 = arith.constant 0 : i32
    return %c0_i32, %c0_i32_0 : i32, i32
  }
  func.func @transform_3(%arg0: i32) -> (i32, i32) {
    %c0_i32 = arith.constant 0 : i32
    %c0_i32_0 = arith.constant 0 : i32
    %c0_i32_1 = arith.constant 0 : i32
    return %c0_i32, %c0_i32_0 : i32, i32
  }
  func.func @transform_4(%arg0: i32) -> (i32, i32) {
    %c0_i32 = arith.constant 0 : i32
    %c0_i32_0 = arith.constant 0 : i32
    %c0_i32_1 = arith.constant 0 : i32
    return %c0_i32, %c0_i32_0 : i32, i32
  }
  func.func @transform_5(%arg0: i32) -> (i32, i32) {
    %c0_i32 = arith.constant 0 : i32
    %c0_i32_0 = arith.constant 0 : i32
    %c0_i32_1 = arith.constant 0 : i32
    return %c0_i32, %c0_i32_0 : i32, i32
  }
  func.func @transform_6(%arg0: i32) -> (i32, i32) {
    %c0_i32 = arith.constant 0 : i32
    %c0_i32_0 = arith.constant 0 : i32
    %c0_i32_1 = arith.constant 0 : i32
    return %c0_i32, %c0_i32_0 : i32, i32
  }
  func.func @transform_7(%arg0: i32) -> (i32, i32) {
    %c0_i32 = arith.constant 0 : i32
    %c0_i32_0 = arith.constant 0 : i32
    %c0_i32_1 = arith.constant 0 : i32
    return %c0_i32, %c0_i32_0 : i32, i32
  }
  func.func @transform_8(%arg0: i32) -> (i32, i32) {
    %c0_i32 = arith.constant 0 : i32
    %c0_i32_0 = arith.constant 0 : i32
    %c0_i32_1 = arith.constant 0 : i32
    return %c0_i32, %c0_i32_0 : i32, i32
  }
  func.func @transform_9(%arg0: i32) -> (i32, i32, i32) {
    %c0_i32 = arith.constant 0 : i32
    %c0_i32_0 = arith.constant 0 : i32
    %c0_i32_1 = arith.constant 0 : i32
    return %arg0, %c0_i32, %c0_i32_0 : i32, i32, i32
  }
}

</mosaic_0001>

<llo_original>
// kernel: net_forward.1
$region0: #{net_forward.1}
  #allocation0 [shape = 'u32[]', space=smem, size = 0x4, offset = 0x4, fixed_abs, tag = 'smem constant byte address 0x4 - core index']
  #allocation1 [shape = 'u32[144,128]{1,0:T(1,128)}', space=vmem, size = 0x12000, scoped, tag = 'internal scratch']
  %s0 = inlined_call_operand.vmem [shape: f32[2,1,784], index: 0, kind: input, shape index: {}]
  %s1 = inlined_call_operand.vmem [shape: bf16[20,25], index: 1, kind: input, shape index: {}]
  %s2 = inlined_call_operand.vmem [shape: f32[20,1], index: 2, kind: input, shape index: {}]
  %s3 = inlined_call_operand.vmem [shape: bf16[20,500], index: 3, kind: input, shape index: {}]
  %s4 = inlined_call_operand.vmem [shape: f32[20,1], index: 4, kind: input, shape index: {}]
  %s5 = inlined_call_operand.vmem [shape: f32[50,320], index: 5, kind: input, shape index: {}]
  %s6 = inlined_call_operand.vmem [shape: f32[50,1], index: 6, kind: input, shape index: {}]
  %s7 = inlined_call_operand.vmem [shape: f32[10,50], index: 7, kind: input, shape index: {}]
  %s8 = inlined_call_operand.vmem [shape: f32[10,1], index: 8, kind: input, shape index: {}]
  %s9 = inlined_call_operand.vmem [shape: f32[2,10,1], index: 9, kind: output, shape index: {}]
  %s10 = sld [smem:[#allocation0]]
  $region69: #{net_forward.1} parent=0
    _
  %s12 = ssub.s32 1, %s10
  %s13 = scalar_select 0, %s12, %s10
  loop: start=0, step=1, limit=4
  $region2: #{net_forward.1} parent=0 // loop_pre_header
    _
  $region3: #{net_forward.1} parent=0 // loop_header
    %s15 = sphi 0, %s19
    %p16 = scmp.ge.s32.totalorder %s15, 4
    %s25 = sphi 0, %s27
    %s28 = sphi 0, %s25
    %s29 = sphi 0, %s28
    %s45 = sphi 0, %s29
    %s49 = sphi 0, %s49
    %s51 = sphi 0, %s49
    %s52 = sphi 0, %s51
    %s66 = sphi 0, %s52
    %s70 = sphi 0, %s70
    %s72 = sphi 0, %s70
    %s73 = sphi 0, %s72
    %s87 = sphi 0, %s73
    %s91 = sphi 0, %s91
    %s93 = sphi 0, %s91
    %s94 = sphi 0, %s93
    %s108 = sphi 0, %s94
    %s112 = sphi 0, %s112
    %s114 = sphi 0, %s112
    %s115 = sphi 0, %s114
    %s129 = sphi 0, %s115
    %s133 = sphi 0, %s133
    %s135 = sphi 0, %s133
    %s136 = sphi 0, %s135
    %s150 = sphi 0, %s136
    %s154 = sphi 0, %s154
    %s156 = sphi 0, %s154
    %s157 = sphi 0, %s156
    %s171 = sphi 0, %s157
    %s175 = sphi 0, %s175
    %s177 = sphi 0, %s175
    %s178 = sphi 0, %s177
    %s192 = sphi 0, %s178
    %s196 = sphi 0, %s196
    %s198 = sphi 0, %s196
    %s199 = sphi 0, %s198
    %s213 = sphi 0, %s199
    %s219 = sphi 0, %s221
    %s222 = sphi 0, %s219
    %s223 = sphi 0, %s222
    %s239 = sphi 0, %s223
  $region4: #{net_forward.1} parent=0 // loop_header_branch
    %18 = sbr.rel (%p16) target = $region8
  $region5: #{net_forward.1} parent=0 // loop_body
    %s20 = ssub.s32 %s15, 1
    %s21 = ssub.s32 %s15, 2
    %s22 = sadd.s32 %s15, 1
    %s23 = ssub.s32 %s15, %s22
    %p24 = scmp.eq.s32.totalorder %s23, 0
    %s26 = sadd.s32 %s25, 1
    %s27 = scalar_select %p24, %s25, %s26
    %p30 = pneg %p24
    %p31 = scmp.eq.s32.totalorder %s15, 1
    %p32 = por %p30, %p31
    %p33 = scmp.ne.s32.totalorder %s25, %s28
    %p34 = scmp.eq.s32.totalorder %s15, 0
    %p35 = por %p33, %p34
    %p36 = scmp.ne.s32.totalorder %s25, %s28
    %p37 = scmp.eq.s32.totalorder %s20, 1
    %p38 = por %p36, %p37
    %p39 = scmp.ne.s32.totalorder %s28, %s29
    %p40 = scmp.eq.s32.totalorder %s20, 0
    %p41 = por %p39, %p40
    %p42 = scmp.ne.s32.totalorder %s28, %s29
    %p43 = scmp.eq.s32.totalorder %s21, 1
    %p44 = por %p42, %p43
    %p46 = scmp.ne.s32.totalorder %s29, %s45
    %p47 = scmp.eq.s32.totalorder %s21, 0
    %p48 = por %p46, %p47
    %s50 = sadd.s32 %s49, 1
    %p53 = scmp.eq.s32.totalorder %s15, 1
    %p54 = scmp.ne.s32.totalorder %s49, %s51
    %p55 = scmp.eq.s32.totalorder %s15, 0
    %p56 = por %p54, %p55
    %p57 = scmp.ne.s32.totalorder %s49, %s51
    %p58 = scmp.eq.s32.totalorder %s20, 1
    %p59 = por %p57, %p58
    %p60 = scmp.ne.s32.totalorder %s51, %s52
    %p61 = scmp.eq.s32.totalorder %s20, 0
    %p62 = por %p60, %p61
    %p63 = scmp.ne.s32.totalorder %s51, %s52
    %p64 = scmp.eq.s32.totalorder %s21, 1
    %p65 = por %p63, %p64
    %p67 = scmp.ne.s32.totalorder %s52, %s66
    %p68 = scmp.eq.s32.totalorder %s21, 0
    %p69 = por %p67, %p68
    %s71 = sadd.s32 %s70, 1
    %p74 = scmp.eq.s32.totalorder %s15, 1
    %p75 = scmp.ne.s32.totalorder %s70, %s72
    %p76 = scmp.eq.s32.totalorder %s15, 0
    %p77 = por %p75, %p76
    %p78 = scmp.ne.s32.totalorder %s70, %s72
    %p79 = scmp.eq.s32.totalorder %s20, 1
    %p80 = por %p78, %p79
    %p81 = scmp.ne.s32.totalorder %s72, %s73
    %p82 = scmp.eq.s32.totalorder %s20, 0
    %p83 = por %p81, %p82
    %p84 = scmp.ne.s32.totalorder %s72, %s73
    %p85 = scmp.eq.s32.totalorder %s21, 1
    %p86 = por %p84, %p85
    %p88 = scmp.ne.s32.totalorder %s73, %s87
    %p89 = scmp.eq.s32.totalorder %s21, 0
    %p90 = por %p88, %p89
    %s92 = sadd.s32 %s91, 1
    %p95 = scmp.eq.s32.totalorder %s15, 1
    %p96 = scmp.ne.s32.totalorder %s91, %s93
    %p97 = scmp.eq.s32.totalorder %s15, 0
    %p98 = por %p96, %p97
    %p99 = scmp.ne.s32.totalorder %s91, %s93
    %p100 = scmp.eq.s32.totalorder %s20, 1
    %p101 = por %p99, %p100
    %p102 = scmp.ne.s32.totalorder %s93, %s94
    %p103 = scmp.eq.s32.totalorder %s20, 0
    %p104 = por %p102, %p103
    %p105 = scmp.ne.s32.totalorder %s93, %s94
    %p106 = scmp.eq.s32.totalorder %s21, 1
    %p107 = por %p105, %p106
    %p109 = scmp.ne.s32.totalorder %s94, %s108
    %p110 = scmp.eq.s32.totalorder %s21, 0
    %p111 = por %p109, %p110
    %s113 = sadd.s32 %s112, 1
    %p116 = scmp.eq.s32.totalorder %s15, 1
    %p117 = scmp.ne.s32.totalorder %s112, %s114
    %p118 = scmp.eq.s32.totalorder %s15, 0
    %p119 = por %p117, %p118
    %p120 = scmp.ne.s32.totalorder %s112, %s114
    %p121 = scmp.eq.s32.totalorder %s20, 1
    %p122 = por %p120, %p121
    %p123 = scmp.ne.s32.totalorder %s114, %s115
    %p124 = scmp.eq.s32.totalorder %s20, 0
    %p125 = por %p123, %p124
    %p126 = scmp.ne.s32.totalorder %s114, %s115
    %p127 = scmp.eq.s32.totalorder %s21, 1
    %p128 = por %p126, %p127
    %p130 = scmp.ne.s32.totalorder %s115, %s129
    %p131 = scmp.eq.s32.totalorder %s21, 0
    %p132 = por %p130, %p131
    %s134 = sadd.s32 %s133, 1
    %p137 = scmp.eq.s32.totalorder %s15, 1
    %p138 = scmp.ne.s32.totalorder %s133, %s135
    %p139 = scmp.eq.s32.totalorder %s15, 0
    %p140 = por %p138, %p139
    %p141 = scmp.ne.s32.totalorder %s133, %s135
    %p142 = scmp.eq.s32.totalorder %s20, 1
    %p143 = por %p141, %p142
    %p144 = scmp.ne.s32.totalorder %s135, %s136
    %p145 = scmp.eq.s32.totalorder %s20, 0
    %p146 = por %p144, %p145
    %p147 = scmp.ne.s32.totalorder %s135, %s136
    %p148 = scmp.eq.s32.totalorder %s21, 1
    %p149 = por %p147, %p148
    %p151 = scmp.ne.s32.totalorder %s136, %s150
    %p152 = scmp.eq.s32.totalorder %s21, 0
    %p153 = por %p151, %p152
    %s155 = sadd.s32 %s154, 1
    %p158 = scmp.eq.s32.totalorder %s15, 1
    %p159 = scmp.ne.s32.totalorder %s154, %s156
    %p160 = scmp.eq.s32.totalorder %s15, 0
    %p161 = por %p159, %p160
    %p162 = scmp.ne.s32.totalorder %s154, %s156
    %p163 = scmp.eq.s32.totalorder %s20, 1
    %p164 = por %p162, %p163
    %p165 = scmp.ne.s32.totalorder %s156, %s157
    %p166 = scmp.eq.s32.totalorder %s20, 0
    %p167 = por %p165, %p166
    %p168 = scmp.ne.s32.totalorder %s156, %s157
    %p169 = scmp.eq.s32.totalorder %s21, 1
    %p170 = por %p168, %p169
    %p172 = scmp.ne.s32.totalorder %s157, %s171
    %p173 = scmp.eq.s32.totalorder %s21, 0
    %p174 = por %p172, %p173
    %s176 = sadd.s32 %s175, 1
    %p179 = scmp.eq.s32.totalorder %s15, 1
    %p180 = scmp.ne.s32.totalorder %s175, %s177
    %p181 = scmp.eq.s32.totalorder %s15, 0
    %p182 = por %p180, %p181
    %p183 = scmp.ne.s32.totalorder %s175, %s177
    %p184 = scmp.eq.s32.totalorder %s20, 1
    %p185 = por %p183, %p184
    %p186 = scmp.ne.s32.totalorder %s177, %s178
    %p187 = scmp.eq.s32.totalorder %s20, 0
    %p188 = por %p186, %p187
    %p189 = scmp.ne.s32.totalorder %s177, %s178
    %p190 = scmp.eq.s32.totalorder %s21, 1
    %p191 = por %p189, %p190
    %p193 = scmp.ne.s32.totalorder %s178, %s192
    %p194 = scmp.eq.s32.totalorder %s21, 0
    %p195 = por %p193, %p194
    %s197 = sadd.s32 %s196, 1
    %p200 = scmp.eq.s32.totalorder %s15, 1
    %p201 = scmp.ne.s32.totalorder %s196, %s198
    %p202 = scmp.eq.s32.totalorder %s15, 0
    %p203 = por %p201, %p202
    %p204 = scmp.ne.s32.totalorder %s196, %s198
    %p205 = scmp.eq.s32.totalorder %s20, 1
    %p206 = por %p204, %p205
    %p207 = scmp.ne.s32.totalorder %s198, %s199
    %p208 = scmp.eq.s32.totalorder %s20, 0
    %p209 = por %p207, %p208
    %p210 = scmp.ne.s32.totalorder %s198, %s199
    %p211 = scmp.eq.s32.totalorder %s21, 1
    %p212 = por %p210, %p211
    %p214 = scmp.ne.s32.totalorder %s199, %s213
    %p215 = scmp.eq.s32.totalorder %s21, 0
    %p216 = por %p214, %p215
    %s217 = ssub.s32 %s15, %s22
    %p218 = scmp.eq.s32.totalorder %s217, 0
    %s220 = sadd.s32 %s219, 1
    %s221 = scalar_select %p218, %s219, %s220
    %p224 = pneg %p218
    %p225 = scmp.eq.s32.totalorder %s15, 1
    %p226 = por %p224, %p225
    %p227 = scmp.ne.s32.totalorder %s219, %s222
    %p228 = scmp.eq.s32.totalorder %s15, 0
    %p229 = por %p227, %p228
    %p230 = scmp.ne.s32.totalorder %s219, %s222
    %p231 = scmp.eq.s32.totalorder %s20, 1
    %p232 = por %p230, %p231
    %p233 = scmp.ne.s32.totalorder %s222, %s223
    %p234 = scmp.eq.s32.totalorder %s20, 0
    %p235 = por %p233, %p234
    %p236 = scmp.ne.s32.totalorder %s222, %s223
    %p237 = scmp.eq.s32.totalorder %s21, 1
    %p238 = por %p236, %p237
    %p240 = scmp.ne.s32.totalorder %s223, %s239
    %p241 = scmp.eq.s32.totalorder %s21, 0
    %p242 = por %p240, %p241
    %p243 = scmp.le.s32.totalorder 1, %s15
    %p244 = scmp.lt.s32.totalorder %s15, 3
    %p245 = pnand %p243, %p244
    %p246 = pneg %p245
    // Predicated region
    $region9: #{net_forward.1} parent=5 // pred_check
      _
    $region10: #{net_forward.1} parent=5 // pred_check_branch
      %248 = sbr.rel (%p245) target = $region12
    $region11: #{net_forward.1} parent=5 // pred_region
      %s249 = ssub.s32 %s15, 1
      // Predicated region
      $region13: #{net_forward.1} parent=11 // pred_check
        %p250 = pneg %p62
      $region14: #{net_forward.1} parent=11 // pred_check_branch
        %252 = sbr.rel (%p250) target = $region16
      $region15: #{net_forward.1} parent=11 // pred_region
        _
      $region16: #{net_forward.1} parent=11 // pred_fallthru
        _
      // Predicated region
      $region17: #{net_forward.1} parent=11 // pred_check
        %p253 = pneg %p83
      $region18: #{net_forward.1} parent=11 // pred_check_branch
        %255 = sbr.rel (%p253) target = $region20
      $region19: #{net_forward.1} parent=11 // pred_region
        _
      $region20: #{net_forward.1} parent=11 // pred_fallthru
        _
      // Predicated region
      $region21: #{net_forward.1} parent=11 // pred_check
        %p256 = pneg %p104
      $region22: #{net_forward.1} parent=11 // pred_check_branch
        %258 = sbr.rel (%p256) target = $region24
      $region23: #{net_forward.1} parent=11 // pred_region
        _
      $region24: #{net_forward.1} parent=11 // pred_fallthru
        _
      // Predicated region
      $region25: #{net_forward.1} parent=11 // pred_check
        %p259 = pneg %p125
      $region26: #{net_forward.1} parent=11 // pred_check_branch
        %261 = sbr.rel (%p259) target = $region28
      $region27: #{net_forward.1} parent=11 // pred_region
        _
      $region28: #{net_forward.1} parent=11 // pred_fallthru
        _
      // Predicated region
      $region29: #{net_forward.1} parent=11 // pred_check
        %p262 = pneg %p146
      $region30: #{net_forward.1} parent=11 // pred_check_branch
        %264 = sbr.rel (%p262) target = $region32
      $region31: #{net_forward.1} parent=11 // pred_region
        _
      $region32: #{net_forward.1} parent=11 // pred_fallthru
        _
      // Predicated region
      $region33: #{net_forward.1} parent=11 // pred_check
        %p265 = pneg %p167
      $region34: #{net_forward.1} parent=11 // pred_check_branch
        %267 = sbr.rel (%p265) target = $region36
      $region35: #{net_forward.1} parent=11 // pred_region
        _
      $region36: #{net_forward.1} parent=11 // pred_fallthru
        _
      // Predicated region
      $region37: #{net_forward.1} parent=11 // pred_check
        %p268 = pneg %p188
      $region38: #{net_forward.1} parent=11 // pred_check_branch
        %270 = sbr.rel (%p268) target = $region40
      $region39: #{net_forward.1} parent=11 // pred_region
        _
      $region40: #{net_forward.1} parent=11 // pred_fallthru
        _
      // Predicated region
      $region41: #{net_forward.1} parent=11 // pred_check
        %p271 = pneg %p209
      $region42: #{net_forward.1} parent=11 // pred_check_branch
        %273 = sbr.rel (%p271) target = $region44
      $region43: #{net_forward.1} parent=11 // pred_region
        _
      $region44: #{net_forward.1} parent=11 // pred_fallthru
        _
    $region12: #{net_forward.1} parent=5 // pred_fallthru
      _
    %p274 = scmp.lt.s32.totalorder %s15, 2
    // Predicated region
    $region45: #{net_forward.1} parent=5 // pred_check
      %p275 = pneg %p274
    $region46: #{net_forward.1} parent=5 // pred_check_branch
      %277 = sbr.rel (%p275) target = $region48
    $region47: #{net_forward.1} parent=5 // pred_region
      // Predicated region
      $region49: #{net_forward.1} parent=47 // pred_check
        %p278 = pneg %p35
      $region50: #{net_forward.1} parent=47 // pred_check_branch
        %280 = sbr.rel (%p278) target = $region52
      $region51: #{net_forward.1} parent=47 // pred_region
        %p281 = scmp.lt.s32.totalorder %s15, 1
        %s282 = scalar_select %p281, %s15, 1
        %s283 = smul.addr %s282, 7
        %s284 = scalar_lea.vmem %s0, %s283
      $region52: #{net_forward.1} parent=47 // pred_fallthru
        _
    $region48: #{net_forward.1} parent=5 // pred_fallthru
      _
    %p285 = scmp.le.s32.totalorder 1, %s15
    %p286 = scmp.lt.s32.totalorder %s15, 3
    %p287 = pnand %p285, %p286
    %p288 = pneg %p287
    // Predicated region
    $region53: #{net_forward.1} parent=5 // pred_check
      _
    $region54: #{net_forward.1} parent=5 // pred_check_branch
      %290 = sbr.rel (%p287) target = $region56
    $region55: #{net_forward.1} parent=5 // pred_region
      %s291 = ssub.s32 %s15, 1
      %p292 = scmp.lt.s32.totalorder %s20, 1
      %s293 = scalar_select %p292, %s20, 1
      %s294 = smul.addr %s293, 7
      %s295 = scalar_lea.vmem %s0, %s294
      %p296 = pneg %p41
      %p297 = pneg %p38
      %p298 = pneg %p62
      %p299 = pneg %p59
      %p300 = pneg %p83
      %p301 = pneg %p80
      %p302 = pneg %p104
      %p303 = pneg %p101
      %p304 = pneg %p125
      %p305 = pneg %p122
      %p306 = pneg %p146
      %p307 = pneg %p143
      %p308 = pneg %p167
      %p309 = pneg %p164
      %p310 = pneg %p188
      %p311 = pneg %p185
      %p312 = pneg %p209
      %p313 = pneg %p206
      %p314 = pneg %p235
      %p315 = pneg %p232
      %p316 = scmp.lt.s32.totalorder %s20, 1
      %s317 = scalar_select %p316, %s20, 1
      %s318 = smul.addr %s317, 2
      %s319 = smul.addr %s318, 8
      %s320 = scalar_lea.vmem %s9, %s319
      %p321 = scmp.lt.s32.totalorder %s20, 1
      %s322 = scalar_select %p321, %s20, 1
      %s323 = smul.addr %s322, 7
      %s324 = scalar_lea.vmem %s0, %s323
      %p325 = scmp.lt.s32.totalorder %s20, 1
      %s326 = scalar_select %p325, %s20, 1
      %s327 = smul.addr %s326, 2
      %s328 = smul.addr %s327, 8
      %s329 = scalar_lea.vmem %s9, %s328
      %v331 = vld [vmem:[%s324] sm:$0x7f]
      %v333 = vlaneseq
      %v334 = vshrl.u32 %v333, 7
      %v335 = vsub.s32 0, %v334
      %v336 = vrot.slane %v331, %v335
      %v337 = vlaneseq
      %v338 = vshrl.u32 %v337, 7
      %v339 = vsub.s32 1, %v338
      %v340 = vrot.slane %v331, %v339
      %v341 = vlaneseq
      %v342 = vshrl.u32 %v341, 7
      %v343 = vsub.s32 2, %v342
      %v344 = vrot.slane %v331, %v343
      %v345 = vlaneseq
      %v346 = vshrl.u32 %v345, 7
      %v347 = vsub.s32 3, %v346
      %v348 = vrot.slane %v331, %v347
      %v349 = vlaneseq
      %v350 = vshrl.u32 %v349, 7
      %v351 = vsub.s32 4, %v350
      %v352 = vrot.slane %v331, %v351
      %v353 = vlaneseq
      %v354 = vshrl.u32 %v353, 7
      %v355 = vsub.s32 5, %v354
      %v356 = vrot.slane %v331, %v355
      %v357 = vlaneseq
      %v358 = vshrl.u32 %v357, 7
      %v359 = vsub.s32 6, %v358
      %v360 = vrot.slane %v331, %v359
      %v368 = vpack.c.bf16 %v336, %v336
      %v369 = vpack.c.bf16 %v340, %v340
      %v370 = vpack.c.bf16 %v344, %v344
      %v371 = vpack.c.bf16 %v348, %v348
      %v372 = vpack.c.bf16 %v352, %v352
      %v373 = vpack.c.bf16 %v356, %v356
      %v374 = vpack.c.bf16 %v360, %v360
      %v376 = vshll.u32 %v368, 16
      %v379 = vshll.u32 %v369, 16
      %v382 = vshll.u32 %v370, 16
      %v385 = vshll.u32 %v371, 16
      %v388 = vshll.u32 %v372, 16
      %v391 = vshll.u32 %v373, 16
      %393 = vrot.lane.b32.xlu0 %v376, 127
      %v394 = vpop.permute.xlu0 %393
      %395 = vrot.lane.b32.xlu0 %v379, 127
      %v396 = vpop.permute.xlu0 %395
      %397 = vrot.lane.b32.xlu0 %v382, 127
      %v398 = vpop.permute.xlu0 %397
      %399 = vrot.lane.b32.xlu0 %v385, 127
      %v400 = vpop.permute.xlu0 %399
      %401 = vrot.lane.b32.xlu0 %v388, 127
      %v402 = vpop.permute.xlu0 %401
      %403 = vrot.lane.b32.xlu0 %v391, 127
      %v404 = vpop.permute.xlu0 %403
      %vm405 = vcmask 1039360
      %v406 = vsel %vm405, %v394, %v396
      %v407 = vsel %vm405, %v396, %v398
      %v408 = vsel %vm405, %v398, %v400
      %v409 = vsel %vm405, %v400, %v402
      %v410 = vsel %vm405, %v402, %v404
      %v423 = vrot.slane %v368, 7
      %v424 = vrot.slane %v369, 7
      %v425 = vrot.slane %v370, 7
      %v426 = vrot.slane %v371, 7
      %v427 = vrot.slane %v372, 7
      %v428 = vrot.slane %v373, 7
      %429 = vrot.lane.b32.xlu0 %v423, 126
      %v430 = vpop.permute.xlu0 %429
      %431 = vrot.lane.b32.xlu0 %v424, 126
      %v432 = vpop.permute.xlu0 %431
      %433 = vrot.lane.b32.xlu0 %v425, 126
      %v434 = vpop.permute.xlu0 %433
      %435 = vrot.lane.b32.xlu0 %v426, 126
      %v436 = vpop.permute.xlu0 %435
      %437 = vrot.lane.b32.xlu0 %v427, 126
      %v438 = vpop.permute.xlu0 %437
      %439 = vrot.lane.b32.xlu0 %v428, 126
      %v440 = vpop.permute.xlu0 %439
      %vm441 = vcmask 1031168
      %v442 = vsel %vm441, %v430, %v432
      %v443 = vsel %vm441, %v432, %v434
      %v444 = vsel %vm441, %v434, %v436
      %v445 = vsel %vm441, %v436, %v438
      %v446 = vsel %vm441, %v438, %v440
      %v447 = vrot.slane %v376, 7
      %v448 = vrot.slane %v379, 7
      %v449 = vrot.slane %v382, 7
      %v450 = vrot.slane %v385, 7
      %v451 = vrot.slane %v388, 7
      %v452 = vrot.slane %v391, 7
      %453 = vrot.lane.b32.xlu0 %v447, 125
      %v454 = vpop.permute.xlu0 %453
      %455 = vrot.lane.b32.xlu0 %v448, 125
      %v456 = vpop.permute.xlu0 %455
      %457 = vrot.lane.b32.xlu0 %v449, 125
      %v458 = vpop.permute.xlu0 %457
      %459 = vrot.lane.b32.xlu0 %v450, 125
      %v460 = vpop.permute.xlu0 %459
      %461 = vrot.lane.b32.xlu0 %v451, 125
      %v462 = vpop.permute.xlu0 %461
      %463 = vrot.lane.b32.xlu0 %v452, 125
      %v464 = vpop.permute.xlu0 %463
      %vm465 = vcmask 1022976
      %v466 = vsel %vm465, %v454, %v456
      %v467 = vsel %vm465, %v456, %v458
      %v468 = vsel %vm465, %v458, %v460
      %v469 = vsel %vm465, %v460, %v462
      %v470 = vsel %vm465, %v462, %v464
      %v477 = vrot.slane %v368, 6
      %v478 = vrot.slane %v369, 6
      %v479 = vrot.slane %v370, 6
      %v480 = vrot.slane %v371, 6
      %v481 = vrot.slane %v372, 6
      %v482 = vrot.slane %v373, 6
      %483 = vrot.lane.b32.xlu0 %v477, 124
      %v484 = vpop.permute.xlu0 %483
      %485 = vrot.lane.b32.xlu0 %v478, 124
      %v486 = vpop.permute.xlu0 %485
      %487 = vrot.lane.b32.xlu0 %v479, 124
      %v488 = vpop.permute.xlu0 %487
      %489 = vrot.lane.b32.xlu0 %v480, 124
      %v490 = vpop.permute.xlu0 %489
      %491 = vrot.lane.b32.xlu0 %v481, 124
      %v492 = vpop.permute.xlu0 %491
      %493 = vrot.lane.b32.xlu0 %v482, 124
      %v494 = vpop.permute.xlu0 %493
      %vm495 = vcmask 1014784
      %v496 = vsel %vm495, %v484, %v486
      %v497 = vsel %vm495, %v486, %v488
      %v498 = vsel %vm495, %v488, %v490
      %v499 = vsel %vm495, %v490, %v492
      %v500 = vsel %vm495, %v492, %v494
      %v501 = vrot.slane %v376, 6
      %v502 = vrot.slane %v379, 6
      %v503 = vrot.slane %v382, 6
      %v504 = vrot.slane %v385, 6
      %v505 = vrot.slane %v388, 6
      %v506 = vrot.slane %v391, 6
      %507 = vrot.lane.b32.xlu0 %v501, 100
      %v508 = vpop.permute.xlu0 %507
      %509 = vrot.lane.b32.xlu0 %v502, 100
      %v510 = vpop.permute.xlu0 %509
      %511 = vrot.lane.b32.xlu0 %v503, 100
      %v512 = vpop.permute.xlu0 %511
      %513 = vrot.lane.b32.xlu0 %v504, 100
      %v514 = vpop.permute.xlu0 %513
      %515 = vrot.lane.b32.xlu0 %v505, 100
      %v516 = vpop.permute.xlu0 %515
      %517 = vrot.lane.b32.xlu0 %v506, 100
      %v518 = vpop.permute.xlu0 %517
      %vm519 = vcmask 818176
      %v520 = vsel %vm519, %v508, %v510
      %v521 = vsel %vm519, %v510, %v512
      %v522 = vsel %vm519, %v512, %v514
      %v523 = vsel %vm519, %v514, %v516
      %v524 = vsel %vm519, %v516, %v518
      %v531 = vrot.slane %v368, 5
      %v532 = vrot.slane %v369, 5
      %v533 = vrot.slane %v370, 5
      %v534 = vrot.slane %v371, 5
      %v535 = vrot.slane %v372, 5
      %v536 = vrot.slane %v373, 5
      %537 = vrot.lane.b32.xlu0 %v531, 99
      %v538 = vpop.permute.xlu0 %537
      %539 = vrot.lane.b32.xlu0 %v532, 99
      %v540 = vpop.permute.xlu0 %539
      %541 = vrot.lane.b32.xlu0 %v533, 99
      %v542 = vpop.permute.xlu0 %541
      %543 = vrot.lane.b32.xlu0 %v534, 99
      %v544 = vpop.permute.xlu0 %543
      %545 = vrot.lane.b32.xlu0 %v535, 99
      %v546 = vpop.permute.xlu0 %545
      %547 = vrot.lane.b32.xlu0 %v536, 99
      %v548 = vpop.permute.xlu0 %547
      %vm549 = vcmask 809984
      %v550 = vsel %vm549, %v538, %v540
      %v551 = vsel %vm549, %v540, %v542
      %v552 = vsel %vm549, %v542, %v544
      %v553 = vsel %vm549, %v544, %v546
      %v554 = vsel %vm549, %v546, %v548
      %v555 = vrot.slane %v376, 5
      %v556 = vrot.slane %v379, 5
      %v557 = vrot.slane %v382, 5
      %v558 = vrot.slane %v385, 5
      %v559 = vrot.slane %v388, 5
      %v560 = vrot.slane %v391, 5
      %561 = vrot.lane.b32.xlu0 %v555, 98
      %v562 = vpop.permute.xlu0 %561
      %563 = vrot.lane.b32.xlu0 %v556, 98
      %v564 = vpop.permute.xlu0 %563
      %565 = vrot.lane.b32.xlu0 %v557, 98
      %v566 = vpop.permute.xlu0 %565
      %567 = vrot.lane.b32.xlu0 %v558, 98
      %v568 = vpop.permute.xlu0 %567
      %569 = vrot.lane.b32.xlu0 %v559, 98
      %v570 = vpop.permute.xlu0 %569
      %571 = vrot.lane.b32.xlu0 %v560, 98
      %v572 = vpop.permute.xlu0 %571
      %vm573 = vcmask 801792
      %v574 = vsel %vm573, %v562, %v564
      %v575 = vsel %vm573, %v564, %v566
      %v576 = vsel %vm573, %v566, %v568
      %v577 = vsel %vm573, %v568, %v570
      %v578 = vsel %vm573, %v570, %v572
      %v585 = vrot.slane %v368, 4
      %v586 = vrot.slane %v369, 4
      %v587 = vrot.slane %v370, 4
      %v588 = vrot.slane %v371, 4
      %v589 = vrot.slane %v372, 4
      %v590 = vrot.slane %v373, 4
      %591 = vrot.lane.b32.xlu0 %v585, 97
      %v592 = vpop.permute.xlu0 %591
      %593 = vrot.lane.b32.xlu0 %v586, 97
      %v594 = vpop.permute.xlu0 %593
      %595 = vrot.lane.b32.xlu0 %v587, 97
      %v596 = vpop.permute.xlu0 %595
      %597 = vrot.lane.b32.xlu0 %v588, 97
      %v598 = vpop.permute.xlu0 %597
      %599 = vrot.lane.b32.xlu0 %v589, 97
      %v600 = vpop.permute.xlu0 %599
      %601 = vrot.lane.b32.xlu0 %v590, 97
      %v602 = vpop.permute.xlu0 %601
      %vm603 = vcmask 793600
      %v604 = vsel %vm603, %v592, %v594
      %v605 = vsel %vm603, %v594, %v596
      %v606 = vsel %vm603, %v596, %v598
      %v607 = vsel %vm603, %v598, %v600
      %v608 = vsel %vm603, %v600, %v602
      %v609 = vrot.slane %v376, 4
      %v610 = vrot.slane %v379, 4
      %v611 = vrot.slane %v382, 4
      %v612 = vrot.slane %v385, 4
      %v613 = vrot.slane %v388, 4
      %v614 = vrot.slane %v391, 4
      %615 = vrot.lane.b32.xlu0 %v609, 96
      %v616 = vpop.permute.xlu0 %615
      %617 = vrot.lane.b32.xlu0 %v610, 96
      %v618 = vpop.permute.xlu0 %617
      %619 = vrot.lane.b32.xlu0 %v611, 96
      %v620 = vpop.permute.xlu0 %619
      %621 = vrot.lane.b32.xlu0 %v612, 96
      %v622 = vpop.permute.xlu0 %621
      %623 = vrot.lane.b32.xlu0 %v613, 96
      %v624 = vpop.permute.xlu0 %623
      %625 = vrot.lane.b32.xlu0 %v614, 96
      %v626 = vpop.permute.xlu0 %625
      %vm627 = vcmask 785408
      %v628 = vsel %vm627, %v616, %v618
      %v629 = vsel %vm627, %v618, %v620
      %v630 = vsel %vm627, %v620, %v622
      %v631 = vsel %vm627, %v622, %v624
      %v632 = vsel %vm627, %v624, %v626
      %v639 = vrot.slane %v368, 3
      %v640 = vrot.slane %v369, 3
      %v641 = vrot.slane %v370, 3
      %v642 = vrot.slane %v371, 3
      %v643 = vrot.slane %v372, 3
      %v644 = vrot.slane %v373, 3
      %645 = vrot.lane.b32.xlu0 %v639, 72
      %v646 = vpop.permute.xlu0 %645
      %647 = vrot.lane.b32.xlu0 %v640, 72
      %v648 = vpop.permute.xlu0 %647
      %649 = vrot.lane.b32.xlu0 %v641, 72
      %v650 = vpop.permute.xlu0 %649
      %651 = vrot.lane.b32.xlu0 %v642, 72
      %v652 = vpop.permute.xlu0 %651
      %653 = vrot.lane.b32.xlu0 %v643, 72
      %v654 = vpop.permute.xlu0 %653
      %655 = vrot.lane.b32.xlu0 %v644, 72
      %v656 = vpop.permute.xlu0 %655
      %vm657 = vcmask 588800
      %v658 = vsel %vm657, %v646, %v648
      %v659 = vsel %vm657, %v648, %v650
      %v660 = vsel %vm657, %v650, %v652
      %v661 = vsel %vm657, %v652, %v654
      %v662 = vsel %vm657, %v654, %v656
      %v663 = vrot.slane %v376, 3
      %v664 = vrot.slane %v379, 3
      %v665 = vrot.slane %v382, 3
      %v666 = vrot.slane %v385, 3
      %v667 = vrot.slane %v388, 3
      %v668 = vrot.slane %v391, 3
      %669 = vrot.lane.b32.xlu0 %v663, 71
      %v670 = vpop.permute.xlu0 %669
      %671 = vrot.lane.b32.xlu0 %v664, 71
      %v672 = vpop.permute.xlu0 %671
      %673 = vrot.lane.b32.xlu0 %v665, 71
      %v674 = vpop.permute.xlu0 %673
      %675 = vrot.lane.b32.xlu0 %v666, 71
      %v676 = vpop.permute.xlu0 %675
      %677 = vrot.lane.b32.xlu0 %v667, 71
      %v678 = vpop.permute.xlu0 %677
      %679 = vrot.lane.b32.xlu0 %v668, 71
      %v680 = vpop.permute.xlu0 %679
      %vm681 = vcmask 580608
      %v682 = vsel %vm681, %v670, %v672
      %v683 = vsel %vm681, %v672, %v674
      %v684 = vsel %vm681, %v674, %v676
      %v685 = vsel %vm681, %v676, %v678
      %v686 = vsel %vm681, %v678, %v680
      %v693 = vrot.slane %v368, 2
      %v694 = vrot.slane %v369, 2
      %v695 = vrot.slane %v370, 2
      %v696 = vrot.slane %v371, 2
      %v697 = vrot.slane %v372, 2
      %v698 = vrot.slane %v373, 2
      %699 = vrot.lane.b32.xlu0 %v693, 70
      %v700 = vpop.permute.xlu0 %699
      %701 = vrot.lane.b32.xlu0 %v694, 70
      %v702 = vpop.permute.xlu0 %701
      %703 = vrot.lane.b32.xlu0 %v695, 70
      %v704 = vpop.permute.xlu0 %703
      %705 = vrot.lane.b32.xlu0 %v696, 70
      %v706 = vpop.permute.xlu0 %705
      %707 = vrot.lane.b32.xlu0 %v697, 70
      %v708 = vpop.permute.xlu0 %707
      %709 = vrot.lane.b32.xlu0 %v698, 70
      %v710 = vpop.permute.xlu0 %709
      %vm711 = vcmask 572416
      %v712 = vsel %vm711, %v700, %v702
      %v713 = vsel %vm711, %v702, %v704
      %v714 = vsel %vm711, %v704, %v706
      %v715 = vsel %vm711, %v706, %v708
      %v716 = vsel %vm711, %v708, %v710
      %v717 = vrot.slane %v376, 2
      %v718 = vrot.slane %v379, 2
      %v719 = vrot.slane %v382, 2
      %v720 = vrot.slane %v385, 2
      %v721 = vrot.slane %v388, 2
      %v722 = vrot.slane %v391, 2
      %723 = vrot.lane.b32.xlu0 %v717, 69
      %v724 = vpop.permute.xlu0 %723
      %725 = vrot.lane.b32.xlu0 %v718, 69
      %v726 = vpop.permute.xlu0 %725
      %727 = vrot.lane.b32.xlu0 %v719, 69
      %v728 = vpop.permute.xlu0 %727
      %729 = vrot.lane.b32.xlu0 %v720, 69
      %v730 = vpop.permute.xlu0 %729
      %731 = vrot.lane.b32.xlu0 %v721, 69
      %v732 = vpop.permute.xlu0 %731
      %733 = vrot.lane.b32.xlu0 %v722, 69
      %v734 = vpop.permute.xlu0 %733
      %vm735 = vcmask 564224
      %v736 = vsel %vm735, %v724, %v726
      %v737 = vsel %vm735, %v726, %v728
      %v738 = vsel %vm735, %v728, %v730
      %v739 = vsel %vm735, %v730, %v732
      %v740 = vsel %vm735, %v732, %v734
      %v747 = vrot.slane %v368, 1
      %v748 = vrot.slane %v369, 1
      %v749 = vrot.slane %v370, 1
      %v750 = vrot.slane %v371, 1
      %v751 = vrot.slane %v372, 1
      %v752 = vrot.slane %v373, 1
      %753 = vrot.lane.b32.xlu0 %v747, 68
      %v754 = vpop.permute.xlu0 %753
      %755 = vrot.lane.b32.xlu0 %v748, 68
      %v756 = vpop.permute.xlu0 %755
      %757 = vrot.lane.b32.xlu0 %v749, 68
      %v758 = vpop.permute.xlu0 %757
      %759 = vrot.lane.b32.xlu0 %v750, 68
      %v760 = vpop.permute.xlu0 %759
      %761 = vrot.lane.b32.xlu0 %v751, 68
      %v762 = vpop.permute.xlu0 %761
      %763 = vrot.lane.b32.xlu0 %v752, 68
      %v764 = vpop.permute.xlu0 %763
      %vm765 = vcmask 556032
      %v766 = vsel %vm765, %v754, %v756
      %v767 = vsel %vm765, %v756, %v758
      %v768 = vsel %vm765, %v758, %v760
      %v769 = vsel %vm765, %v760, %v762
      %v770 = vsel %vm765, %v762, %v764
      %v771 = vrot.slane %v376, 1
      %v772 = vrot.slane %v379, 1
      %v773 = vrot.slane %v382, 1
      %v774 = vrot.slane %v385, 1
      %v775 = vrot.slane %v388, 1
      %v776 = vrot.slane %v391, 1
      %777 = vrot.lane.b32.xlu0 %v771, 44
      %v778 = vpop.permute.xlu0 %777
      %779 = vrot.lane.b32.xlu0 %v772, 44
      %v780 = vpop.permute.xlu0 %779
      %781 = vrot.lane.b32.xlu0 %v773, 44
      %v782 = vpop.permute.xlu0 %781
      %783 = vrot.lane.b32.xlu0 %v774, 44
      %v784 = vpop.permute.xlu0 %783
      %785 = vrot.lane.b32.xlu0 %v775, 44
      %v786 = vpop.permute.xlu0 %785
      %787 = vrot.lane.b32.xlu0 %v776, 44
      %v788 = vpop.permute.xlu0 %787
      %vm789 = vcmask 359424
      %v790 = vsel %vm789, %v778, %v780
      %v791 = vsel %vm789, %v780, %v782
      %v792 = vsel %vm789, %v782, %v784
      %v793 = vsel %vm789, %v784, %v786
      %v794 = vsel %vm789, %v786, %v788
      %vm801 = vcmask 1040384
      %vm802 = vsmask.f32 256
      %vm803 = vmand %vm801, %vm802
      %v804 = vsel %vm803, %v368, %v406
      %v805 = vsel %vm803, %v369, %v407
      %v806 = vsel %vm803, %v370, %v408
      %v807 = vsel %vm803, %v371, %v409
      %v808 = vsel %vm803, %v372, %v410
      %v809 = vsel %vm803, %v373, %v404
      %vm810 = vcmask 1040384
      %v813 = vsel %vm810, %v804, %v442
      %v817 = vsel %vm810, %v805, %v443
      %v821 = vsel %vm810, %v806, %v444
      %v825 = vsel %vm810, %v807, %v445
      %v829 = vsel %vm810, %v808, %v446
      %v833 = vsel %vm810, %v809, %v440
      %vm835 = vcmask 1041408
      %vm836 = vsmask.f32 1280
      %vm837 = vmand %vm835, %vm836
      %v838 = vsel %vm837, %v813, %v466
      %v839 = vsel %vm837, %v817, %v467
      %v840 = vsel %vm837, %v821, %v468
      %v841 = vsel %vm837, %v825, %v469
      %v842 = vsel %vm837, %v829, %v470
      %v843 = vsel %vm837, %v833, %v464
      %vm844 = vcmask 1041408
      %v847 = vsel %vm844, %v838, %v496
      %v851 = vsel %vm844, %v839, %v497
      %v855 = vsel %vm844, %v840, %v498
      %v859 = vsel %vm844, %v841, %v499
      %v863 = vsel %vm844, %v842, %v500
      %v867 = vsel %vm844, %v843, %v494
      %vm869 = vcmask 1042432
      %vm870 = vsmask.f32 2304
      %vm871 = vmand %vm869, %vm870
      %v872 = vsel %vm871, %v847, %v520
      %v873 = vsel %vm871, %v851, %v521
      %v874 = vsel %vm871, %v855, %v522
      %v875 = vsel %vm871, %v859, %v523
      %v876 = vsel %vm871, %v863, %v524
      %v877 = vsel %vm871, %v867, %v518
      %vm878 = vcmask 1042432
      %v881 = vsel %vm878, %v872, %v550
      %v885 = vsel %vm878, %v873, %v551
      %v889 = vsel %vm878, %v874, %v552
      %v893 = vsel %vm878, %v875, %v553
      %v897 = vsel %vm878, %v876, %v554
      %v901 = vsel %vm878, %v877, %v548
      %vm903 = vcmask 1043456
      %vm904 = vsmask.f32 3328
      %vm905 = vmand %vm903, %vm904
      %v906 = vsel %vm905, %v881, %v574
      %v907 = vsel %vm905, %v885, %v575
      %v908 = vsel %vm905, %v889, %v576
      %v909 = vsel %vm905, %v893, %v577
      %v910 = vsel %vm905, %v897, %v578
      %v911 = vsel %vm905, %v901, %v572
      %vm912 = vcmask 1043456
      %v915 = vsel %vm912, %v906, %v604
      %v919 = vsel %vm912, %v907, %v605
      %v923 = vsel %vm912, %v908, %v606
      %v927 = vsel %vm912, %v909, %v607
      %v931 = vsel %vm912, %v910, %v608
      %v935 = vsel %vm912, %v911, %v602
      %vm937 = vcmask 1044480
      %vm938 = vsmask.f32 4352
      %vm939 = vmand %vm937, %vm938
      %v940 = vsel %vm939, %v915, %v628
      %v941 = vsel %vm939, %v919, %v629
      %v942 = vsel %vm939, %v923, %v630
      %v943 = vsel %vm939, %v927, %v631
      %v944 = vsel %vm939, %v931, %v632
      %v945 = vsel %vm939, %v935, %v626
      %vm946 = vcmask 1044480
      %v949 = vsel %vm946, %v940, %v658
      %v953 = vsel %vm946, %v941, %v659
      %v957 = vsel %vm946, %v942, %v660
      %v961 = vsel %vm946, %v943, %v661
      %v965 = vsel %vm946, %v944, %v662
      %v969 = vsel %vm946, %v945, %v656
      %vm971 = vcmask 1045504
      %vm972 = vsmask.f32 5376
      %vm973 = vmand %vm971, %vm972
      %v974 = vsel %vm973, %v949, %v682
      %v975 = vsel %vm973, %v953, %v683
      %v976 = vsel %vm973, %v957, %v684
      %v977 = vsel %vm973, %v961, %v685
      %v978 = vsel %vm973, %v965, %v686
      %v979 = vsel %vm973, %v969, %v680
      %vm980 = vcmask 1045504
      %v983 = vsel %vm980, %v974, %v712
      %v987 = vsel %vm980, %v975, %v713
      %v991 = vsel %vm980, %v976, %v714
      %v995 = vsel %vm980, %v977, %v715
      %v999 = vsel %vm980, %v978, %v716
      %v1003 = vsel %vm980, %v979, %v710
      %vm1005 = vcmask 1046528
      %vm1006 = vsmask.f32 6400
      %vm1007 = vmand %vm1005, %vm1006
      %v1008 = vsel %vm1007, %v983, %v736
      %v1009 = vsel %vm1007, %v987, %v737
      %v1010 = vsel %vm1007, %v991, %v738
      %v1011 = vsel %vm1007, %v995, %v739
      %v1012 = vsel %vm1007, %v999, %v740
      %v1013 = vsel %vm1007, %v1003, %v734
      %vm1014 = vcmask 1046528
      %v1017 = vsel %vm1014, %v1008, %v766
      %v1021 = vsel %vm1014, %v1009, %v767
      %v1025 = vsel %vm1014, %v1010, %v768
      %v1029 = vsel %vm1014, %v1011, %v769
      %v1033 = vsel %vm1014, %v1012, %v770
      %v1037 = vsel %vm1014, %v1013, %v764
      %vm1039 = vcmask 1047552
      %vm1040 = vsmask.f32 7424
      %vm1041 = vmand %vm1039, %vm1040
      %v1042 = vsel %vm1041, %v1017, %v790
      %v1043 = vsel %vm1041, %v1021, %v791
      %v1044 = vsel %vm1041, %v1025, %v792
      %v1045 = vsel %vm1041, %v1029, %v793
      %v1046 = vsel %vm1041, %v1033, %v794
      %v1047 = vsel %vm1041, %v1037, %v788
      %v1049 = vrot.slane %v374, 6
      %1050 = vrot.lane.b32.xlu0 %v477, 101
      %v1051 = vpop.permute.xlu0 %1050
      %1052 = vrot.lane.b32.xlu0 %v478, 101
      %v1053 = vpop.permute.xlu0 %1052
      %1054 = vrot.lane.b32.xlu0 %v479, 101
      %v1055 = vpop.permute.xlu0 %1054
      %1056 = vrot.lane.b32.xlu0 %v480, 101
      %v1057 = vpop.permute.xlu0 %1056
      %1058 = vrot.lane.b32.xlu0 %v481, 101
      %v1059 = vpop.permute.xlu0 %1058
      %1060 = vrot.lane.b32.xlu0 %v482, 101
      %v1061 = vpop.permute.xlu0 %1060
      %1062 = vrot.lane.b32.xlu0 %v1049, 101
      %v1063 = vpop.permute.xlu0 %1062
      %vm1064 = vcmask 826368
      %v1065 = vsel %vm1064, %v1051, %v1053
      %v1066 = vsel %vm1064, %v1053, %v1055
      %v1067 = vsel %vm1064, %v1055, %v1057
      %v1068 = vsel %vm1064, %v1057, %v1059
      %v1069 = vsel %vm1064, %v1059, %v1061
      %v1070 = vsel %vm1064, %v1061, %v1063
      %v1072 = vshll.u32 %v374, 16
      %v1074 = vrot.slane %v1072, 6
      %1075 = vrot.lane.b32.xlu0 %v1074, 100
      %v1076 = vpop.permute.xlu0 %1075
      %v1077 = vsel %vm519, %v518, %v1076
      %v1079 = vrot.slane %v374, 5
      %1080 = vrot.lane.b32.xlu0 %v1079, 99
      %v1081 = vpop.permute.xlu0 %1080
      %v1082 = vsel %vm549, %v548, %v1081
      %v1083 = vrot.slane %v1072, 5
      %1084 = vrot.lane.b32.xlu0 %v1083, 98
      %v1085 = vpop.permute.xlu0 %1084
      %v1086 = vsel %vm573, %v572, %v1085
      %v1088 = vrot.slane %v374, 4
      %1089 = vrot.lane.b32.xlu0 %v1088, 97
      %v1090 = vpop.permute.xlu0 %1089
      %v1091 = vsel %vm603, %v602, %v1090
      %v1093 = vsel %vm844, %v838, %v1065
      %v1096 = vsel %vm844, %v839, %v1066
      %v1099 = vsel %vm844, %v840, %v1067
      %v1102 = vsel %vm844, %v841, %v1068
      %v1105 = vsel %vm844, %v842, %v1069
      %v1108 = vsel %vm844, %v843, %v1070
      %v1110 = vsel %vm871, %v1093, %v520
      %v1111 = vsel %vm871, %v1096, %v521
      %v1112 = vsel %vm871, %v1099, %v522
      %v1113 = vsel %vm871, %v1102, %v523
      %v1114 = vsel %vm871, %v1105, %v524
      %v1115 = vsel %vm871, %v1108, %v1077
      %v1117 = vsel %vm878, %v1110, %v550
      %v1120 = vsel %vm878, %v1111, %v551
      %v1123 = vsel %vm878, %v1112, %v552
      %v1126 = vsel %vm878, %v1113, %v553
      %v1129 = vsel %vm878, %v1114, %v554
      %v1133 = vsel %vm878, %v1115, %v1082
      %v1135 = vsel %vm905, %v1117, %v574
      %v1136 = vsel %vm905, %v1120, %v575
      %v1137 = vsel %vm905, %v1123, %v576
      %v1138 = vsel %vm905, %v1126, %v577
      %v1139 = vsel %vm905, %v1129, %v578
      %v1140 = vsel %vm905, %v1133, %v1086
      %v1142 = vsel %vm912, %v1135, %v604
      %v1144 = vsel %vm912, %v1136, %v605
      %v1146 = vsel %vm912, %v1137, %v606
      %v1148 = vsel %vm912, %v1138, %v607
      %v1150 = vsel %vm912, %v1139, %v608
      %v1153 = vsel %vm912, %v1140, %v1091
      %1160 = vrot.lane.b32.xlu0 %v1142, 43
      %v1161 = vpop.permute.xlu0 %1160
      %1162 = vrot.lane.b32.xlu0 %v1144, 43
      %v1163 = vpop.permute.xlu0 %1162
      %1164 = vrot.lane.b32.xlu0 %v1146, 43
      %v1165 = vpop.permute.xlu0 %1164
      %1166 = vrot.lane.b32.xlu0 %v1148, 43
      %v1167 = vpop.permute.xlu0 %1166
      %1168 = vrot.lane.b32.xlu0 %v1150, 43
      %v1169 = vpop.permute.xlu0 %1168
      %1170 = vrot.lane.b32.xlu0 %v1153, 43
      %v1171 = vpop.permute.xlu0 %1170
      %vm1172 = vcmask 351232
      %v1173 = vsel %vm1172, %v1161, %v1163
      %v1174 = vsel %vm1172, %v1163, %v1165
      %v1175 = vsel %vm1172, %v1165, %v1167
      %v1176 = vsel %vm1172, %v1167, %v1169
      %v1177 = vsel %vm1172, %v1169, %v1171
      %v1178 = vld [vmem:[%s1] sm:$0xf]
      %v1179 = vld [vmem:[%s1 + $0x4] sm:$0xf]
      %v1180 = vld [vmem:[%s1 + $0x8] sm:$0x3]
      %v1181 = vld [vmem:[%s2] sm:$0xff]
      %v1182 = vld [vmem:[%s2 + $0x8] sm:$0xff]
      %v1183 = vld [vmem:[%s2 + $0x10] sm:$0xf]
      %1185 = vset.pattern.permute.xlu0 0
      %1186 = vperm.xlu0 %1185, %v1181
      %v1187 = vpop.permute.xlu0 %1186
      %1190 = vset.pattern.permute.xlu0 0
      %1191 = vperm.xlu0 %1190, %v1182
      %v1192 = vpop.permute.xlu0 %1191
      %1195 = vset.pattern.permute.xlu0 0
      %1196 = vperm.xlu0 %1195, %v1183
      %v1197 = vpop.permute.xlu0 %1196
      %v1202 = vunpack.c.l.b16 %v1178
      %v1203 = vunpack.c.l.b16 %v1179
      %v1204 = vunpack.c.l.b16 %v1180
      %v1205 = vpack.c.b16 %v1203, %v1202
      %v1206 = vpack.c.b16 %v1204, %v1204
      %vm1207 = vcmask 203776
      %v1209 = vsel %vm1207, %v1205, 0
      %v1212 = vsel %vm1207, %v1206, 0
      %v1214 = vsel %vm912, 4294967295, 65535
      %v1215 = vsel %vm946, %v1214, 0
      %v1217 = vand.u32 %v1173, %v1215
      %v1220 = vand.u32 %v1174, %v1215
      %v1223 = vand.u32 %v1175, %v1215
      %v1226 = vand.u32 %v1176, %v1215
      %v1229 = vand.u32 %v1177, %v1215
      %v1232 = vand.u32 %v1171, %v1215
      %1234 = vmatprep.subr.bf16.mxu0 %v1043
      %1235 = vmatpush1.bf16.msra.mxu0 %v1042
      %1236 = vmatprep.subr.bf16.mxu0 %v1220
      %1237 = vmatpush1.bf16.msra.mxu0 %v1217
      %1238 = vmatprep.subr.bf16.mxu0 0
      %1239 = vmatpush1.bf16.msra.mxu0 0
      %1240 = vmatprep.subr.bf16.mxu0 0
      %1241 = vmatpush1.bf16.msra.mxu0 0
      %1242 = vmatprep.subr.bf16.mxu0 0
      %1243 = vmatpush1.bf16.msra.mxu0 0
      %1244 = vmatprep.subr.bf16.mxu0 0
      %1245 = vmatpush1.bf16.msra.mxu0 0
      %1246 = vmatprep.subr.bf16.mxu0 0
      %1247 = vmatpush1.bf16.msra.mxu0 0
      %1248 = vmatprep.subr.bf16.mxu0 0
      %1249 = vmatpush1.bf16.msra.mxu0 0
      %1250 = vmatprep.subr.bf16.mxu0 0
      %1251 = vmatpush1.bf16.msra.mxu0 0
      %1252 = vmatprep.subr.bf16.mxu0 0
      %1253 = vmatpush1.bf16.msra.mxu0 0
      %1254 = vmatprep.subr.bf16.mxu0 0
      %1255 = vmatpush1.bf16.msra.mxu0 0
      %1256 = vmatprep.subr.bf16.mxu0 0
      %1257 = vmatpush1.bf16.msra.mxu0 0
      %1258 = vmatprep.subr.bf16.mxu0 0
      %1259 = vmatpush1.bf16.msra.mxu0 0
      %1260 = vmatprep.subr.bf16.mxu0 0
      %1261 = vmatpush1.bf16.msra.mxu0 0
      %1262 = vmatprep.subr.bf16.mxu0 0
      %1263 = vmatpush1.bf16.msra.mxu0 0
      %1264 = vmatprep.subr.bf16.mxu0 0
      %1265 = vmatpush1.bf16.msra.mxu0 0
      %1266 = vmatprep.mubr.bf16.mxu0 0
      %1267 = vmatmul.mubr.bf16.gmra.mrb[0].mxu0 %v1209
      %v1268 = vpop.f32.mrb[0].mxu0
      %v1269 = vadd.f32 %v1187, %v1268
      %v1270 = vpop.f32.mrb[0].mxu0
      %v1271 = vadd.f32 %v1187, %v1270
      %v1272 = vpop.f32.mrb[0].mxu0
      %v1273 = vadd.f32 %v1192, %v1272
      %v1274 = vpop.f32.mrb[0].mxu0
      %v1275 = vadd.f32 %v1192, %v1274
      %1276 = vmatprep.mubr.bf16.mxu0 0
      %1277 = vmatmul.mubr.bf16.gmra.mrb[0].mxu0 %v1212
      %v1278 = vpop.f32.mrb[0].mxu0
      %v1279 = vadd.f32 %v1197, %v1278
      %v1280 = vpop.f32.mrb[0].mxu0
      %v1281 = vadd.f32 %v1197, %v1280
      %v1282 = vpop.f32.mrb[0].mxu0
      %v1283 = vpop.f32.mrb[0].mxu0
      %1284 = vdwg.mxu0
      %1285 = vmatprep.subr.bf16.mxu0 %v1045
      %1286 = vmatpush1.bf16.msra.mxu0 %v1044
      %1287 = vmatprep.subr.bf16.mxu0 %v1226
      %1288 = vmatpush1.bf16.msra.mxu0 %v1223
      %1289 = vmatprep.subr.bf16.mxu0 0
      %1290 = vmatpush1.bf16.msra.mxu0 0
      %1291 = vmatprep.subr.bf16.mxu0 0
      %1292 = vmatpush1.bf16.msra.mxu0 0
      %1293 = vmatprep.subr.bf16.mxu0 0
      %1294 = vmatpush1.bf16.msra.mxu0 0
      %1295 = vmatprep.subr.bf16.mxu0 0
      %1296 = vmatpush1.bf16.msra.mxu0 0
      %1297 = vmatprep.subr.bf16.mxu0 0
      %1298 = vmatpush1.bf16.msra.mxu0 0
      %1299 = vmatprep.subr.bf16.mxu0 0
      %1300 = vmatpush1.bf16.msra.mxu0 0
      %1301 = vmatprep.subr.bf16.mxu0 0
      %1302 = vmatpush1.bf16.msra.mxu0 0
      %1303 = vmatprep.subr.bf16.mxu0 0
      %1304 = vmatpush1.bf16.msra.mxu0 0
      %1305 = vmatprep.subr.bf16.mxu0 0
      %1306 = vmatpush1.bf16.msra.mxu0 0
      %1307 = vmatprep.subr.bf16.mxu0 0
      %1308 = vmatpush1.bf16.msra.mxu0 0
      %1309 = vmatprep.subr.bf16.mxu0 0
      %1310 = vmatpush1.bf16.msra.mxu0 0
      %1311 = vmatprep.subr.bf16.mxu0 0
      %1312 = vmatpush1.bf16.msra.mxu0 0
      %1313 = vmatprep.subr.bf16.mxu0 0
      %1314 = vmatpush1.bf16.msra.mxu0 0
      %1315 = vmatprep.subr.bf16.mxu0 0
      %1316 = vmatpush1.bf16.msra.mxu0 0
      %1317 = vmatprep.mubr.bf16.mxu0 0
      %1318 = vmatmul.mubr.bf16.gmra.mrb[0].mxu0 %v1209
      %v1319 = vpop.f32.mrb[0].mxu0
      %v1320 = vadd.f32 %v1187, %v1319
      %v1321 = vpop.f32.mrb[0].mxu0
      %v1322 = vadd.f32 %v1187, %v1321
      %v1323 = vpop.f32.mrb[0].mxu0
      %v1324 = vadd.f32 %v1192, %v1323
      %v1325 = vpop.f32.mrb[0].mxu0
      %v1326 = vadd.f32 %v1192, %v1325
      %1327 = vmatprep.mubr.bf16.mxu0 0
      %1328 = vmatmul.mubr.bf16.gmra.mrb[0].mxu0 %v1212
      %v1329 = vpop.f32.mrb[0].mxu0
      %v1330 = vadd.f32 %v1197, %v1329
      %v1331 = vpop.f32.mrb[0].mxu0
      %v1332 = vadd.f32 %v1197, %v1331
      %v1333 = vpop.f32.mrb[0].mxu0
      %v1334 = vpop.f32.mrb[0].mxu0
      %1335 = vdwg.mxu0
      %1336 = vmatprep.subr.bf16.mxu0 %v1047
      %1337 = vmatpush1.bf16.msra.mxu0 %v1046
      %1338 = vmatprep.subr.bf16.mxu0 %v1232
      %1339 = vmatpush1.bf16.msra.mxu0 %v1229
      %1340 = vmatprep.subr.bf16.mxu0 0
      %1341 = vmatpush1.bf16.msra.mxu0 0
      %1342 = vmatprep.subr.bf16.mxu0 0
      %1343 = vmatpush1.bf16.msra.mxu0 0
      %1344 = vmatprep.subr.bf16.mxu0 0
      %1345 = vmatpush1.bf16.msra.mxu0 0
      %1346 = vmatprep.subr.bf16.mxu0 0
      %1347 = vmatpush1.bf16.msra.mxu0 0
      %1348 = vmatprep.subr.bf16.mxu0 0
      %1349 = vmatpush1.bf16.msra.mxu0 0
      %1350 = vmatprep.subr.bf16.mxu0 0
      %1351 = vmatpush1.bf16.msra.mxu0 0
      %1352 = vmatprep.subr.bf16.mxu0 0
      %1353 = vmatpush1.bf16.msra.mxu0 0
      %1354 = vmatprep.subr.bf16.mxu0 0
      %1355 = vmatpush1.bf16.msra.mxu0 0
      %1356 = vmatprep.subr.bf16.mxu0 0
      %1357 = vmatpush1.bf16.msra.mxu0 0
      %1358 = vmatprep.subr.bf16.mxu0 0
      %1359 = vmatpush1.bf16.msra.mxu0 0
      %1360 = vmatprep.subr.bf16.mxu0 0
      %1361 = vmatpush1.bf16.msra.mxu0 0
      %1362 = vmatprep.subr.bf16.mxu0 0
      %1363 = vmatpush1.bf16.msra.mxu0 0
      %1364 = vmatprep.subr.bf16.mxu0 0
      %1365 = vmatpush1.bf16.msra.mxu0 0
      %1366 = vmatprep.subr.bf16.mxu0 0
      %1367 = vmatpush1.bf16.msra.mxu0 0
      %1368 = vmatprep.mubr.bf16.mxu0 0
      %1369 = vmatmul.mubr.bf16.gmra.mrb[0].mxu0 %v1209
      %v1370 = vpop.f32.mrb[0].mxu0
      %v1371 = vadd.f32 %v1187, %v1370
      %v1372 = vpop.f32.mrb[0].mxu0
      %v1373 = vadd.f32 %v1187, %v1372
      %v1374 = vpop.f32.mrb[0].mxu0
      %v1375 = vadd.f32 %v1192, %v1374
      %v1376 = vpop.f32.mrb[0].mxu0
      %v1377 = vadd.f32 %v1192, %v1376
      %1378 = vmatprep.mubr.bf16.mxu0 0
      %1379 = vmatmul.mubr.bf16.gmra.mrb[0].mxu0 %v1212
      %v1380 = vpop.f32.mrb[0].mxu0
      %v1381 = vadd.f32 %v1197, %v1380
      %v1382 = vpop.f32.mrb[0].mxu0
      %v1383 = vadd.f32 %v1197, %v1382
      %v1384 = vpop.f32.mrb[0].mxu0
      %v1385 = vpop.f32.mrb[0].mxu0
      %1386 = vdwg.mxu0
      %v1387 = vlaneseq
      %v1388 = vshrl.u32 %v1387, 7
      %v1389 = vadd.s32 %v1388, 8
      %v1390 = vadd.s32 %v1388, 16
      %v1391 = vlaneseq
      %v1392 = vand.u32 %v1391, 127
      %v1393 = vmul.u32 %v1392, 2
      %vm1394 = vcmp.eq.s32.totalorder %v1388, %v1393
      %vm1395 = vcmp.eq.s32.totalorder %v1389, %v1393
      %vm1396 = vcmp.eq.s32.totalorder %v1390, %v1393
      %v1397 = vsel %vm1394, 1.0, 0.0
      %v1398 = vsel %vm1395, 1.0, 0.0
      %v1399 = vsel %vm1396, 1.0, 0.0
      %v1400 = vadd.s32 %v1393, 1
      %vm1401 = vcmp.eq.s32.totalorder %v1388, %v1400
      %vm1402 = vcmp.eq.s32.totalorder %v1389, %v1400
      %vm1403 = vcmp.eq.s32.totalorder %v1390, %v1400
      %v1404 = vsel %vm1401, 1.0, 0.0
      %v1405 = vsel %vm1402, 1.0, 0.0
      %v1406 = vsel %vm1403, 1.0, 0.0
      %1410 = vrot.lane.b32.xlu0 %v1269, 100
      %v1411 = vpop.permute.xlu0 %1410
      %1412 = vrot.lane.b32.xlu0 %v1273, 100
      %v1413 = vpop.permute.xlu0 %1412
      %1414 = vrot.lane.b32.xlu0 %v1279, 100
      %v1415 = vpop.permute.xlu0 %1414
      %v1419 = vmax.f32 %v1269, %v1411
      %v1420 = vmax.f32 %v1273, %v1413
      %v1421 = vmax.f32 %v1279, %v1415
      %vm1422 = vcmask 195584
      %v1424 = vsel %vm1422, %v1419, 0
      %v1427 = vsel %vm1422, %v1420, 0
      %v1430 = vsel %vm1422, %v1421, 0
      %1432 = vmatprep.subr.mxu0 0.0
      %1433 = vmatpush1.msra.mxu0 %v1397
      %1434 = vmatprep.subr.mxu0 0.0
      %1435 = vmatpush1.msra.mxu0 %v1398
      %1436 = vmatprep.subr.mxu0 0.0
      %1437 = vmatpush1.msra.mxu0 %v1399
      %1438 = vmatprep.subr.mxu0 0.0
      %1439 = vmatpush1.msra.mxu0 0.0
      %1440 = vmatprep.subr.mxu0 0.0
      %1441 = vmatpush1.msra.mxu0 0.0
      %1442 = vmatprep.subr.mxu0 0.0
      %1443 = vmatpush1.msra.mxu0 0.0
      %1444 = vmatprep.subr.mxu0 0.0
      %1445 = vmatpush1.msra.mxu0 0.0
      %1446 = vmatprep.subr.mxu0 0.0
      %1447 = vmatpush1.msra.mxu0 0.0
      %1448 = vmatprep.subr.mxu0 0.0
      %1449 = vmatpush1.msra.mxu0 0.0
      %1450 = vmatprep.subr.mxu0 0.0
      %1451 = vmatpush1.msra.mxu0 0.0
      %1452 = vmatprep.subr.mxu0 0.0
      %1453 = vmatpush1.msra.mxu0 0.0
      %1454 = vmatprep.subr.mxu0 0.0
      %1455 = vmatpush1.msra.mxu0 0.0
      %1456 = vmatprep.subr.mxu0 0.0
      %1457 = vmatpush1.msra.mxu0 0.0
      %1458 = vmatprep.subr.mxu0 0.0
      %1459 = vmatpush1.msra.mxu0 0.0
      %1460 = vmatprep.subr.mxu0 0.0
      %1461 = vmatpush1.msra.mxu0 0.0
      %1462 = vmatprep.subr.mxu0 0.0
      %1463 = vmatpush1.msra.mxu0 0.0
      %1464 = vmatprep.subr.mxu0 0.0
      %1465 = vmatpush1.msra.mxu0 0.0
      %1466 = vmatprep.subr.mxu0 0.0
      %1467 = vmatpush1.msra.mxu0 0.0
      %1468 = vmatprep.subr.mxu0 0.0
      %1469 = vmatpush1.msra.mxu0 0.0
      %1470 = vmatprep.subr.mxu0 0.0
      %1471 = vmatpush1.msra.mxu0 0.0
      %1472 = vmatprep.subr.mxu0 0.0
      %1473 = vmatpush1.msra.mxu0 0.0
      %1474 = vmatprep.subr.mxu0 0.0
      %1475 = vmatpush1.msra.mxu0 0.0
      %1476 = vmatprep.subr.mxu0 0.0
      %1477 = vmatpush1.msra.mxu0 0.0
      %1478 = vmatprep.subr.mxu0 0.0
      %1479 = vmatpush1.msra.mxu0 0.0
      %1480 = vmatprep.subr.mxu0 0.0
      %1481 = vmatpush1.msra.mxu0 0.0
      %1482 = vmatprep.subr.mxu0 0.0
      %1483 = vmatpush1.msra.mxu0 0.0
      %1484 = vmatprep.subr.mxu0 0.0
      %1485 = vmatpush1.msra.mxu0 0.0
      %1486 = vmatprep.subr.mxu0 0.0
      %1487 = vmatpush1.msra.mxu0 0.0
      %1488 = vmatprep.subr.mxu0 0.0
      %1489 = vmatpush1.msra.mxu0 0.0
      %1490 = vmatprep.subr.mxu0 0.0
      %1491 = vmatpush1.msra.mxu0 0.0
      %1492 = vmatprep.subr.mxu0 0.0
      %1493 = vmatpush1.msra.mxu0 0.0
      %1494 = vmatprep.subr.mxu0 0.0
      %1495 = vmatpush1.msra.mxu0 0.0
      %1496 = vmatprep.mubr.f32.mxu0 0.0
      %1497 = vmatmul.mubr.f32.gmra.mrb[0].mxu0 %v1424
      %v1498 = vpop.f32.mrb[0].mxu0
      %v1499 = vadd.f32 0.0, %v1498
      %v1500 = vpop.f32.mrb[0].mxu0
      %1501 = vmatprep.mubr.f32.mxu0 0.0
      %1502 = vmatmul.mubr.f32.gmra.mrb[0].mxu0 %v1427
      %v1503 = vpop.f32.mrb[0].mxu0
      %v1504 = vadd.f32 0.0, %v1503
      %v1505 = vpop.f32.mrb[0].mxu0
      %1506 = vmatprep.mubr.f32.mxu0 0.0
      %1507 = vmatmul.mubr.f32.gmra.mrb[0].mxu0 %v1430
      %v1508 = vpop.f32.mrb[0].mxu0
      %v1509 = vadd.f32 0.0, %v1508
      %v1510 = vpop.f32.mrb[0].mxu0
      %1511 = vdwg.mxu0
      %1512 = vmatprep.subr.mxu0 0.0
      %1513 = vmatpush1.msra.mxu0 %v1404
      %1514 = vmatprep.subr.mxu0 0.0
      %1515 = vmatpush1.msra.mxu0 %v1405
      %1516 = vmatprep.subr.mxu0 0.0
      %1517 = vmatpush1.msra.mxu0 %v1406
      %1518 = vmatprep.subr.mxu0 0.0
      %1519 = vmatpush1.msra.mxu0 0.0
      %1520 = vmatprep.subr.mxu0 0.0
      %1521 = vmatpush1.msra.mxu0 0.0
      %1522 = vmatprep.subr.mxu0 0.0
      %1523 = vmatpush1.msra.mxu0 0.0
      %1524 = vmatprep.subr.mxu0 0.0
      %1525 = vmatpush1.msra.mxu0 0.0
      %1526 = vmatprep.subr.mxu0 0.0
      %1527 = vmatpush1.msra.mxu0 0.0
      %1528 = vmatprep.subr.mxu0 0.0
      %1529 = vmatpush1.msra.mxu0 0.0
      %1530 = vmatprep.subr.mxu0 0.0
      %1531 = vmatpush1.msra.mxu0 0.0
      %1532 = vmatprep.subr.mxu0 0.0
      %1533 = vmatpush1.msra.mxu0 0.0
      %1534 = vmatprep.subr.mxu0 0.0
      %1535 = vmatpush1.msra.mxu0 0.0
      %1536 = vmatprep.subr.mxu0 0.0
      %1537 = vmatpush1.msra.mxu0 0.0
      %1538 = vmatprep.subr.mxu0 0.0
      %1539 = vmatpush1.msra.mxu0 0.0
      %1540 = vmatprep.subr.mxu0 0.0
      %1541 = vmatpush1.msra.mxu0 0.0
      %1542 = vmatprep.subr.mxu0 0.0
      %1543 = vmatpush1.msra.mxu0 0.0
      %1544 = vmatprep.subr.mxu0 0.0
      %1545 = vmatpush1.msra.mxu0 0.0
      %1546 = vmatprep.subr.mxu0 0.0
      %1547 = vmatpush1.msra.mxu0 0.0
      %1548 = vmatprep.subr.mxu0 0.0
      %1549 = vmatpush1.msra.mxu0 0.0
      %1550 = vmatprep.subr.mxu0 0.0
      %1551 = vmatpush1.msra.mxu0 0.0
      %1552 = vmatprep.subr.mxu0 0.0
      %1553 = vmatpush1.msra.mxu0 0.0
      %1554 = vmatprep.subr.mxu0 0.0
      %1555 = vmatpush1.msra.mxu0 0.0
      %1556 = vmatprep.subr.mxu0 0.0
      %1557 = vmatpush1.msra.mxu0 0.0
      %1558 = vmatprep.subr.mxu0 0.0
      %1559 = vmatpush1.msra.mxu0 0.0
      %1560 = vmatprep.subr.mxu0 0.0
      %1561 = vmatpush1.msra.mxu0 0.0
      %1562 = vmatprep.subr.mxu0 0.0
      %1563 = vmatpush1.msra.mxu0 0.0
      %1564 = vmatprep.subr.mxu0 0.0
      %1565 = vmatpush1.msra.mxu0 0.0
      %1566 = vmatprep.subr.mxu0 0.0
      %1567 = vmatpush1.msra.mxu0 0.0
      %1568 = vmatprep.subr.mxu0 0.0
      %1569 = vmatpush1.msra.mxu0 0.0
      %1570 = vmatprep.subr.mxu0 0.0
      %1571 = vmatpush1.msra.mxu0 0.0
      %1572 = vmatprep.subr.mxu0 0.0
      %1573 = vmatpush1.msra.mxu0 0.0
      %1574 = vmatprep.subr.mxu0 0.0
      %1575 = vmatpush1.msra.mxu0 0.0
      %1576 = vmatprep.mubr.f32.mxu0 0.0
      %1577 = vmatmul.mubr.f32.gmra.mrb[0].mxu0 %v1424
      %v1578 = vpop.f32.mrb[0].mxu0
      %v1579 = vadd.f32 0.0, %v1578
      %v1580 = vpop.f32.mrb[0].mxu0
      %1581 = vmatprep.mubr.f32.mxu0 0.0
      %1582 = vmatmul.mubr.f32.gmra.mrb[0].mxu0 %v1427
      %v1583 = vpop.f32.mrb[0].mxu0
      %v1584 = vadd.f32 0.0, %v1583
      %v1585 = vpop.f32.mrb[0].mxu0
      %1586 = vmatprep.mubr.f32.mxu0 0.0
      %1587 = vmatmul.mubr.f32.gmra.mrb[0].mxu0 %v1430
      %v1588 = vpop.f32.mrb[0].mxu0
      %v1589 = vadd.f32 0.0, %v1588
      %v1590 = vpop.f32.mrb[0].mxu0
      %1591 = vdwg.mxu0
      %v1592 = vmax.f32 %v1499, %v1579
      %v1593 = vmax.f32 %v1504, %v1584
      %v1594 = vmax.f32 %v1509, %v1589
      %v1595 = vmax.f32 %v1592, 0.0
      %v1596 = vmax.f32 %v1593, 0.0
      %v1597 = vmax.f32 %v1594, 0.0
      %1598 = vrot.lane.b32.xlu0 %v1419, 72
      %v1599 = vpop.permute.xlu0 %1598
      %1600 = vrot.lane.b32.xlu0 %v1420, 72
      %v1601 = vpop.permute.xlu0 %1600
      %1602 = vrot.lane.b32.xlu0 %v1421, 72
      %v1603 = vpop.permute.xlu0 %1602
      %v1604 = vsel %vm1422, %v1599, 0
      %v1606 = vsel %vm1422, %v1601, 0
      %v1608 = vsel %vm1422, %v1603, 0
      %1610 = vmatprep.subr.mxu0 0.0
      %1611 = vmatpush1.msra.mxu0 %v1397
      %1612 = vmatprep.subr.mxu0 0.0
      %1613 = vmatpush1.msra.mxu0 %v1398
      %1614 = vmatprep.subr.mxu0 0.0
      %1615 = vmatpush1.msra.mxu0 %v1399
      %1616 = vmatprep.subr.mxu0 0.0
      %1617 = vmatpush1.msra.mxu0 0.0
      %1618 = vmatprep.subr.mxu0 0.0
      %1619 = vmatpush1.msra.mxu0 0.0
      %1620 = vmatprep.subr.mxu0 0.0
      %1621 = vmatpush1.msra.mxu0 0.0
      %1622 = vmatprep.subr.mxu0 0.0
      %1623 = vmatpush1.msra.mxu0 0.0
      %1624 = vmatprep.subr.mxu0 0.0
      %1625 = vmatpush1.msra.mxu0 0.0
      %1626 = vmatprep.subr.mxu0 0.0
      %1627 = vmatpush1.msra.mxu0 0.0
      %1628 = vmatprep.subr.mxu0 0.0
      %1629 = vmatpush1.msra.mxu0 0.0
      %1630 = vmatprep.subr.mxu0 0.0
      %1631 = vmatpush1.msra.mxu0 0.0
      %1632 = vmatprep.subr.mxu0 0.0
      %1633 = vmatpush1.msra.mxu0 0.0
      %1634 = vmatprep.subr.mxu0 0.0
      %1635 = vmatpush1.msra.mxu0 0.0
      %1636 = vmatprep.subr.mxu0 0.0
      %1637 = vmatpush1.msra.mxu0 0.0
      %1638 = vmatprep.subr.mxu0 0.0
      %1639 = vmatpush1.msra.mxu0 0.0
      %1640 = vmatprep.subr.mxu0 0.0
      %1641 = vmatpush1.msra.mxu0 0.0
      %1642 = vmatprep.subr.mxu0 0.0
      %1643 = vmatpush1.msra.mxu0 0.0
      %1644 = vmatprep.subr.mxu0 0.0
      %1645 = vmatpush1.msra.mxu0 0.0
      %1646 = vmatprep.subr.mxu0 0.0
      %1647 = vmatpush1.msra.mxu0 0.0
      %1648 = vmatprep.subr.mxu0 0.0
      %1649 = vmatpush1.msra.mxu0 0.0
      %1650 = vmatprep.subr.mxu0 0.0
      %1651 = vmatpush1.msra.mxu0 0.0
      %1652 = vmatprep.subr.mxu0 0.0
      %1653 = vmatpush1.msra.mxu0 0.0
      %1654 = vmatprep.subr.mxu0 0.0
      %1655 = vmatpush1.msra.mxu0 0.0
      %1656 = vmatprep.subr.mxu0 0.0
      %1657 = vmatpush1.msra.mxu0 0.0
      %1658 = vmatprep.subr.mxu0 0.0
      %1659 = vmatpush1.msra.mxu0 0.0
      %1660 = vmatprep.subr.mxu0 0.0
      %1661 = vmatpush1.msra.mxu0 0.0
      %1662 = vmatprep.subr.mxu0 0.0
      %1663 = vmatpush1.msra.mxu0 0.0
      %1664 = vmatprep.subr.mxu0 0.0
      %1665 = vmatpush1.msra.mxu0 0.0
      %1666 = vmatprep.subr.mxu0 0.0
      %1667 = vmatpush1.msra.mxu0 0.0
      %1668 = vmatprep.subr.mxu0 0.0
      %1669 = vmatpush1.msra.mxu0 0.0
      %1670 = vmatprep.subr.mxu0 0.0
      %1671 = vmatpush1.msra.mxu0 0.0
      %1672 = vmatprep.subr.mxu0 0.0
      %1673 = vmatpush1.msra.mxu0 0.0
      %1674 = vmatprep.mubr.f32.mxu0 0.0
      %1675 = vmatmul.mubr.f32.gmra.mrb[0].mxu0 %v1604
      %v1676 = vpop.f32.mrb[0].mxu0
      %v1677 = vadd.f32 0.0, %v1676
      %v1678 = vpop.f32.mrb[0].mxu0
      %1679 = vmatprep.mubr.f32.mxu0 0.0
      %1680 = vmatmul.mubr.f32.gmra.mrb[0].mxu0 %v1606
      %v1681 = vpop.f32.mrb[0].mxu0
      %v1682 = vadd.f32 0.0, %v1681
      %v1683 = vpop.f32.mrb[0].mxu0
      %1684 = vmatprep.mubr.f32.mxu0 0.0
      %1685 = vmatmul.mubr.f32.gmra.mrb[0].mxu0 %v1608
      %v1686 = vpop.f32.mrb[0].mxu0
      %v1687 = vadd.f32 0.0, %v1686
      %v1688 = vpop.f32.mrb[0].mxu0
      %1689 = vdwg.mxu0
      %1690 = vmatprep.subr.mxu0 0.0
      %1691 = vmatpush1.msra.mxu0 %v1404
      %1692 = vmatprep.subr.mxu0 0.0
      %1693 = vmatpush1.msra.mxu0 %v1405
      %1694 = vmatprep.subr.mxu0 0.0
      %1695 = vmatpush1.msra.mxu0 %v1406
      %1696 = vmatprep.subr.mxu0 0.0
      %1697 = vmatpush1.msra.mxu0 0.0
      %1698 = vmatprep.subr.mxu0 0.0
      %1699 = vmatpush1.msra.mxu0 0.0
      %1700 = vmatprep.subr.mxu0 0.0
      %1701 = vmatpush1.msra.mxu0 0.0
      %1702 = vmatprep.subr.mxu0 0.0
      %1703 = vmatpush1.msra.mxu0 0.0
      %1704 = vmatprep.subr.mxu0 0.0
      %1705 = vmatpush1.msra.mxu0 0.0
      %1706 = vmatprep.subr.mxu0 0.0
      %1707 = vmatpush1.msra.mxu0 0.0
      %1708 = vmatprep.subr.mxu0 0.0
      %1709 = vmatpush1.msra.mxu0 0.0
      %1710 = vmatprep.subr.mxu0 0.0
      %1711 = vmatpush1.msra.mxu0 0.0
      %1712 = vmatprep.subr.mxu0 0.0
      %1713 = vmatpush1.msra.mxu0 0.0
      %1714 = vmatprep.subr.mxu0 0.0
      %1715 = vmatpush1.msra.mxu0 0.0
      %1716 = vmatprep.subr.mxu0 0.0
      %1717 = vmatpush1.msra.mxu0 0.0
      %1718 = vmatprep.subr.mxu0 0.0
      %1719 = vmatpush1.msra.mxu0 0.0
      %1720 = vmatprep.subr.mxu0 0.0
      %1721 = vmatpush1.msra.mxu0 0.0
      %1722 = vmatprep.subr.mxu0 0.0
      %1723 = vmatpush1.msra.mxu0 0.0
      %1724 = vmatprep.subr.mxu0 0.0
      %1725 = vmatpush1.msra.mxu0 0.0
      %1726 = vmatprep.subr.mxu0 0.0
      %1727 = vmatpush1.msra.mxu0 0.0
      %1728 = vmatprep.subr.mxu0 0.0
      %1729 = vmatpush1.msra.mxu0 0.0
      %1730 = vmatprep.subr.mxu0 0.0
      %1731 = vmatpush1.msra.mxu0 0.0
      %1732 = vmatprep.subr.mxu0 0.0
      %1733 = vmatpush1.msra.mxu0 0.0
      %1734 = vmatprep.subr.mxu0 0.0
      %1735 = vmatpush1.msra.mxu0 0.0
      %1736 = vmatprep.subr.mxu0 0.0
      %1737 = vmatpush1.msra.mxu0 0.0
      %1738 = vmatprep.subr.mxu0 0.0
      %1739 = vmatpush1.msra.mxu0 0.0
      %1740 = vmatprep.subr.mxu0 0.0
      %1741 = vmatpush1.msra.mxu0 0.0
      %1742 = vmatprep.subr.mxu0 0.0
      %1743 = vmatpush1.msra.mxu0 0.0
      %1744 = vmatprep.subr.mxu0 0.0
      %1745 = vmatpush1.msra.mxu0 0.0
      %1746 = vmatprep.subr.mxu0 0.0
      %1747 = vmatpush1.msra.mxu0 0.0
      %1748 = vmatprep.subr.mxu0 0.0
      %1749 = vmatpush1.msra.mxu0 0.0
      %1750 = vmatprep.subr.mxu0 0.0
      %1751 = vmatpush1.msra.mxu0 0.0
      %1752 = vmatprep.subr.mxu0 0.0
      %1753 = vmatpush1.msra.mxu0 0.0
      %1754 = vmatprep.mubr.f32.mxu0 0.0
      %1755 = vmatmul.mubr.f32.gmra.mrb[0].mxu0 %v1604
      %v1756 = vpop.f32.mrb[0].mxu0
      %v1757 = vadd.f32 0.0, %v1756
      %v1758 = vpop.f32.mrb[0].mxu0
      %1759 = vmatprep.mubr.f32.mxu0 0.0
      %1760 = vmatmul.mubr.f32.gmra.mrb[0].mxu0 %v1606
      %v1761 = vpop.f32.mrb[0].mxu0
      %v1762 = vadd.f32 0.0, %v1761
      %v1763 = vpop.f32.mrb[0].mxu0
      %1764 = vmatprep.mubr.f32.mxu0 0.0
      %1765 = vmatmul.mubr.f32.gmra.mrb[0].mxu0 %v1608
      %v1766 = vpop.f32.mrb[0].mxu0
      %v1767 = vadd.f32 0.0, %v1766
      %v1768 = vpop.f32.mrb[0].mxu0
      %1769 = vdwg.mxu0
      %v1770 = vmax.f32 %v1677, %v1757
      %v1771 = vmax.f32 %v1682, %v1762
      %v1772 = vmax.f32 %v1687, %v1767
      %v1773 = vmax.f32 %v1770, 0.0
      %v1774 = vmax.f32 %v1771, 0.0
      %v1775 = vmax.f32 %v1772, 0.0
      %1779 = vrot.lane.b32.xlu0 %v1271, 100
      %v1780 = vpop.permute.xlu0 %1779
      %1781 = vrot.lane.b32.xlu0 %v1275, 100
      %v1782 = vpop.permute.xlu0 %1781
      %1783 = vrot.lane.b32.xlu0 %v1281, 100
      %v1784 = vpop.permute.xlu0 %1783
      %v1788 = vmax.f32 %v1269, %v1780
      %v1789 = vmax.f32 %v1271, %v1780
      %v1790 = vmax.f32 %v1273, %v1782
      %v1791 = vmax.f32 %v1275, %v1782
      %v1792 = vmax.f32 %v1279, %v1784
      %v1793 = vmax.f32 %v1281, %v1784
      %1800 = vrot.lane.b32.xlu0 %v1788, 16
      %v1801 = vpop.permute.xlu0 %1800
      %1802 = vrot.lane.b32.xlu0 %v1789, 16
      %v1803 = vpop.permute.xlu0 %1802
      %1804 = vrot.lane.b32.xlu0 %v1790, 16
      %v1805 = vpop.permute.xlu0 %1804
      %1806 = vrot.lane.b32.xlu0 %v1791, 16
      %v1807 = vpop.permute.xlu0 %1806
      %1808 = vrot.lane.b32.xlu0 %v1792, 16
      %v1809 = vpop.permute.xlu0 %1808
      %1810 = vrot.lane.b32.xlu0 %v1793, 16
      %v1811 = vpop.permute.xlu0 %1810
      %vm1812 = vcmask 130048
      %v1813 = vsel %vm1812, %v1801, %v1803
      %v1814 = vsel %vm1812, %v1805, %v1807
      %v1815 = vsel %vm1812, %v1809, %v1811
      %v1816 = vsel %vm1422, %v1813, 0
      %v1818 = vsel %vm1422, %v1814, 0
      %v1820 = vsel %vm1422, %v1815, 0
      %1822 = vmatprep.subr.mxu0 0.0
      %1823 = vmatpush1.msra.mxu0 %v1397
      %1824 = vmatprep.subr.mxu0 0.0
      %1825 = vmatpush1.msra.mxu0 %v1398
      %1826 = vmatprep.subr.mxu0 0.0
      %1827 = vmatpush1.msra.mxu0 %v1399
      %1828 = vmatprep.subr.mxu0 0.0
      %1829 = vmatpush1.msra.mxu0 0.0
      %1830 = vmatprep.subr.mxu0 0.0
      %1831 = vmatpush1.msra.mxu0 0.0
      %1832 = vmatprep.subr.mxu0 0.0
      %1833 = vmatpush1.msra.mxu0 0.0
      %1834 = vmatprep.subr.mxu0 0.0
      %1835 = vmatpush1.msra.mxu0 0.0
      %1836 = vmatprep.subr.mxu0 0.0
      %1837 = vmatpush1.msra.mxu0 0.0
      %1838 = vmatprep.subr.mxu0 0.0
      %1839 = vmatpush1.msra.mxu0 0.0
      %1840 = vmatprep.subr.mxu0 0.0
      %1841 = vmatpush1.msra.mxu0 0.0
      %1842 = vmatprep.subr.mxu0 0.0
      %1843 = vmatpush1.msra.mxu0 0.0
      %1844 = vmatprep.subr.mxu0 0.0
      %1845 = vmatpush1.msra.mxu0 0.0
      %1846 = vmatprep.subr.mxu0 0.0
      %1847 = vmatpush1.msra.mxu0 0.0
      %1848 = vmatprep.subr.mxu0 0.0
      %1849 = vmatpush1.msra.mxu0 0.0
      %1850 = vmatprep.subr.mxu0 0.0
      %1851 = vmatpush1.msra.mxu0 0.0
      %1852 = vmatprep.subr.mxu0 0.0
      %1853 = vmatpush1.msra.mxu0 0.0
      %1854 = vmatprep.subr.mxu0 0.0
      %1855 = vmatpush1.msra.mxu0 0.0
      %1856 = vmatprep.subr.mxu0 0.0
      %1857 = vmatpush1.msra.mxu0 0.0
      %1858 = vmatprep.subr.mxu0 0.0
      %1859 = vmatpush1.msra.mxu0 0.0
      %1860 = vmatprep.subr.mxu0 0.0
      %1861 = vmatpush1.msra.mxu0 0.0
      %1862 = vmatprep.subr.mxu0 0.0
      %1863 = vmatpush1.msra.mxu0 0.0
      %1864 = vmatprep.subr.mxu0 0.0
      %1865 = vmatpush1.msra.mxu0 0.0
      %1866 = vmatprep.subr.mxu0 0.0
      %1867 = vmatpush1.msra.mxu0 0.0
      %1868 = vmatprep.subr.mxu0 0.0
      %1869 = vmatpush1.msra.mxu0 0.0
      %1870 = vmatprep.subr.mxu0 0.0
      %1871 = vmatpush1.msra.mxu0 0.0
      %1872 = vmatprep.subr.mxu0 0.0
      %1873 = vmatpush1.msra.mxu0 0.0
      %1874 = vmatprep.subr.mxu0 0.0
      %1875 = vmatpush1.msra.mxu0 0.0
      %1876 = vmatprep.subr.mxu0 0.0
      %1877 = vmatpush1.msra.mxu0 0.0
      %1878 = vmatprep.subr.mxu0 0.0
      %1879 = vmatpush1.msra.mxu0 0.0
      %1880 = vmatprep.subr.mxu0 0.0
      %1881 = vmatpush1.msra.mxu0 0.0
      %1882 = vmatprep.subr.mxu0 0.0
      %1883 = vmatpush1.msra.mxu0 0.0
      %1884 = vmatprep.subr.mxu0 0.0
      %1885 = vmatpush1.msra.mxu0 0.0
      %1886 = vmatprep.mubr.f32.mxu0 0.0
      %1887 = vmatmul.mubr.f32.gmra.mrb[0].mxu0 %v1816
      %v1888 = vpop.f32.mrb[0].mxu0
      %v1889 = vadd.f32 0.0, %v1888
      %v1890 = vpop.f32.mrb[0].mxu0
      %1891 = vmatprep.mubr.f32.mxu0 0.0
      %1892 = vmatmul.mubr.f32.gmra.mrb[0].mxu0 %v1818
      %v1893 = vpop.f32.mrb[0].mxu0
      %v1894 = vadd.f32 0.0, %v1893
      %v1895 = vpop.f32.mrb[0].mxu0
      %1896 = vmatprep.mubr.f32.mxu0 0.0
      %1897 = vmatmul.mubr.f32.gmra.mrb[0].mxu0 %v1820
      %v1898 = vpop.f32.mrb[0].mxu0
      %v1899 = vadd.f32 0.0, %v1898
      %v1900 = vpop.f32.mrb[0].mxu0
      %1901 = vdwg.mxu0
      %1902 = vmatprep.subr.mxu0 0.0
      %1903 = vmatpush1.msra.mxu0 %v1404
      %1904 = vmatprep.subr.mxu0 0.0
      %1905 = vmatpush1.msra.mxu0 %v1405
      %1906 = vmatprep.subr.mxu0 0.0
      %1907 = vmatpush1.msra.mxu0 %v1406
      %1908 = vmatprep.subr.mxu0 0.0
      %1909 = vmatpush1.msra.mxu0 0.0
      %1910 = vmatprep.subr.mxu0 0.0
      %1911 = vmatpush1.msra.mxu0 0.0
      %1912 = vmatprep.subr.mxu0 0.0
      %1913 = vmatpush1.msra.mxu0 0.0
      %1914 = vmatprep.subr.mxu0 0.0
      %1915 = vmatpush1.msra.mxu0 0.0
      %1916 = vmatprep.subr.mxu0 0.0
      %1917 = vmatpush1.msra.mxu0 0.0
      %1918 = vmatprep.subr.mxu0 0.0
      %1919 = vmatpush1.msra.mxu0 0.0
      %1920 = vmatprep.subr.mxu0 0.0
      %1921 = vmatpush1.msra.mxu0 0.0
      %1922 = vmatprep.subr.mxu0 0.0
      %1923 = vmatpush1.msra.mxu0 0.0
      %1924 = vmatprep.subr.mxu0 0.0
      %1925 = vmatpush1.msra.mxu0 0.0
      %1926 = vmatprep.subr.mxu0 0.0
      %1927 = vmatpush1.msra.mxu0 0.0
      %1928 = vmatprep.subr.mxu0 0.0
      %1929 = vmatpush1.msra.mxu0 0.0
      %1930 = vmatprep.subr.mxu0 0.0
      %1931 = vmatpush1.msra.mxu0 0.0
      %1932 = vmatprep.subr.mxu0 0.0
      %1933 = vmatpush1.msra.mxu0 0.0
      %1934 = vmatprep.subr.mxu0 0.0
      %1935 = vmatpush1.msra.mxu0 0.0
      %1936 = vmatprep.subr.mxu0 0.0
      %1937 = vmatpush1.msra.mxu0 0.0
      %1938 = vmatprep.subr.mxu0 0.0
      %1939 = vmatpush1.msra.mxu0 0.0
      %1940 = vmatprep.subr.mxu0 0.0
      %1941 = vmatpush1.msra.mxu0 0.0
      %1942 = vmatprep.subr.mxu0 0.0
      %1943 = vmatpush1.msra.mxu0 0.0
      %1944 = vmatprep.subr.mxu0 0.0
      %1945 = vmatpush1.msra.mxu0 0.0
      %1946 = vmatprep.subr.mxu0 0.0
      %1947 = vmatpush1.msra.mxu0 0.0
      %1948 = vmatprep.subr.mxu0 0.0
      %1949 = vmatpush1.msra.mxu0 0.0
      %1950 = vmatprep.subr.mxu0 0.0
      %1951 = vmatpush1.msra.mxu0 0.0
      %1952 = vmatprep.subr.mxu0 0.0
      %1953 = vmatpush1.msra.mxu0 0.0
      %1954 = vmatprep.subr.mxu0 0.0
      %1955 = vmatpush1.msra.mxu0 0.0
      %1956 = vmatprep.subr.mxu0 0.0
      %1957 = vmatpush1.msra.mxu0 0.0
      %1958 = vmatprep.subr.mxu0 0.0
      %1959 = vmatpush1.msra.mxu0 0.0
      %1960 = vmatprep.subr.mxu0 0.0
      %1961 = vmatpush1.msra.mxu0 0.0
      %1962 = vmatprep.subr.mxu0 0.0
      %1963 = vmatpush1.msra.mxu0 0.0
      %1964 = vmatprep.subr.mxu0 0.0
      %1965 = vmatpush1.msra.mxu0 0.0
      %1966 = vmatprep.mubr.f32.mxu0 0.0
      %1967 = vmatmul.mubr.f32.gmra.mrb[0].mxu0 %v1816
      %v1968 = vpop.f32.mrb[0].mxu0
      %v1969 = vadd.f32 0.0, %v1968
      %v1970 = vpop.f32.mrb[0].mxu0
      %1971 = vmatprep.mubr.f32.mxu0 0.0
      %1972 = vmatmul.mubr.f32.gmra.mrb[0].mxu0 %v1818
      %v1973 = vpop.f32.mrb[0].mxu0
      %v1974 = vadd.f32 0.0, %v1973
      %v1975 = vpop.f32.mrb[0].mxu0
      %1976 = vmatprep.mubr.f32.mxu0 0.0
      %1977 = vmatmul.mubr.f32.gmra.mrb[0].mxu0 %v1820
      %v1978 = vpop.f32.mrb[0].mxu0
      %v1979 = vadd.f32 0.0, %v1978
      %v1980 = vpop.f32.mrb[0].mxu0
      %1981 = vdwg.mxu0
      %v1982 = vmax.f32 %v1889, %v1969
      %v1983 = vmax.f32 %v1894, %v1974
      %v1984 = vmax.f32 %v1899, %v1979
      %v1985 = vmax.f32 %v1982, 0.0
      %v1986 = vmax.f32 %v1983, 0.0
      %v1987 = vmax.f32 %v1984, 0.0
      %1988 = vrot.lane.b32.xlu0 %v1789, 88
      %v1989 = vpop.permute.xlu0 %1988
      %1990 = vrot.lane.b32.xlu0 %v1791, 88
      %v1991 = vpop.permute.xlu0 %1990
      %1992 = vrot.lane.b32.xlu0 %v1793, 88
      %v1993 = vpop.permute.xlu0 %1992
      %v1994 = vsel %vm1422, %v1989, 0
      %v1996 = vsel %vm1422, %v1991, 0
      %v1998 = vsel %vm1422, %v1993, 0
      %2000 = vmatprep.subr.mxu0 0.0
      %2001 = vmatpush1.msra.mxu0 %v1397
      %2002 = vmatprep.subr.mxu0 0.0
      %2003 = vmatpush1.msra.mxu0 %v1398
      %2004 = vmatprep.subr.mxu0 0.0
      %2005 = vmatpush1.msra.mxu0 %v1399
      %2006 = vmatprep.subr.mxu0 0.0
      %2007 = vmatpush1.msra.mxu0 0.0
      %2008 = vmatprep.subr.mxu0 0.0
      %2009 = vmatpush1.msra.mxu0 0.0
      %2010 = vmatprep.subr.mxu0 0.0
      %2011 = vmatpush1.msra.mxu0 0.0
      %2012 = vmatprep.subr.mxu0 0.0
      %2013 = vmatpush1.msra.mxu0 0.0
      %2014 = vmatprep.subr.mxu0 0.0
      %2015 = vmatpush1.msra.mxu0 0.0
      %2016 = vmatprep.subr.mxu0 0.0
      %2017 = vmatpush1.msra.mxu0 0.0
      %2018 = vmatprep.subr.mxu0 0.0
      %2019 = vmatpush1.msra.mxu0 0.0
      %2020 = vmatprep.subr.mxu0 0.0
      %2021 = vmatpush1.msra.mxu0 0.0
      %2022 = vmatprep.subr.mxu0 0.0
      %2023 = vmatpush1.msra.mxu0 0.0
      %2024 = vmatprep.subr.mxu0 0.0
      %2025 = vmatpush1.msra.mxu0 0.0
      %2026 = vmatprep.subr.mxu0 0.0
      %2027 = vmatpush1.msra.mxu0 0.0
      %2028 = vmatprep.subr.mxu0 0.0
      %2029 = vmatpush1.msra.mxu0 0.0
      %2030 = vmatprep.subr.mxu0 0.0
      %2031 = vmatpush1.msra.mxu0 0.0
      %2032 = vmatprep.subr.mxu0 0.0
      %2033 = vmatpush1.msra.mxu0 0.0
      %2034 = vmatprep.subr.mxu0 0.0
      %2035 = vmatpush1.msra.mxu0 0.0
      %2036 = vmatprep.subr.mxu0 0.0
      %2037 = vmatpush1.msra.mxu0 0.0
      %2038 = vmatprep.subr.mxu0 0.0
      %2039 = vmatpush1.msra.mxu0 0.0
      %2040 = vmatprep.subr.mxu0 0.0
      %2041 = vmatpush1.msra.mxu0 0.0
      %2042 = vmatprep.subr.mxu0 0.0
      %2043 = vmatpush1.msra.mxu0 0.0
      %2044 = vmatprep.subr.mxu0 0.0
      %2045 = vmatpush1.msra.mxu0 0.0
      %2046 = vmatprep.subr.mxu0 0.0
      %2047 = vmatpush1.msra.mxu0 0.0
      %2048 = vmatprep.subr.mxu0 0.0
      %2049 = vmatpush1.msra.mxu0 0.0
      %2050 = vmatprep.subr.mxu0 0.0
      %2051 = vmatpush1.msra.mxu0 0.0
      %2052 = vmatprep.subr.mxu0 0.0
      %2053 = vmatpush1.msra.mxu0 0.0
      %2054 = vmatprep.subr.mxu0 0.0
      %2055 = vmatpush1.msra.mxu0 0.0
      %2056 = vmatprep.subr.mxu0 0.0
      %2057 = vmatpush1.msra.mxu0 0.0
      %2058 = vmatprep.subr.mxu0 0.0
      %2059 = vmatpush1.msra.mxu0 0.0
      %2060 = vmatprep.subr.mxu0 0.0
      %2061 = vmatpush1.msra.mxu0 0.0
      %2062 = vmatprep.subr.mxu0 0.0
      %2063 = vmatpush1.msra.mxu0 0.0
      %2064 = vmatprep.mubr.f32.mxu0 0.0
      %2065 = vmatmul.mubr.f32.gmra.mrb[0].mxu0 %v1994
      %v2066 = vpop.f32.mrb[0].mxu0
      %v2067 = vadd.f32 0.0, %v2066
      %v2068 = vpop.f32.mrb[0].mxu0
      %2069 = vmatprep.mubr.f32.mxu0 0.0
      %2070 = vmatmul.mubr.f32.gmra.mrb[0].mxu0 %v1996
      %v2071 = vpop.f32.mrb[0].mxu0
      %v2072 = vadd.f32 0.0, %v2071
      %v2073 = vpop.f32.mrb[0].mxu0
      %2074 = vmatprep.mubr.f32.mxu0 0.0
      %2075 = vmatmul.mubr.f32.gmra.mrb[0].mxu0 %v1998
      %v2076 = vpop.f32.mrb[0].mxu0
      %v2077 = vadd.f32 0.0, %v2076
      %v2078 = vpop.f32.mrb[0].mxu0
      %2079 = vdwg.mxu0
      %2080 = vmatprep.subr.mxu0 0.0
      %2081 = vmatpush1.msra.mxu0 %v1404
      %2082 = vmatprep.subr.mxu0 0.0
      %2083 = vmatpush1.msra.mxu0 %v1405
      %2084 = vmatprep.subr.mxu0 0.0
      %2085 = vmatpush1.msra.mxu0 %v1406
      %2086 = vmatprep.subr.mxu0 0.0
      %2087 = vmatpush1.msra.mxu0 0.0
      %2088 = vmatprep.subr.mxu0 0.0
      %2089 = vmatpush1.msra.mxu0 0.0
      %2090 = vmatprep.subr.mxu0 0.0
      %2091 = vmatpush1.msra.mxu0 0.0
      %2092 = vmatprep.subr.mxu0 0.0
      %2093 = vmatpush1.msra.mxu0 0.0
      %2094 = vmatprep.subr.mxu0 0.0
      %2095 = vmatpush1.msra.mxu0 0.0
      %2096 = vmatprep.subr.mxu0 0.0
      %2097 = vmatpush1.msra.mxu0 0.0
      %2098 = vmatprep.subr.mxu0 0.0
      %2099 = vmatpush1.msra.mxu0 0.0
      %2100 = vmatprep.subr.mxu0 0.0
      %2101 = vmatpush1.msra.mxu0 0.0
      %2102 = vmatprep.subr.mxu0 0.0
      %2103 = vmatpush1.msra.mxu0 0.0
      %2104 = vmatprep.subr.mxu0 0.0
      %2105 = vmatpush1.msra.mxu0 0.0
      %2106 = vmatprep.subr.mxu0 0.0
      %2107 = vmatpush1.msra.mxu0 0.0
      %2108 = vmatprep.subr.mxu0 0.0
      %2109 = vmatpush1.msra.mxu0 0.0
      %2110 = vmatprep.subr.mxu0 0.0
      %2111 = vmatpush1.msra.mxu0 0.0
      %2112 = vmatprep.subr.mxu0 0.0
      %2113 = vmatpush1.msra.mxu0 0.0
      %2114 = vmatprep.subr.mxu0 0.0
      %2115 = vmatpush1.msra.mxu0 0.0
      %2116 = vmatprep.subr.mxu0 0.0
      %2117 = vmatpush1.msra.mxu0 0.0
      %2118 = vmatprep.subr.mxu0 0.0
      %2119 = vmatpush1.msra.mxu0 0.0
      %2120 = vmatprep.subr.mxu0 0.0
      %2121 = vmatpush1.msra.mxu0 0.0
      %2122 = vmatprep.subr.mxu0 0.0
      %2123 = vmatpush1.msra.mxu0 0.0
      %2124 = vmatprep.subr.mxu0 0.0
      %2125 = vmatpush1.msra.mxu0 0.0
      %2126 = vmatprep.subr.mxu0 0.0
      %2127 = vmatpush1.msra.mxu0 0.0
      %2128 = vmatprep.subr.mxu0 0.0
      %2129 = vmatpush1.msra.mxu0 0.0
      %2130 = vmatprep.subr.mxu0 0.0
      %2131 = vmatpush1.msra.mxu0 0.0
      %2132 = vmatprep.subr.mxu0 0.0
      %2133 = vmatpush1.msra.mxu0 0.0
      %2134 = vmatprep.subr.mxu0 0.0
      %2135 = vmatpush1.msra.mxu0 0.0
      %2136 = vmatprep.subr.mxu0 0.0
      %2137 = vmatpush1.msra.mxu0 0.0
      %2138 = vmatprep.subr.mxu0 0.0
      %2139 = vmatpush1.msra.mxu0 0.0
      %2140 = vmatprep.subr.mxu0 0.0
      %2141 = vmatpush1.msra.mxu0 0.0
      %2142 = vmatprep.subr.mxu0 0.0
      %2143 = vmatpush1.msra.mxu0 0.0
      %2144 = vmatprep.mubr.f32.mxu0 0.0
      %2145 = vmatmul.mubr.f32.gmra.mrb[0].mxu0 %v1994
      %v2146 = vpop.f32.mrb[0].mxu0
      %v2147 = vadd.f32 0.0, %v2146
      %v2148 = vpop.f32.mrb[0].mxu0
      %2149 = vmatprep.mubr.f32.mxu0 0.0
      %2150 = vmatmul.mubr.f32.gmra.mrb[0].mxu0 %v1996
      %v2151 = vpop.f32.mrb[0].mxu0
      %v2152 = vadd.f32 0.0, %v2151
      %v2153 = vpop.f32.mrb[0].mxu0
      %2154 = vmatprep.mubr.f32.mxu0 0.0
      %2155 = vmatmul.mubr.f32.gmra.mrb[0].mxu0 %v1998
      %v2156 = vpop.f32.mrb[0].mxu0
      %v2157 = vadd.f32 0.0, %v2156
      %v2158 = vpop.f32.mrb[0].mxu0
      %2159 = vdwg.mxu0
      %v2160 = vmax.f32 %v2067, %v2147
      %v2161 = vmax.f32 %v2072, %v2152
      %v2162 = vmax.f32 %v2077, %v2157
      %v2163 = vmax.f32 %v2160, 0.0
      %v2164 = vmax.f32 %v2161, 0.0
      %v2165 = vmax.f32 %v2162, 0.0
      %2169 = vrot.lane.b32.xlu0 %v1320, 100
      %v2170 = vpop.permute.xlu0 %2169
      %2171 = vrot.lane.b32.xlu0 %v1324, 100
      %v2172 = vpop.permute.xlu0 %2171
      %2173 = vrot.lane.b32.xlu0 %v1330, 100
      %v2174 = vpop.permute.xlu0 %2173
      %vm2175 = vcmask 818176
      %v2176 = vsel %vm2175, %v1780, %v2170
      %v2177 = vsel %vm2175, %v1782, %v2172
      %v2178 = vsel %vm2175, %v1784, %v2174
      %v2182 = vmax.f32 %v1271, %v2176
      %v2183 = vmax.f32 %v1275, %v2177
      %v2184 = vmax.f32 %v1281, %v2178
      %2188 = vrot.lane.b32.xlu0 %v2182, 32
      %v2189 = vpop.permute.xlu0 %2188
      %2190 = vrot.lane.b32.xlu0 %v2183, 32
      %v2191 = vpop.permute.xlu0 %2190
      %2192 = vrot.lane.b32.xlu0 %v2184, 32
      %v2193 = vpop.permute.xlu0 %2192
      %v2194 = vsel %vm1422, %v2189, 0
      %v2196 = vsel %vm1422, %v2191, 0
      %v2198 = vsel %vm1422, %v2193, 0
      %2200 = vmatprep.subr.mxu0 0.0
      %2201 = vmatpush1.msra.mxu0 %v1397
      %2202 = vmatprep.subr.mxu0 0.0
      %2203 = vmatpush1.msra.mxu0 %v1398
      %2204 = vmatprep.subr.mxu0 0.0
      %2205 = vmatpush1.msra.mxu0 %v1399
      %2206 = vmatprep.subr.mxu0 0.0
      %2207 = vmatpush1.msra.mxu0 0.0
      %2208 = vmatprep.subr.mxu0 0.0
      %2209 = vmatpush1.msra.mxu0 0.0
      %2210 = vmatprep.subr.mxu0 0.0
      %2211 = vmatpush1.msra.mxu0 0.0
      %2212 = vmatprep.subr.mxu0 0.0
      %2213 = vmatpush1.msra.mxu0 0.0
      %2214 = vmatprep.subr.mxu0 0.0
      %2215 = vmatpush1.msra.mxu0 0.0
      %2216 = vmatprep.subr.mxu0 0.0
      %2217 = vmatpush1.msra.mxu0 0.0
      %2218 = vmatprep.subr.mxu0 0.0
      %2219 = vmatpush1.msra.mxu0 0.0
      %2220 = vmatprep.subr.mxu0 0.0
      %2221 = vmatpush1.msra.mxu0 0.0
      %2222 = vmatprep.subr.mxu0 0.0
      %2223 = vmatpush1.msra.mxu0 0.0
      %2224 = vmatprep.subr.mxu0 0.0
      %2225 = vmatpush1.msra.mxu0 0.0
      %2226 = vmatprep.subr.mxu0 0.0
      %2227 = vmatpush1.msra.mxu0 0.0
      %2228 = vmatprep.subr.mxu0 0.0
      %2229 = vmatpush1.msra.mxu0 0.0
      %2230 = vmatprep.subr.mxu0 0.0
      %2231 = vmatpush1.msra.mxu0 0.0
      %2232 = vmatprep.subr.mxu0 0.0
      %2233 = vmatpush1.msra.mxu0 0.0
      %2234 = vmatprep.subr.mxu0 0.0
      %2235 = vmatpush1.msra.mxu0 0.0
      %2236 = vmatprep.subr.mxu0 0.0
      %2237 = vmatpush1.msra.mxu0 0.0
      %2238 = vmatprep.subr.mxu0 0.0
      %2239 = vmatpush1.msra.mxu0 0.0
      %2240 = vmatprep.subr.mxu0 0.0
      %2241 = vmatpush1.msra.mxu0 0.0
      %2242 = vmatprep.subr.mxu0 0.0
      %2243 = vmatpush1.msra.mxu0 0.0
      %2244 = vmatprep.subr.mxu0 0.0
      %2245 = vmatpush1.msra.mxu0 0.0
      %2246 = vmatprep.subr.mxu0 0.0
      %2247 = vmatpush1.msra.mxu0 0.0
      %2248 = vmatprep.subr.mxu0 0.0
      %2249 = vmatpush1.msra.mxu0 0.0
      %2250 = vmatprep.subr.mxu0 0.0
      %2251 = vmatpush1.msra.mxu0 0.0
      %2252 = vmatprep.subr.mxu0 0.0
      %2253 = vmatpush1.msra.mxu0 0.0
      %2254 = vmatprep.subr.mxu0 0.0
      %2255 = vmatpush1.msra.mxu0 0.0
      %2256 = vmatprep.subr.mxu0 0.0
      %2257 = vmatpush1.msra.mxu0 0.0
      %2258 = vmatprep.subr.mxu0 0.0
      %2259 = vmatpush1.msra.mxu0 0.0
      %2260 = vmatprep.subr.mxu0 0.0
      %2261 = vmatpush1.msra.mxu0 0.0
      %2262 = vmatprep.subr.mxu0 0.0
      %2263 = vmatpush1.msra.mxu0 0.0
      %2264 = vmatprep.mubr.f32.mxu0 0.0
      %2265 = vmatmul.mubr.f32.gmra.mrb[0].mxu0 %v2194
      %v2266 = vpop.f32.mrb[0].mxu0
      %v2267 = vadd.f32 0.0, %v2266
      %v2268 = vpop.f32.mrb[0].mxu0
      %2269 = vmatprep.mubr.f32.mxu0 0.0
      %2270 = vmatmul.mubr.f32.gmra.mrb[0].mxu0 %v2196
      %v2271 = vpop.f32.mrb[0].mxu0
      %v2272 = vadd.f32 0.0, %v2271
      %v2273 = vpop.f32.mrb[0].mxu0
      %2274 = vmatprep.mubr.f32.mxu0 0.0
      %2275 = vmatmul.mubr.f32.gmra.mrb[0].mxu0 %v2198
      %v2276 = vpop.f32.mrb[0].mxu0
      %v2277 = vadd.f32 0.0, %v2276
      %v2278 = vpop.f32.mrb[0].mxu0
      %2279 = vdwg.mxu0
      %2280 = vmatprep.subr.mxu0 0.0
      %2281 = vmatpush1.msra.mxu0 %v1404
      %2282 = vmatprep.subr.mxu0 0.0
      %2283 = vmatpush1.msra.mxu0 %v1405
      %2284 = vmatprep.subr.mxu0 0.0
      %2285 = vmatpush1.msra.mxu0 %v1406
      %2286 = vmatprep.subr.mxu0 0.0
      %2287 = vmatpush1.msra.mxu0 0.0
      %2288 = vmatprep.subr.mxu0 0.0
      %2289 = vmatpush1.msra.mxu0 0.0
      %2290 = vmatprep.subr.mxu0 0.0
      %2291 = vmatpush1.msra.mxu0 0.0
      %2292 = vmatprep.subr.mxu0 0.0
      %2293 = vmatpush1.msra.mxu0 0.0
      %2294 = vmatprep.subr.mxu0 0.0
      %2295 = vmatpush1.msra.mxu0 0.0
      %2296 = vmatprep.subr.mxu0 0.0
      %2297 = vmatpush1.msra.mxu0 0.0
      %2298 = vmatprep.subr.mxu0 0.0
      %2299 = vmatpush1.msra.mxu0 0.0
      %2300 = vmatprep.subr.mxu0 0.0
      %2301 = vmatpush1.msra.mxu0 0.0
      %2302 = vmatprep.subr.mxu0 0.0
      %2303 = vmatpush1.msra.mxu0 0.0
      %2304 = vmatprep.subr.mxu0 0.0
      %2305 = vmatpush1.msra.mxu0 0.0
      %2306 = vmatprep.subr.mxu0 0.0
      %2307 = vmatpush1.msra.mxu0 0.0
      %2308 = vmatprep.subr.mxu0 0.0
      %2309 = vmatpush1.msra.mxu0 0.0
      %2310 = vmatprep.subr.mxu0 0.0
      %2311 = vmatpush1.msra.mxu0 0.0
      %2312 = vmatprep.subr.mxu0 0.0
      %2313 = vmatpush1.msra.mxu0 0.0
      %2314 = vmatprep.subr.mxu0 0.0
      %2315 = vmatpush1.msra.mxu0 0.0
      %2316 = vmatprep.subr.mxu0 0.0
      %2317 = vmatpush1.msra.mxu0 0.0
      %2318 = vmatprep.subr.mxu0 0.0
      %2319 = vmatpush1.msra.mxu0 0.0
      %2320 = vmatprep.subr.mxu0 0.0
      %2321 = vmatpush1.msra.mxu0 0.0
      %2322 = vmatprep.subr.mxu0 0.0
      %2323 = vmatpush1.msra.mxu0 0.0
      %2324 = vmatprep.subr.mxu0 0.0
      %2325 = vmatpush1.msra.mxu0 0.0
      %2326 = vmatprep.subr.mxu0 0.0
      %2327 = vmatpush1.msra.mxu0 0.0
      %2328 = vmatprep.subr.mxu0 0.0
      %2329 = vmatpush1.msra.mxu0 0.0
      %2330 = vmatprep.subr.mxu0 0.0
      %2331 = vmatpush1.msra.mxu0 0.0
      %2332 = vmatprep.subr.mxu0 0.0
      %2333 = vmatpush1.msra.mxu0 0.0
      %2334 = vmatprep.subr.mxu0 0.0
      %2335 = vmatpush1.msra.mxu0 0.0
      %2336 = vmatprep.subr.mxu0 0.0
      %2337 = vmatpush1.msra.mxu0 0.0
      %2338 = vmatprep.subr.mxu0 0.0
      %2339 = vmatpush1.msra.mxu0 0.0
      %2340 = vmatprep.subr.mxu0 0.0
      %2341 = vmatpush1.msra.mxu0 0.0
      %2342 = vmatprep.subr.mxu0 0.0
      %2343 = vmatpush1.msra.mxu0 0.0
      %2344 = vmatprep.mubr.f32.mxu0 0.0
      %2345 = vmatmul.mubr.f32.gmra.mrb[0].mxu0 %v2194
      %v2346 = vpop.f32.mrb[0].mxu0
      %v2347 = vadd.f32 0.0, %v2346
      %v2348 = vpop.f32.mrb[0].mxu0
      %2349 = vmatprep.mubr.f32.mxu0 0.0
      %2350 = vmatmul.mubr.f32.gmra.mrb[0].mxu0 %v2196
      %v2351 = vpop.f32.mrb[0].mxu0
      %v2352 = vadd.f32 0.0, %v2351
      %v2353 = vpop.f32.mrb[0].mxu0
      %2354 = vmatprep.mubr.f32.mxu0 0.0
      %2355 = vmatmul.mubr.f32.gmra.mrb[0].mxu0 %v2198
      %v2356 = vpop.f32.mrb[0].mxu0
      %v2357 = vadd.f32 0.0, %v2356
      %v2358 = vpop.f32.mrb[0].mxu0
      %2359 = vdwg.mxu0
      %v2360 = vmax.f32 %v2267, %v2347
      %v2361 = vmax.f32 %v2272, %v2352
      %v2362 = vmax.f32 %v2277, %v2357
      %v2363 = vmax.f32 %v2360, 0.0
      %v2364 = vmax.f32 %v2361, 0.0
      %v2365 = vmax.f32 %v2362, 0.0
      %v2369 = vmax.f32 %v1320, %v2170
      %v2370 = vmax.f32 %v1324, %v2172
      %v2371 = vmax.f32 %v1330, %v2174
      %2375 = vrot.lane.b32.xlu0 %v2369, 104
      %v2376 = vpop.permute.xlu0 %2375
      %2377 = vrot.lane.b32.xlu0 %v2370, 104
      %v2378 = vpop.permute.xlu0 %2377
      %2379 = vrot.lane.b32.xlu0 %v2371, 104
      %v2380 = vpop.permute.xlu0 %2379
      %v2381 = vsel %vm1422, %v2376, 0
      %v2383 = vsel %vm1422, %v2378, 0
      %v2385 = vsel %vm1422, %v2380, 0
      %2387 = vmatprep.subr.mxu0 0.0
      %2388 = vmatpush1.msra.mxu0 %v1397
      %2389 = vmatprep.subr.mxu0 0.0
      %2390 = vmatpush1.msra.mxu0 %v1398
      %2391 = vmatprep.subr.mxu0 0.0
      %2392 = vmatpush1.msra.mxu0 %v1399
      %2393 = vmatprep.subr.mxu0 0.0
      %2394 = vmatpush1.msra.mxu0 0.0
      %2395 = vmatprep.subr.mxu0 0.0
      %2396 = vmatpush1.msra.mxu0 0.0
      %2397 = vmatprep.subr.mxu0 0.0
      %2398 = vmatpush1.msra.mxu0 0.0
      %2399 = vmatprep.subr.mxu0 0.0
      %2400 = vmatpush1.msra.mxu0 0.0
      %2401 = vmatprep.subr.mxu0 0.0
      %2402 = vmatpush1.msra.mxu0 0.0
      %2403 = vmatprep.subr.mxu0 0.0
      %2404 = vmatpush1.msra.mxu0 0.0
      %2405 = vmatprep.subr.mxu0 0.0
      %2406 = vmatpush1.msra.mxu0 0.0
      %2407 = vmatprep.subr.mxu0 0.0
      %2408 = vmatpush1.msra.mxu0 0.0
      %2409 = vmatprep.subr.mxu0 0.0
      %2410 = vmatpush1.msra.mxu0 0.0
      %2411 = vmatprep.subr.mxu0 0.0
      %2412 = vmatpush1.msra.mxu0 0.0
      %2413 = vmatprep.subr.mxu0 0.0
      %2414 = vmatpush1.msra.mxu0 0.0
      %2415 = vmatprep.subr.mxu0 0.0
      %2416 = vmatpush1.msra.mxu0 0.0
      %2417 = vmatprep.subr.mxu0 0.0
      %2418 = vmatpush1.msra.mxu0 0.0
      %2419 = vmatprep.subr.mxu0 0.0
      %2420 = vmatpush1.msra.mxu0 0.0
      %2421 = vmatprep.subr.mxu0 0.0
      %2422 = vmatpush1.msra.mxu0 0.0
      %2423 = vmatprep.subr.mxu0 0.0
      %2424 = vmatpush1.msra.mxu0 0.0
      %2425 = vmatprep.subr.mxu0 0.0
      %2426 = vmatpush1.msra.mxu0 0.0
      %2427 = vmatprep.subr.mxu0 0.0
      %2428 = vmatpush1.msra.mxu0 0.0
      %2429 = vmatprep.subr.mxu0 0.0
      %2430 = vmatpush1.msra.mxu0 0.0
      %2431 = vmatprep.subr.mxu0 0.0
      %2432 = vmatpush1.msra.mxu0 0.0
      %2433 = vmatprep.subr.mxu0 0.0
      %2434 = vmatpush1.msra.mxu0 0.0
      %2435 = vmatprep.subr.mxu0 0.0
      %2436 = vmatpush1.msra.mxu0 0.0
      %2437 = vmatprep.subr.mxu0 0.0
      %2438 = vmatpush1.msra.mxu0 0.0
      %2439 = vmatprep.subr.mxu0 0.0
      %2440 = vmatpush1.msra.mxu0 0.0
      %2441 = vmatprep.subr.mxu0 0.0
      %2442 = vmatpush1.msra.mxu0 0.0
      %2443 = vmatprep.subr.mxu0 0.0
      %2444 = vmatpush1.msra.mxu0 0.0
      %2445 = vmatprep.subr.mxu0 0.0
      %2446 = vmatpush1.msra.mxu0 0.0
      %2447 = vmatprep.subr.mxu0 0.0
      %2448 = vmatpush1.msra.mxu0 0.0
      %2449 = vmatprep.subr.mxu0 0.0
      %2450 = vmatpush1.msra.mxu0 0.0
      %2451 = vmatprep.mubr.f32.mxu0 0.0
      %2452 = vmatmul.mubr.f32.gmra.mrb[0].mxu0 %v2381
      %v2453 = vpop.f32.mrb[0].mxu0
      %v2454 = vadd.f32 0.0, %v2453
      %v2455 = vpop.f32.mrb[0].mxu0
      %2456 = vmatprep.mubr.f32.mxu0 0.0
      %2457 = vmatmul.mubr.f32.gmra.mrb[0].mxu0 %v2383
      %v2458 = vpop.f32.mrb[0].mxu0
      %v2459 = vadd.f32 0.0, %v2458
      %v2460 = vpop.f32.mrb[0].mxu0
      %2461 = vmatprep.mubr.f32.mxu0 0.0
      %2462 = vmatmul.mubr.f32.gmra.mrb[0].mxu0 %v2385
      %v2463 = vpop.f32.mrb[0].mxu0
      %v2464 = vadd.f32 0.0, %v2463
      %v2465 = vpop.f32.mrb[0].mxu0
      %2466 = vdwg.mxu0
      %2467 = vmatprep.subr.mxu0 0.0
      %2468 = vmatpush1.msra.mxu0 %v1404
      %2469 = vmatprep.subr.mxu0 0.0
      %2470 = vmatpush1.msra.mxu0 %v1405
      %2471 = vmatprep.subr.mxu0 0.0
      %2472 = vmatpush1.msra.mxu0 %v1406
      %2473 = vmatprep.subr.mxu0 0.0
      %2474 = vmatpush1.msra.mxu0 0.0
      %2475 = vmatprep.subr.mxu0 0.0
      %2476 = vmatpush1.msra.mxu0 0.0
      %2477 = vmatprep.subr.mxu0 0.0
      %2478 = vmatpush1.msra.mxu0 0.0
      %2479 = vmatprep.subr.mxu0 0.0
      %2480 = vmatpush1.msra.mxu0 0.0
      %2481 = vmatprep.subr.mxu0 0.0
      %2482 = vmatpush1.msra.mxu0 0.0
      %2483 = vmatprep.subr.mxu0 0.0
      %2484 = vmatpush1.msra.mxu0 0.0
      %2485 = vmatprep.subr.mxu0 0.0
      %2486 = vmatpush1.msra.mxu0 0.0
      %2487 = vmatprep.subr.mxu0 0.0
      %2488 = vmatpush1.msra.mxu0 0.0
      %2489 = vmatprep.subr.mxu0 0.0
      %2490 = vmatpush1.msra.mxu0 0.0
      %2491 = vmatprep.subr.mxu0 0.0
      %2492 = vmatpush1.msra.mxu0 0.0
      %2493 = vmatprep.subr.mxu0 0.0
      %2494 = vmatpush1.msra.mxu0 0.0
      %2495 = vmatprep.subr.mxu0 0.0
      %2496 = vmatpush1.msra.mxu0 0.0
      %2497 = vmatprep.subr.mxu0 0.0
      %2498 = vmatpush1.msra.mxu0 0.0
      %2499 = vmatprep.subr.mxu0 0.0
      %2500 = vmatpush1.msra.mxu0 0.0
      %2501 = vmatprep.subr.mxu0 0.0
      %2502 = vmatpush1.msra.mxu0 0.0
      %2503 = vmatprep.subr.mxu0 0.0
      %2504 = vmatpush1.msra.mxu0 0.0
      %2505 = vmatprep.subr.mxu0 0.0
      %2506 = vmatpush1.msra.mxu0 0.0
      %2507 = vmatprep.subr.mxu0 0.0
      %2508 = vmatpush1.msra.mxu0 0.0
      %2509 = vmatprep.subr.mxu0 0.0
      %2510 = vmatpush1.msra.mxu0 0.0
      %2511 = vmatprep.subr.mxu0 0.0
      %2512 = vmatpush1.msra.mxu0 0.0
      %2513 = vmatprep.subr.mxu0 0.0
      %2514 = vmatpush1.msra.mxu0 0.0
      %2515 = vmatprep.subr.mxu0 0.0
      %2516 = vmatpush1.msra.mxu0 0.0
      %2517 = vmatprep.subr.mxu0 0.0
      %2518 = vmatpush1.msra.mxu0 0.0
      %2519 = vmatprep.subr.mxu0 0.0
      %2520 = vmatpush1.msra.mxu0 0.0
      %2521 = vmatprep.subr.mxu0 0.0
      %2522 = vmatpush1.msra.mxu0 0.0
      %2523 = vmatprep.subr.mxu0 0.0
      %2524 = vmatpush1.msra.mxu0 0.0
      %2525 = vmatprep.subr.mxu0 0.0
      %2526 = vmatpush1.msra.mxu0 0.0
      %2527 = vmatprep.subr.mxu0 0.0
      %2528 = vmatpush1.msra.mxu0 0.0
      %2529 = vmatprep.subr.mxu0 0.0
      %2530 = vmatpush1.msra.mxu0 0.0
      %2531 = vmatprep.mubr.f32.mxu0 0.0
      %2532 = vmatmul.mubr.f32.gmra.mrb[0].mxu0 %v2381
      %v2533 = vpop.f32.mrb[0].mxu0
      %v2534 = vadd.f32 0.0, %v2533
      %v2535 = vpop.f32.mrb[0].mxu0
      %2536 = vmatprep.mubr.f32.mxu0 0.0
      %2537 = vmatmul.mubr.f32.gmra.mrb[0].mxu0 %v2383
      %v2538 = vpop.f32.mrb[0].mxu0
      %v2539 = vadd.f32 0.0, %v2538
      %v2540 = vpop.f32.mrb[0].mxu0
      %2541 = vmatprep.mubr.f32.mxu0 0.0
      %2542 = vmatmul.mubr.f32.gmra.mrb[0].mxu0 %v2385
      %v2543 = vpop.f32.mrb[0].mxu0
      %v2544 = vadd.f32 0.0, %v2543
      %v2545 = vpop.f32.mrb[0].mxu0
      %2546 = vdwg.mxu0
      %v2547 = vmax.f32 %v2454, %v2534
      %v2548 = vmax.f32 %v2459, %v2539
      %v2549 = vmax.f32 %v2464, %v2544
      %v2550 = vmax.f32 %v2547, 0.0
      %v2551 = vmax.f32 %v2548, 0.0
      %v2552 = vmax.f32 %v2549, 0.0
      %2556 = vrot.lane.b32.xlu0 %v1322, 100
      %v2557 = vpop.permute.xlu0 %2556
      %2558 = vrot.lane.b32.xlu0 %v1326, 100
      %v2559 = vpop.permute.xlu0 %2558
      %2560 = vrot.lane.b32.xlu0 %v1332, 100
      %v2561 = vpop.permute.xlu0 %2560
      %v2562 = vsel %vm2175, %v2170, %v2557
      %v2563 = vsel %vm2175, %v2172, %v2559
      %v2564 = vsel %vm2175, %v2174, %v2561
      %v2568 = vmax.f32 %v1320, %v2562
      %v2569 = vmax.f32 %v1324, %v2563
      %v2570 = vmax.f32 %v1330, %v2564
      %2574 = vrot.lane.b32.xlu0 %v2568, 48
      %v2575 = vpop.permute.xlu0 %2574
      %2576 = vrot.lane.b32.xlu0 %v2569, 48
      %v2577 = vpop.permute.xlu0 %2576
      %2578 = vrot.lane.b32.xlu0 %v2570, 48
      %v2579 = vpop.permute.xlu0 %2578
      %v2580 = vsel %vm1422, %v2575, 0
      %v2582 = vsel %vm1422, %v2577, 0
      %v2584 = vsel %vm1422, %v2579, 0
      %2586 = vmatprep.subr.mxu0 0.0
      %2587 = vmatpush1.msra.mxu0 %v1397
      %2588 = vmatprep.subr.mxu0 0.0
      %2589 = vmatpush1.msra.mxu0 %v1398
      %2590 = vmatprep.subr.mxu0 0.0
      %2591 = vmatpush1.msra.mxu0 %v1399
      %2592 = vmatprep.subr.mxu0 0.0
      %2593 = vmatpush1.msra.mxu0 0.0
      %2594 = vmatprep.subr.mxu0 0.0
      %2595 = vmatpush1.msra.mxu0 0.0
      %2596 = vmatprep.subr.mxu0 0.0
      %2597 = vmatpush1.msra.mxu0 0.0
      %2598 = vmatprep.subr.mxu0 0.0
      %2599 = vmatpush1.msra.mxu0 0.0
      %2600 = vmatprep.subr.mxu0 0.0
      %2601 = vmatpush1.msra.mxu0 0.0
      %2602 = vmatprep.subr.mxu0 0.0
      %2603 = vmatpush1.msra.mxu0 0.0
      %2604 = vmatprep.subr.mxu0 0.0
      %2605 = vmatpush1.msra.mxu0 0.0
      %2606 = vmatprep.subr.mxu0 0.0
      %2607 = vmatpush1.msra.mxu0 0.0
      %2608 = vmatprep.subr.mxu0 0.0
      %2609 = vmatpush1.msra.mxu0 0.0
      %2610 = vmatprep.subr.mxu0 0.0
      %2611 = vmatpush1.msra.mxu0 0.0
      %2612 = vmatprep.subr.mxu0 0.0
      %2613 = vmatpush1.msra.mxu0 0.0
      %2614 = vmatprep.subr.mxu0 0.0
      %2615 = vmatpush1.msra.mxu0 0.0
      %2616 = vmatprep.subr.mxu0 0.0
      %2617 = vmatpush1.msra.mxu0 0.0
      %2618 = vmatprep.subr.mxu0 0.0
      %2619 = vmatpush1.msra.mxu0 0.0
      %2620 = vmatprep.subr.mxu0 0.0
      %2621 = vmatpush1.msra.mxu0 0.0
      %2622 = vmatprep.subr.mxu0 0.0
      %2623 = vmatpush1.msra.mxu0 0.0
      %2624 = vmatprep.subr.mxu0 0.0
      %2625 = vmatpush1.msra.mxu0 0.0
      %2626 = vmatprep.subr.mxu0 0.0
      %2627 = vmatpush1.msra.mxu0 0.0
      %2628 = vmatprep.subr.mxu0 0.0
      %2629 = vmatpush1.msra.mxu0 0.0
      %2630 = vmatprep.subr.mxu0 0.0
      %2631 = vmatpush1.msra.mxu0 0.0
      %2632 = vmatprep.subr.mxu0 0.0
      %2633 = vmatpush1.msra.mxu0 0.0
      %2634 = vmatprep.subr.mxu0 0.0
      %2635 = vmatpush1.msra.mxu0 0.0
      %2636 = vmatprep.subr.mxu0 0.0
      %2637 = vmatpush1.msra.mxu0 0.0
      %2638 = vmatprep.subr.mxu0 0.0
      %2639 = vmatpush1.msra.mxu0 0.0
      %2640 = vmatprep.subr.mxu0 0.0
      %2641 = vmatpush1.msra.mxu0 0.0
      %2642 = vmatprep.subr.mxu0 0.0
      %2643 = vmatpush1.msra.mxu0 0.0
      %2644 = vmatprep.subr.mxu0 0.0
      %2645 = vmatpush1.msra.mxu0 0.0
      %2646 = vmatprep.subr.mxu0 0.0
      %2647 = vmatpush1.msra.mxu0 0.0
      %2648 = vmatprep.subr.mxu0 0.0
      %2649 = vmatpush1.msra.mxu0 0.0
      %2650 = vmatprep.mubr.f32.mxu0 0.0
      %2651 = vmatmul.mubr.f32.gmra.mrb[0].mxu0 %v2580
      %v2652 = vpop.f32.mrb[0].mxu0
      %v2653 = vadd.f32 0.0, %v2652
      %v2654 = vpop.f32.mrb[0].mxu0
      %2655 = vmatprep.mubr.f32.mxu0 0.0
      %2656 = vmatmul.mubr.f32.gmra.mrb[0].mxu0 %v2582
      %v2657 = vpop.f32.mrb[0].mxu0
      %v2658 = vadd.f32 0.0, %v2657
      %v2659 = vpop.f32.mrb[0].mxu0
      %2660 = vmatprep.mubr.f32.mxu0 0.0
      %2661 = vmatmul.mubr.f32.gmra.mrb[0].mxu0 %v2584
      %v2662 = vpop.f32.mrb[0].mxu0
      %v2663 = vadd.f32 0.0, %v2662
      %v2664 = vpop.f32.mrb[0].mxu0
      %2665 = vdwg.mxu0
      %2666 = vmatprep.subr.mxu0 0.0
      %2667 = vmatpush1.msra.mxu0 %v1404
      %2668 = vmatprep.subr.mxu0 0.0
      %2669 = vmatpush1.msra.mxu0 %v1405
      %2670 = vmatprep.subr.mxu0 0.0
      %2671 = vmatpush1.msra.mxu0 %v1406
      %2672 = vmatprep.subr.mxu0 0.0
      %2673 = vmatpush1.msra.mxu0 0.0
      %2674 = vmatprep.subr.mxu0 0.0
      %2675 = vmatpush1.msra.mxu0 0.0
      %2676 = vmatprep.subr.mxu0 0.0
      %2677 = vmatpush1.msra.mxu0 0.0
      %2678 = vmatprep.subr.mxu0 0.0
      %2679 = vmatpush1.msra.mxu0 0.0
      %2680 = vmatprep.subr.mxu0 0.0
      %2681 = vmatpush1.msra.mxu0 0.0
      %2682 = vmatprep.subr.mxu0 0.0
      %2683 = vmatpush1.msra.mxu0 0.0
      %2684 = vmatprep.subr.mxu0 0.0
      %2685 = vmatpush1.msra.mxu0 0.0
      %2686 = vmatprep.subr.mxu0 0.0
      %2687 = vmatpush1.msra.mxu0 0.0
      %2688 = vmatprep.subr.mxu0 0.0
      %2689 = vmatpush1.msra.mxu0 0.0
      %2690 = vmatprep.subr.mxu0 0.0
      %2691 = vmatpush1.msra.mxu0 0.0
      %2692 = vmatprep.subr.mxu0 0.0
      %2693 = vmatpush1.msra.mxu0 0.0
      %2694 = vmatprep.subr.mxu0 0.0
      %2695 = vmatpush1.msra.mxu0 0.0
      %2696 = vmatprep.subr.mxu0 0.0
      %2697 = vmatpush1.msra.mxu0 0.0
      %2698 = vmatprep.subr.mxu0 0.0
      %2699 = vmatpush1.msra.mxu0 0.0
      %2700 = vmatprep.subr.mxu0 0.0
      %2701 = vmatpush1.msra.mxu0 0.0
      %2702 = vmatprep.subr.mxu0 0.0
      %2703 = vmatpush1.msra.mxu0 0.0
      %2704 = vmatprep.subr.mxu0 0.0
      %2705 = vmatpush1.msra.mxu0 0.0
      %2706 = vmatprep.subr.mxu0 0.0
      %2707 = vmatpush1.msra.mxu0 0.0
      %2708 = vmatprep.subr.mxu0 0.0
      %2709 = vmatpush1.msra.mxu0 0.0
      %2710 = vmatprep.subr.mxu0 0.0
      %2711 = vmatpush1.msra.mxu0 0.0
      %2712 = vmatprep.subr.mxu0 0.0
      %2713 = vmatpush1.msra.mxu0 0.0
      %2714 = vmatprep.subr.mxu0 0.0
      %2715 = vmatpush1.msra.mxu0 0.0
      %2716 = vmatprep.subr.mxu0 0.0
      %2717 = vmatpush1.msra.mxu0 0.0
      %2718 = vmatprep.subr.mxu0 0.0
      %2719 = vmatpush1.msra.mxu0 0.0
      %2720 = vmatprep.subr.mxu0 0.0
      %2721 = vmatpush1.msra.mxu0 0.0
      %2722 = vmatprep.subr.mxu0 0.0
      %2723 = vmatpush1.msra.mxu0 0.0
      %2724 = vmatprep.subr.mxu0 0.0
      %2725 = vmatpush1.msra.mxu0 0.0
      %2726 = vmatprep.subr.mxu0 0.0
      %2727 = vmatpush1.msra.mxu0 0.0
      %2728 = vmatprep.subr.mxu0 0.0
      %2729 = vmatpush1.msra.mxu0 0.0
      %2730 = vmatprep.mubr.f32.mxu0 0.0
      %2731 = vmatmul.mubr.f32.gmra.mrb[0].mxu0 %v2580
      %v2732 = vpop.f32.mrb[0].mxu0
      %v2733 = vadd.f32 0.0, %v2732
      %v2734 = vpop.f32.mrb[0].mxu0
      %2735 = vmatprep.mubr.f32.mxu0 0.0
      %2736 = vmatmul.mubr.f32.gmra.mrb[0].mxu0 %v2582
      %v2737 = vpop.f32.mrb[0].mxu0
      %v2738 = vadd.f32 0.0, %v2737
      %v2739 = vpop.f32.mrb[0].mxu0
      %2740 = vmatprep.mubr.f32.mxu0 0.0
      %2741 = vmatmul.mubr.f32.gmra.mrb[0].mxu0 %v2584
      %v2742 = vpop.f32.mrb[0].mxu0
      %v2743 = vadd.f32 0.0, %v2742
      %v2744 = vpop.f32.mrb[0].mxu0
      %2745 = vdwg.mxu0
      %v2746 = vmax.f32 %v2653, %v2733
      %v2747 = vmax.f32 %v2658, %v2738
      %v2748 = vmax.f32 %v2663, %v2743
      %v2749 = vmax.f32 %v2746, 0.0
      %v2750 = vmax.f32 %v2747, 0.0
      %v2751 = vmax.f32 %v2748, 0.0
      %v2755 = vmax.f32 %v1322, %v2557
      %v2756 = vmax.f32 %v1326, %v2559
      %v2757 = vmax.f32 %v1332, %v2561
      %2761 = vrot.lane.b32.xlu0 %v2755, 120
      %v2762 = vpop.permute.xlu0 %2761
      %2763 = vrot.lane.b32.xlu0 %v2756, 120
      %v2764 = vpop.permute.xlu0 %2763
      %2765 = vrot.lane.b32.xlu0 %v2757, 120
      %v2766 = vpop.permute.xlu0 %2765
      %v2767 = vsel %vm1422, %v2762, 0
      %v2769 = vsel %vm1422, %v2764, 0
      %v2771 = vsel %vm1422, %v2766, 0
      %2773 = vmatprep.subr.mxu0 0.0
      %2774 = vmatpush1.msra.mxu0 %v1397
      %2775 = vmatprep.subr.mxu0 0.0
      %2776 = vmatpush1.msra.mxu0 %v1398
      %2777 = vmatprep.subr.mxu0 0.0
      %2778 = vmatpush1.msra.mxu0 %v1399
      %2779 = vmatprep.subr.mxu0 0.0
      %2780 = vmatpush1.msra.mxu0 0.0
      %2781 = vmatprep.subr.mxu0 0.0
      %2782 = vmatpush1.msra.mxu0 0.0
      %2783 = vmatprep.subr.mxu0 0.0
      %2784 = vmatpush1.msra.mxu0 0.0
      %2785 = vmatprep.subr.mxu0 0.0
      %2786 = vmatpush1.msra.mxu0 0.0
      %2787 = vmatprep.subr.mxu0 0.0
      %2788 = vmatpush1.msra.mxu0 0.0
      %2789 = vmatprep.subr.mxu0 0.0
      %2790 = vmatpush1.msra.mxu0 0.0
      %2791 = vmatprep.subr.mxu0 0.0
      %2792 = vmatpush1.msra.mxu0 0.0
      %2793 = vmatprep.subr.mxu0 0.0
      %2794 = vmatpush1.msra.mxu0 0.0
      %2795 = vmatprep.subr.mxu0 0.0
      %2796 = vmatpush1.msra.mxu0 0.0
      %2797 = vmatprep.subr.mxu0 0.0
      %2798 = vmatpush1.msra.mxu0 0.0
      %2799 = vmatprep.subr.mxu0 0.0
      %2800 = vmatpush1.msra.mxu0 0.0
      %2801 = vmatprep.subr.mxu0 0.0
      %2802 = vmatpush1.msra.mxu0 0.0
      %2803 = vmatprep.subr.mxu0 0.0
      %2804 = vmatpush1.msra.mxu0 0.0
      %2805 = vmatprep.subr.mxu0 0.0
      %2806 = vmatpush1.msra.mxu0 0.0
      %2807 = vmatprep.subr.mxu0 0.0
      %2808 = vmatpush1.msra.mxu0 0.0
      %2809 = vmatprep.subr.mxu0 0.0
      %2810 = vmatpush1.msra.mxu0 0.0
      %2811 = vmatprep.subr.mxu0 0.0
      %2812 = vmatpush1.msra.mxu0 0.0
      %2813 = vmatprep.subr.mxu0 0.0
      %2814 = vmatpush1.msra.mxu0 0.0
      %2815 = vmatprep.subr.mxu0 0.0
      %2816 = vmatpush1.msra.mxu0 0.0
      %2817 = vmatprep.subr.mxu0 0.0
      %2818 = vmatpush1.msra.mxu0 0.0
      %2819 = vmatprep.subr.mxu0 0.0
      %2820 = vmatpush1.msra.mxu0 0.0
      %2821 = vmatprep.subr.mxu0 0.0
      %2822 = vmatpush1.msra.mxu0 0.0
      %2823 = vmatprep.subr.mxu0 0.0
      %2824 = vmatpush1.msra.mxu0 0.0
      %2825 = vmatprep.subr.mxu0 0.0
      %2826 = vmatpush1.msra.mxu0 0.0
      %2827 = vmatprep.subr.mxu0 0.0
      %2828 = vmatpush1.msra.mxu0 0.0
      %2829 = vmatprep.subr.mxu0 0.0
      %2830 = vmatpush1.msra.mxu0 0.0
      %2831 = vmatprep.subr.mxu0 0.0
      %2832 = vmatpush1.msra.mxu0 0.0
      %2833 = vmatprep.subr.mxu0 0.0
      %2834 = vmatpush1.msra.mxu0 0.0
      %2835 = vmatprep.subr.mxu0 0.0
      %2836 = vmatpush1.msra.mxu0 0.0
      %2837 = vmatprep.mubr.f32.mxu0 0.0
      %2838 = vmatmul.mubr.f32.gmra.mrb[0].mxu0 %v2767
      %v2839 = vpop.f32.mrb[0].mxu0
      %v2840 = vadd.f32 0.0, %v2839
      %v2841 = vpop.f32.mrb[0].mxu0
      %2842 = vmatprep.mubr.f32.mxu0 0.0
      %2843 = vmatmul.mubr.f32.gmra.mrb[0].mxu0 %v2769
      %v2844 = vpop.f32.mrb[0].mxu0
      %v2845 = vadd.f32 0.0, %v2844
      %v2846 = vpop.f32.mrb[0].mxu0
      %2847 = vmatprep.mubr.f32.mxu0 0.0
      %2848 = vmatmul.mubr.f32.gmra.mrb[0].mxu0 %v2771
      %v2849 = vpop.f32.mrb[0].mxu0
      %v2850 = vadd.f32 0.0, %v2849
      %v2851 = vpop.f32.mrb[0].mxu0
      %2852 = vdwg.mxu0
      %2853 = vmatprep.subr.mxu0 0.0
      %2854 = vmatpush1.msra.mxu0 %v1404
      %2855 = vmatprep.subr.mxu0 0.0
      %2856 = vmatpush1.msra.mxu0 %v1405
      %2857 = vmatprep.subr.mxu0 0.0
      %2858 = vmatpush1.msra.mxu0 %v1406
      %2859 = vmatprep.subr.mxu0 0.0
      %2860 = vmatpush1.msra.mxu0 0.0
      %2861 = vmatprep.subr.mxu0 0.0
      %2862 = vmatpush1.msra.mxu0 0.0
      %2863 = vmatprep.subr.mxu0 0.0
      %2864 = vmatpush1.msra.mxu0 0.0
      %2865 = vmatprep.subr.mxu0 0.0
      %2866 = vmatpush1.msra.mxu0 0.0
      %2867 = vmatprep.subr.mxu0 0.0
      %2868 = vmatpush1.msra.mxu0 0.0
      %2869 = vmatprep.subr.mxu0 0.0
      %2870 = vmatpush1.msra.mxu0 0.0
      %2871 = vmatprep.subr.mxu0 0.0
      %2872 = vmatpush1.msra.mxu0 0.0
      %2873 = vmatprep.subr.mxu0 0.0
      %2874 = vmatpush1.msra.mxu0 0.0
      %2875 = vmatprep.subr.mxu0 0.0
      %2876 = vmatpush1.msra.mxu0 0.0
      %2877 = vmatprep.subr.mxu0 0.0
      %2878 = vmatpush1.msra.mxu0 0.0
      %2879 = vmatprep.subr.mxu0 0.0
      %2880 = vmatpush1.msra.mxu0 0.0
      %2881 = vmatprep.subr.mxu0 0.0
      %2882 = vmatpush1.msra.mxu0 0.0
      %2883 = vmatprep.subr.mxu0 0.0
      %2884 = vmatpush1.msra.mxu0 0.0
      %2885 = vmatprep.subr.mxu0 0.0
      %2886 = vmatpush1.msra.mxu0 0.0
      %2887 = vmatprep.subr.mxu0 0.0
      %2888 = vmatpush1.msra.mxu0 0.0
      %2889 = vmatprep.subr.mxu0 0.0
      %2890 = vmatpush1.msra.mxu0 0.0
      %2891 = vmatprep.subr.mxu0 0.0
      %2892 = vmatpush1.msra.mxu0 0.0
      %2893 = vmatprep.subr.mxu0 0.0
      %2894 = vmatpush1.msra.mxu0 0.0
      %2895 = vmatprep.subr.mxu0 0.0
      %2896 = vmatpush1.msra.mxu0 0.0
      %2897 = vmatprep.subr.mxu0 0.0
      %2898 = vmatpush1.msra.mxu0 0.0
      %2899 = vmatprep.subr.mxu0 0.0
      %2900 = vmatpush1.msra.mxu0 0.0
      %2901 = vmatprep.subr.mxu0 0.0
      %2902 = vmatpush1.msra.mxu0 0.0
      %2903 = vmatprep.subr.mxu0 0.0
      %2904 = vmatpush1.msra.mxu0 0.0
      %2905 = vmatprep.subr.mxu0 0.0
      %2906 = vmatpush1.msra.mxu0 0.0
      %2907 = vmatprep.subr.mxu0 0.0
      %2908 = vmatpush1.msra.mxu0 0.0
      %2909 = vmatprep.subr.mxu0 0.0
      %2910 = vmatpush1.msra.mxu0 0.0
      %2911 = vmatprep.subr.mxu0 0.0
      %2912 = vmatpush1.msra.mxu0 0.0
      %2913 = vmatprep.subr.mxu0 0.0
      %2914 = vmatpush1.msra.mxu0 0.0
      %2915 = vmatprep.subr.mxu0 0.0
      %2916 = vmatpush1.msra.mxu0 0.0
      %2917 = vmatprep.mubr.f32.mxu0 0.0
      %2918 = vmatmul.mubr.f32.gmra.mrb[0].mxu0 %v2767
      %v2919 = vpop.f32.mrb[0].mxu0
      %v2920 = vadd.f32 0.0, %v2919
      %v2921 = vpop.f32.mrb[0].mxu0
      %2922 = vmatprep.mubr.f32.mxu0 0.0
      %2923 = vmatmul.mubr.f32.gmra.mrb[0].mxu0 %v2769
      %v2924 = vpop.f32.mrb[0].mxu0
      %v2925 = vadd.f32 0.0, %v2924
      %v2926 = vpop.f32.mrb[0].mxu0
      %2927 = vmatprep.mubr.f32.mxu0 0.0
      %2928 = vmatmul.mubr.f32.gmra.mrb[0].mxu0 %v2771
      %v2929 = vpop.f32.mrb[0].mxu0
      %v2930 = vadd.f32 0.0, %v2929
      %v2931 = vpop.f32.mrb[0].mxu0
      %2932 = vdwg.mxu0
      %v2933 = vmax.f32 %v2840, %v2920
      %v2934 = vmax.f32 %v2845, %v2925
      %v2935 = vmax.f32 %v2850, %v2930
      %v2936 = vmax.f32 %v2933, 0.0
      %v2937 = vmax.f32 %v2934, 0.0
      %v2938 = vmax.f32 %v2935, 0.0
      %2939 = vrot.lane.b32.xlu0 %v2755, 64
      %v2940 = vpop.permute.xlu0 %2939
      %2941 = vrot.lane.b32.xlu0 %v2756, 64
      %v2942 = vpop.permute.xlu0 %2941
      %2943 = vrot.lane.b32.xlu0 %v2757, 64
      %v2944 = vpop.permute.xlu0 %2943
      %v2945 = vsel %vm1422, %v2940, 0
      %v2947 = vsel %vm1422, %v2942, 0
      %v2949 = vsel %vm1422, %v2944, 0
      %2951 = vmatprep.subr.mxu0 0.0
      %2952 = vmatpush1.msra.mxu0 %v1397
      %2953 = vmatprep.subr.mxu0 0.0
      %2954 = vmatpush1.msra.mxu0 %v1398
      %2955 = vmatprep.subr.mxu0 0.0
      %2956 = vmatpush1.msra.mxu0 %v1399
      %2957 = vmatprep.subr.mxu0 0.0
      %2958 = vmatpush1.msra.mxu0 0.0
      %2959 = vmatprep.subr.mxu0 0.0
      %2960 = vmatpush1.msra.mxu0 0.0
      %2961 = vmatprep.subr.mxu0 0.0
      %2962 = vmatpush1.msra.mxu0 0.0
      %2963 = vmatprep.subr.mxu0 0.0
      %2964 = vmatpush1.msra.mxu0 0.0
      %2965 = vmatprep.subr.mxu0 0.0
      %2966 = vmatpush1.msra.mxu0 0.0
      %2967 = vmatprep.subr.mxu0 0.0
      %2968 = vmatpush1.msra.mxu0 0.0
      %2969 = vmatprep.subr.mxu0 0.0
      %2970 = vmatpush1.msra.mxu0 0.0
      %2971 = vmatprep.subr.mxu0 0.0
      %2972 = vmatpush1.msra.mxu0 0.0
      %2973 = vmatprep.subr.mxu0 0.0
      %2974 = vmatpush1.msra.mxu0 0.0
      %2975 = vmatprep.subr.mxu0 0.0
      %2976 = vmatpush1.msra.mxu0 0.0
      %2977 = vmatprep.subr.mxu0 0.0
      %2978 = vmatpush1.msra.mxu0 0.0
      %2979 = vmatprep.subr.mxu0 0.0
      %2980 = vmatpush1.msra.mxu0 0.0
      %2981 = vmatprep.subr.mxu0 0.0
      %2982 = vmatpush1.msra.mxu0 0.0
      %2983 = vmatprep.subr.mxu0 0.0
      %2984 = vmatpush1.msra.mxu0 0.0
      %2985 = vmatprep.subr.mxu0 0.0
      %2986 = vmatpush1.msra.mxu0 0.0
      %2987 = vmatprep.subr.mxu0 0.0
      %2988 = vmatpush1.msra.mxu0 0.0
      %2989 = vmatprep.subr.mxu0 0.0
      %2990 = vmatpush1.msra.mxu0 0.0
      %2991 = vmatprep.subr.mxu0 0.0
      %2992 = vmatpush1.msra.mxu0 0.0
      %2993 = vmatprep.subr.mxu0 0.0
      %2994 = vmatpush1.msra.mxu0 0.0
      %2995 = vmatprep.subr.mxu0 0.0
      %2996 = vmatpush1.msra.mxu0 0.0
      %2997 = vmatprep.subr.mxu0 0.0
      %2998 = vmatpush1.msra.mxu0 0.0
      %2999 = vmatprep.subr.mxu0 0.0
      %3000 = vmatpush1.msra.mxu0 0.0
      %3001 = vmatprep.subr.mxu0 0.0
      %3002 = vmatpush1.msra.mxu0 0.0
      %3003 = vmatprep.subr.mxu0 0.0
      %3004 = vmatpush1.msra.mxu0 0.0
      %3005 = vmatprep.subr.mxu0 0.0
      %3006 = vmatpush1.msra.mxu0 0.0
      %3007 = vmatprep.subr.mxu0 0.0
      %3008 = vmatpush1.msra.mxu0 0.0
      %3009 = vmatprep.subr.mxu0 0.0
      %3010 = vmatpush1.msra.mxu0 0.0
      %3011 = vmatprep.subr.mxu0 0.0
      %3012 = vmatpush1.msra.mxu0 0.0
      %3013 = vmatprep.subr.mxu0 0.0
      %3014 = vmatpush1.msra.mxu0 0.0
      %3015 = vmatprep.mubr.f32.mxu0 0.0
      %3016 = vmatmul.mubr.f32.gmra.mrb[0].mxu0 %v2945
      %v3017 = vpop.f32.mrb[0].mxu0
      %v3018 = vadd.f32 0.0, %v3017
      %v3019 = vpop.f32.mrb[0].mxu0
      %3020 = vmatprep.mubr.f32.mxu0 0.0
      %3021 = vmatmul.mubr.f32.gmra.mrb[0].mxu0 %v2947
      %v3022 = vpop.f32.mrb[0].mxu0
      %v3023 = vadd.f32 0.0, %v3022
      %v3024 = vpop.f32.mrb[0].mxu0
      %3025 = vmatprep.mubr.f32.mxu0 0.0
      %3026 = vmatmul.mubr.f32.gmra.mrb[0].mxu0 %v2949
      %v3027 = vpop.f32.mrb[0].mxu0
      %v3028 = vadd.f32 0.0, %v3027
      %v3029 = vpop.f32.mrb[0].mxu0
      %3030 = vdwg.mxu0
      %3031 = vmatprep.subr.mxu0 0.0
      %3032 = vmatpush1.msra.mxu0 %v1404
      %3033 = vmatprep.subr.mxu0 0.0
      %3034 = vmatpush1.msra.mxu0 %v1405
      %3035 = vmatprep.subr.mxu0 0.0
      %3036 = vmatpush1.msra.mxu0 %v1406
      %3037 = vmatprep.subr.mxu0 0.0
      %3038 = vmatpush1.msra.mxu0 0.0
      %3039 = vmatprep.subr.mxu0 0.0
      %3040 = vmatpush1.msra.mxu0 0.0
      %3041 = vmatprep.subr.mxu0 0.0
      %3042 = vmatpush1.msra.mxu0 0.0
      %3043 = vmatprep.subr.mxu0 0.0
      %3044 = vmatpush1.msra.mxu0 0.0
      %3045 = vmatprep.subr.mxu0 0.0
      %3046 = vmatpush1.msra.mxu0 0.0
      %3047 = vmatprep.subr.mxu0 0.0
      %3048 = vmatpush1.msra.mxu0 0.0
      %3049 = vmatprep.subr.mxu0 0.0
      %3050 = vmatpush1.msra.mxu0 0.0
      %3051 = vmatprep.subr.mxu0 0.0
      %3052 = vmatpush1.msra.mxu0 0.0
      %3053 = vmatprep.subr.mxu0 0.0
      %3054 = vmatpush1.msra.mxu0 0.0
      %3055 = vmatprep.subr.mxu0 0.0
      %3056 = vmatpush1.msra.mxu0 0.0
      %3057 = vmatprep.subr.mxu0 0.0
      %3058 = vmatpush1.msra.mxu0 0.0
      %3059 = vmatprep.subr.mxu0 0.0
      %3060 = vmatpush1.msra.mxu0 0.0
      %3061 = vmatprep.subr.mxu0 0.0
      %3062 = vmatpush1.msra.mxu0 0.0
      %3063 = vmatprep.subr.mxu0 0.0
      %3064 = vmatpush1.msra.mxu0 0.0
      %3065 = vmatprep.subr.mxu0 0.0
      %3066 = vmatpush1.msra.mxu0 0.0
      %3067 = vmatprep.subr.mxu0 0.0
      %3068 = vmatpush1.msra.mxu0 0.0
      %3069 = vmatprep.subr.mxu0 0.0
      %3070 = vmatpush1.msra.mxu0 0.0
      %3071 = vmatprep.subr.mxu0 0.0
      %3072 = vmatpush1.msra.mxu0 0.0
      %3073 = vmatprep.subr.mxu0 0.0
      %3074 = vmatpush1.msra.mxu0 0.0
      %3075 = vmatprep.subr.mxu0 0.0
      %3076 = vmatpush1.msra.mxu0 0.0
      %3077 = vmatprep.subr.mxu0 0.0
      %3078 = vmatpush1.msra.mxu0 0.0
      %3079 = vmatprep.subr.mxu0 0.0
      %3080 = vmatpush1.msra.mxu0 0.0
      %3081 = vmatprep.subr.mxu0 0.0
      %3082 = vmatpush1.msra.mxu0 0.0
      %3083 = vmatprep.subr.mxu0 0.0
      %3084 = vmatpush1.msra.mxu0 0.0
      %3085 = vmatprep.subr.mxu0 0.0
      %3086 = vmatpush1.msra.mxu0 0.0
      %3087 = vmatprep.subr.mxu0 0.0
      %3088 = vmatpush1.msra.mxu0 0.0
      %3089 = vmatprep.subr.mxu0 0.0
      %3090 = vmatpush1.msra.mxu0 0.0
      %3091 = vmatprep.subr.mxu0 0.0
      %3092 = vmatpush1.msra.mxu0 0.0
      %3093 = vmatprep.subr.mxu0 0.0
      %3094 = vmatpush1.msra.mxu0 0.0
      %3095 = vmatprep.mubr.f32.mxu0 0.0
      %3096 = vmatmul.mubr.f32.gmra.mrb[0].mxu0 %v2945
      %v3097 = vpop.f32.mrb[0].mxu0
      %v3098 = vadd.f32 0.0, %v3097
      %v3099 = vpop.f32.mrb[0].mxu0
      %3100 = vmatprep.mubr.f32.mxu0 0.0
      %3101 = vmatmul.mubr.f32.gmra.mrb[0].mxu0 %v2947
      %v3102 = vpop.f32.mrb[0].mxu0
      %v3103 = vadd.f32 0.0, %v3102
      %v3104 = vpop.f32.mrb[0].mxu0
      %3105 = vmatprep.mubr.f32.mxu0 0.0
      %3106 = vmatmul.mubr.f32.gmra.mrb[0].mxu0 %v2949
      %v3107 = vpop.f32.mrb[0].mxu0
      %v3108 = vadd.f32 0.0, %v3107
      %v3109 = vpop.f32.mrb[0].mxu0
      %3110 = vdwg.mxu0
      %v3111 = vmax.f32 %v3018, %v3098
      %v3112 = vmax.f32 %v3023, %v3103
      %v3113 = vmax.f32 %v3028, %v3108
      %v3114 = vmax.f32 %v3111, 0.0
      %v3115 = vmax.f32 %v3112, 0.0
      %v3116 = vmax.f32 %v3113, 0.0
      %3120 = vrot.lane.b32.xlu0 %v1371, 100
      %v3121 = vpop.permute.xlu0 %3120
      %3122 = vrot.lane.b32.xlu0 %v1375, 100
      %v3123 = vpop.permute.xlu0 %3122
      %3124 = vrot.lane.b32.xlu0 %v1381, 100
      %v3125 = vpop.permute.xlu0 %3124
      %v3129 = vmax.f32 %v1322, %v3121
      %v3130 = vmax.f32 %v1371, %v3121
      %v3131 = vmax.f32 %v1326, %v3123
      %v3132 = vmax.f32 %v1375, %v3123
      %v3133 = vmax.f32 %v1332, %v3125
      %v3134 = vmax.f32 %v1381, %v3125
      %3141 = vrot.lane.b32.xlu0 %v3129, 8
      %v3142 = vpop.permute.xlu0 %3141
      %3143 = vrot.lane.b32.xlu0 %v3130, 8
      %v3144 = vpop.permute.xlu0 %3143
      %3145 = vrot.lane.b32.xlu0 %v3131, 8
      %v3146 = vpop.permute.xlu0 %3145
      %3147 = vrot.lane.b32.xlu0 %v3132, 8
      %v3148 = vpop.permute.xlu0 %3147
      %3149 = vrot.lane.b32.xlu0 %v3133, 8
      %v3150 = vpop.permute.xlu0 %3149
      %3151 = vrot.lane.b32.xlu0 %v3134, 8
      %v3152 = vpop.permute.xlu0 %3151
      %vm3153 = vcmask 64512
      %v3154 = vsel %vm3153, %v3142, %v3144
      %v3155 = vsel %vm3153, %v3146, %v3148
      %v3156 = vsel %vm3153, %v3150, %v3152
      %v3157 = vsel %vm1422, %v3154, 0
      %v3159 = vsel %vm1422, %v3155, 0
      %v3161 = vsel %vm1422, %v3156, 0
      %3163 = vmatprep.subr.mxu0 0.0
      %3164 = vmatpush1.msra.mxu0 %v1397
      %3165 = vmatprep.subr.mxu0 0.0
      %3166 = vmatpush1.msra.mxu0 %v1398
      %3167 = vmatprep.subr.mxu0 0.0
      %3168 = vmatpush1.msra.mxu0 %v1399
      %3169 = vmatprep.subr.mxu0 0.0
      %3170 = vmatpush1.msra.mxu0 0.0
      %3171 = vmatprep.subr.mxu0 0.0
      %3172 = vmatpush1.msra.mxu0 0.0
      %3173 = vmatprep.subr.mxu0 0.0
      %3174 = vmatpush1.msra.mxu0 0.0
      %3175 = vmatprep.subr.mxu0 0.0
      %3176 = vmatpush1.msra.mxu0 0.0
      %3177 = vmatprep.subr.mxu0 0.0
      %3178 = vmatpush1.msra.mxu0 0.0
      %3179 = vmatprep.subr.mxu0 0.0
      %3180 = vmatpush1.msra.mxu0 0.0
      %3181 = vmatprep.subr.mxu0 0.0
      %3182 = vmatpush1.msra.mxu0 0.0
      %3183 = vmatprep.subr.mxu0 0.0
      %3184 = vmatpush1.msra.mxu0 0.0
      %3185 = vmatprep.subr.mxu0 0.0
      %3186 = vmatpush1.msra.mxu0 0.0
      %3187 = vmatprep.subr.mxu0 0.0
      %3188 = vmatpush1.msra.mxu0 0.0
      %3189 = vmatprep.subr.mxu0 0.0
      %3190 = vmatpush1.msra.mxu0 0.0
      %3191 = vmatprep.subr.mxu0 0.0
      %3192 = vmatpush1.msra.mxu0 0.0
      %3193 = vmatprep.subr.mxu0 0.0
      %3194 = vmatpush1.msra.mxu0 0.0
      %3195 = vmatprep.subr.mxu0 0.0
      %3196 = vmatpush1.msra.mxu0 0.0
      %3197 = vmatprep.subr.mxu0 0.0
      %3198 = vmatpush1.msra.mxu0 0.0
      %3199 = vmatprep.subr.mxu0 0.0
      %3200 = vmatpush1.msra.mxu0 0.0
      %3201 = vmatprep.subr.mxu0 0.0
      %3202 = vmatpush1.msra.mxu0 0.0
      %3203 = vmatprep.subr.mxu0 0.0
      %3204 = vmatpush1.msra.mxu0 0.0
      %3205 = vmatprep.subr.mxu0 0.0
      %3206 = vmatpush1.msra.mxu0 0.0
      %3207 = vmatprep.subr.mxu0 0.0
      %3208 = vmatpush1.msra.mxu0 0.0
      %3209 = vmatprep.subr.mxu0 0.0
      %3210 = vmatpush1.msra.mxu0 0.0
      %3211 = vmatprep.subr.mxu0 0.0
      %3212 = vmatpush1.msra.mxu0 0.0
      %3213 = vmatprep.subr.mxu0 0.0
      %3214 = vmatpush1.msra.mxu0 0.0
      %3215 = vmatprep.subr.mxu0 0.0
      %3216 = vmatpush1.msra.mxu0 0.0
      %3217 = vmatprep.subr.mxu0 0.0
      %3218 = vmatpush1.msra.mxu0 0.0
      %3219 = vmatprep.subr.mxu0 0.0
      %3220 = vmatpush1.msra.mxu0 0.0
      %3221 = vmatprep.subr.mxu0 0.0
      %3222 = vmatpush1.msra.mxu0 0.0
      %3223 = vmatprep.subr.mxu0 0.0
      %3224 = vmatpush1.msra.mxu0 0.0
      %3225 = vmatprep.subr.mxu0 0.0
      %3226 = vmatpush1.msra.mxu0 0.0
      %3227 = vmatprep.mubr.f32.mxu0 0.0
      %3228 = vmatmul.mubr.f32.gmra.mrb[0].mxu0 %v3157
      %v3229 = vpop.f32.mrb[0].mxu0
      %v3230 = vadd.f32 0.0, %v3229
      %v3231 = vpop.f32.mrb[0].mxu0
      %3232 = vmatprep.mubr.f32.mxu0 0.0
      %3233 = vmatmul.mubr.f32.gmra.mrb[0].mxu0 %v3159
      %v3234 = vpop.f32.mrb[0].mxu0
      %v3235 = vadd.f32 0.0, %v3234
      %v3236 = vpop.f32.mrb[0].mxu0
      %3237 = vmatprep.mubr.f32.mxu0 0.0
      %3238 = vmatmul.mubr.f32.gmra.mrb[0].mxu0 %v3161
      %v3239 = vpop.f32.mrb[0].mxu0
      %v3240 = vadd.f32 0.0, %v3239
      %v3241 = vpop.f32.mrb[0].mxu0
      %3242 = vdwg.mxu0
      %3243 = vmatprep.subr.mxu0 0.0
      %3244 = vmatpush1.msra.mxu0 %v1404
      %3245 = vmatprep.subr.mxu0 0.0
      %3246 = vmatpush1.msra.mxu0 %v1405
      %3247 = vmatprep.subr.mxu0 0.0
      %3248 = vmatpush1.msra.mxu0 %v1406
      %3249 = vmatprep.subr.mxu0 0.0
      %3250 = vmatpush1.msra.mxu0 0.0
      %3251 = vmatprep.subr.mxu0 0.0
      %3252 = vmatpush1.msra.mxu0 0.0
      %3253 = vmatprep.subr.mxu0 0.0
      %3254 = vmatpush1.msra.mxu0 0.0
      %3255 = vmatprep.subr.mxu0 0.0
      %3256 = vmatpush1.msra.mxu0 0.0
      %3257 = vmatprep.subr.mxu0 0.0
      %3258 = vmatpush1.msra.mxu0 0.0
      %3259 = vmatprep.subr.mxu0 0.0
      %3260 = vmatpush1.msra.mxu0 0.0
      %3261 = vmatprep.subr.mxu0 0.0
      %3262 = vmatpush1.msra.mxu0 0.0
      %3263 = vmatprep.subr.mxu0 0.0
      %3264 = vmatpush1.msra.mxu0 0.0
      %3265 = vmatprep.subr.mxu0 0.0
      %3266 = vmatpush1.msra.mxu0 0.0
      %3267 = vmatprep.subr.mxu0 0.0
      %3268 = vmatpush1.msra.mxu0 0.0
      %3269 = vmatprep.subr.mxu0 0.0
      %3270 = vmatpush1.msra.mxu0 0.0
      %3271 = vmatprep.subr.mxu0 0.0
      %3272 = vmatpush1.msra.mxu0 0.0
      %3273 = vmatprep.subr.mxu0 0.0
      %3274 = vmatpush1.msra.mxu0 0.0
      %3275 = vmatprep.subr.mxu0 0.0
      %3276 = vmatpush1.msra.mxu0 0.0
      %3277 = vmatprep.subr.mxu0 0.0
      %3278 = vmatpush1.msra.mxu0 0.0
      %3279 = vmatprep.subr.mxu0 0.0
      %3280 = vmatpush1.msra.mxu0 0.0
      %3281 = vmatprep.subr.mxu0 0.0
      %3282 = vmatpush1.msra.mxu0 0.0
      %3283 = vmatprep.subr.mxu0 0.0
      %3284 = vmatpush1.msra.mxu0 0.0
      %3285 = vmatprep.subr.mxu0 0.0
      %3286 = vmatpush1.msra.mxu0 0.0
      %3287 = vmatprep.subr.mxu0 0.0
      %3288 = vmatpush1.msra.mxu0 0.0
      %3289 = vmatprep.subr.mxu0 0.0
      %3290 = vmatpush1.msra.mxu0 0.0
      %3291 = vmatprep.subr.mxu0 0.0
      %3292 = vmatpush1.msra.mxu0 0.0
      %3293 = vmatprep.subr.mxu0 0.0
      %3294 = vmatpush1.msra.mxu0 0.0
      %3295 = vmatprep.subr.mxu0 0.0
      %3296 = vmatpush1.msra.mxu0 0.0
      %3297 = vmatprep.subr.mxu0 0.0
      %3298 = vmatpush1.msra.mxu0 0.0
      %3299 = vmatprep.subr.mxu0 0.0
      %3300 = vmatpush1.msra.mxu0 0.0
      %3301 = vmatprep.subr.mxu0 0.0
      %3302 = vmatpush1.msra.mxu0 0.0
      %3303 = vmatprep.subr.mxu0 0.0
      %3304 = vmatpush1.msra.mxu0 0.0
      %3305 = vmatprep.subr.mxu0 0.0
      %3306 = vmatpush1.msra.mxu0 0.0
      %3307 = vmatprep.mubr.f32.mxu0 0.0
      %3308 = vmatmul.mubr.f32.gmra.mrb[0].mxu0 %v3157
      %v3309 = vpop.f32.mrb[0].mxu0
      %v3310 = vadd.f32 0.0, %v3309
      %v3311 = vpop.f32.mrb[0].mxu0
      %3312 = vmatprep.mubr.f32.mxu0 0.0
      %3313 = vmatmul.mubr.f32.gmra.mrb[0].mxu0 %v3159
      %v3314 = vpop.f32.mrb[0].mxu0
      %v3315 = vadd.f32 0.0, %v3314
      %v3316 = vpop.f32.mrb[0].mxu0
      %3317 = vmatprep.mubr.f32.mxu0 0.0
      %3318 = vmatmul.mubr.f32.gmra.mrb[0].mxu0 %v3161
      %v3319 = vpop.f32.mrb[0].mxu0
      %v3320 = vadd.f32 0.0, %v3319
      %v3321 = vpop.f32.mrb[0].mxu0
      %3322 = vdwg.mxu0
      %v3323 = vmax.f32 %v3230, %v3310
      %v3324 = vmax.f32 %v3235, %v3315
      %v3325 = vmax.f32 %v3240, %v3320
      %v3326 = vmax.f32 %v3323, 0.0
      %v3327 = vmax.f32 %v3324, 0.0
      %v3328 = vmax.f32 %v3325, 0.0
      %3329 = vrot.lane.b32.xlu0 %v3130, 80
      %v3330 = vpop.permute.xlu0 %3329
      %3331 = vrot.lane.b32.xlu0 %v3132, 80
      %v3332 = vpop.permute.xlu0 %3331
      %3333 = vrot.lane.b32.xlu0 %v3134, 80
      %v3334 = vpop.permute.xlu0 %3333
      %v3335 = vsel %vm1422, %v3330, 0
      %v3337 = vsel %vm1422, %v3332, 0
      %v3339 = vsel %vm1422, %v3334, 0
      %3341 = vmatprep.subr.mxu0 0.0
      %3342 = vmatpush1.msra.mxu0 %v1397
      %3343 = vmatprep.subr.mxu0 0.0
      %3344 = vmatpush1.msra.mxu0 %v1398
      %3345 = vmatprep.subr.mxu0 0.0
      %3346 = vmatpush1.msra.mxu0 %v1399
      %3347 = vmatprep.subr.mxu0 0.0
      %3348 = vmatpush1.msra.mxu0 0.0
      %3349 = vmatprep.subr.mxu0 0.0
      %3350 = vmatpush1.msra.mxu0 0.0
      %3351 = vmatprep.subr.mxu0 0.0
      %3352 = vmatpush1.msra.mxu0 0.0
      %3353 = vmatprep.subr.mxu0 0.0
      %3354 = vmatpush1.msra.mxu0 0.0
      %3355 = vmatprep.subr.mxu0 0.0
      %3356 = vmatpush1.msra.mxu0 0.0
      %3357 = vmatprep.subr.mxu0 0.0
      %3358 = vmatpush1.msra.mxu0 0.0
      %3359 = vmatprep.subr.mxu0 0.0
      %3360 = vmatpush1.msra.mxu0 0.0
      %3361 = vmatprep.subr.mxu0 0.0
      %3362 = vmatpush1.msra.mxu0 0.0
      %3363 = vmatprep.subr.mxu0 0.0
      %3364 = vmatpush1.msra.mxu0 0.0
      %3365 = vmatprep.subr.mxu0 0.0
      %3366 = vmatpush1.msra.mxu0 0.0
      %3367 = vmatprep.subr.mxu0 0.0
      %3368 = vmatpush1.msra.mxu0 0.0
      %3369 = vmatprep.subr.mxu0 0.0
      %3370 = vmatpush1.msra.mxu0 0.0
      %3371 = vmatprep.subr.mxu0 0.0
      %3372 = vmatpush1.msra.mxu0 0.0
      %3373 = vmatprep.subr.mxu0 0.0
      %3374 = vmatpush1.msra.mxu0 0.0
      %3375 = vmatprep.subr.mxu0 0.0
      %3376 = vmatpush1.msra.mxu0 0.0
      %3377 = vmatprep.subr.mxu0 0.0
      %3378 = vmatpush1.msra.mxu0 0.0
      %3379 = vmatprep.subr.mxu0 0.0
      %3380 = vmatpush1.msra.mxu0 0.0
      %3381 = vmatprep.subr.mxu0 0.0
      %3382 = vmatpush1.msra.mxu0 0.0
      %3383 = vmatprep.subr.mxu0 0.0
      %3384 = vmatpush1.msra.mxu0 0.0
      %3385 = vmatprep.subr.mxu0 0.0
      %3386 = vmatpush1.msra.mxu0 0.0
      %3387 = vmatprep.subr.mxu0 0.0
      %3388 = vmatpush1.msra.mxu0 0.0
      %3389 = vmatprep.subr.mxu0 0.0
      %3390 = vmatpush1.msra.mxu0 0.0
      %3391 = vmatprep.subr.mxu0 0.0
      %3392 = vmatpush1.msra.mxu0 0.0
      %3393 = vmatprep.subr.mxu0 0.0
      %3394 = vmatpush1.msra.mxu0 0.0
      %3395 = vmatprep.subr.mxu0 0.0
      %3396 = vmatpush1.msra.mxu0 0.0
      %3397 = vmatprep.subr.mxu0 0.0
      %3398 = vmatpush1.msra.mxu0 0.0
      %3399 = vmatprep.subr.mxu0 0.0
      %3400 = vmatpush1.msra.mxu0 0.0
      %3401 = vmatprep.subr.mxu0 0.0
      %3402 = vmatpush1.msra.mxu0 0.0
      %3403 = vmatprep.subr.mxu0 0.0
      %3404 = vmatpush1.msra.mxu0 0.0
      %3405 = vmatprep.mubr.f32.mxu0 0.0
      %3406 = vmatmul.mubr.f32.gmra.mrb[0].mxu0 %v3335
      %v3407 = vpop.f32.mrb[0].mxu0
      %v3408 = vadd.f32 0.0, %v3407
      %v3409 = vpop.f32.mrb[0].mxu0
      %3410 = vmatprep.mubr.f32.mxu0 0.0
      %3411 = vmatmul.mubr.f32.gmra.mrb[0].mxu0 %v3337
      %v3412 = vpop.f32.mrb[0].mxu0
      %v3413 = vadd.f32 0.0, %v3412
      %v3414 = vpop.f32.mrb[0].mxu0
      %3415 = vmatprep.mubr.f32.mxu0 0.0
      %3416 = vmatmul.mubr.f32.gmra.mrb[0].mxu0 %v3339
      %v3417 = vpop.f32.mrb[0].mxu0
      %v3418 = vadd.f32 0.0, %v3417
      %v3419 = vpop.f32.mrb[0].mxu0
      %3420 = vdwg.mxu0
      %3421 = vmatprep.subr.mxu0 0.0
      %3422 = vmatpush1.msra.mxu0 %v1404
      %3423 = vmatprep.subr.mxu0 0.0
      %3424 = vmatpush1.msra.mxu0 %v1405
      %3425 = vmatprep.subr.mxu0 0.0
      %3426 = vmatpush1.msra.mxu0 %v1406
      %3427 = vmatprep.subr.mxu0 0.0
      %3428 = vmatpush1.msra.mxu0 0.0
      %3429 = vmatprep.subr.mxu0 0.0
      %3430 = vmatpush1.msra.mxu0 0.0
      %3431 = vmatprep.subr.mxu0 0.0
      %3432 = vmatpush1.msra.mxu0 0.0
      %3433 = vmatprep.subr.mxu0 0.0
      %3434 = vmatpush1.msra.mxu0 0.0
      %3435 = vmatprep.subr.mxu0 0.0
      %3436 = vmatpush1.msra.mxu0 0.0
      %3437 = vmatprep.subr.mxu0 0.0
      %3438 = vmatpush1.msra.mxu0 0.0
      %3439 = vmatprep.subr.mxu0 0.0
      %3440 = vmatpush1.msra.mxu0 0.0
      %3441 = vmatprep.subr.mxu0 0.0
      %3442 = vmatpush1.msra.mxu0 0.0
      %3443 = vmatprep.subr.mxu0 0.0
      %3444 = vmatpush1.msra.mxu0 0.0
      %3445 = vmatprep.subr.mxu0 0.0
      %3446 = vmatpush1.msra.mxu0 0.0
      %3447 = vmatprep.subr.mxu0 0.0
      %3448 = vmatpush1.msra.mxu0 0.0
      %3449 = vmatprep.subr.mxu0 0.0
      %3450 = vmatpush1.msra.mxu0 0.0
      %3451 = vmatprep.subr.mxu0 0.0
      %3452 = vmatpush1.msra.mxu0 0.0
      %3453 = vmatprep.subr.mxu0 0.0
      %3454 = vmatpush1.msra.mxu0 0.0
      %3455 = vmatprep.subr.mxu0 0.0
      %3456 = vmatpush1.msra.mxu0 0.0
      %3457 = vmatprep.subr.mxu0 0.0
      %3458 = vmatpush1.msra.mxu0 0.0
      %3459 = vmatprep.subr.mxu0 0.0
      %3460 = vmatpush1.msra.mxu0 0.0
      %3461 = vmatprep.subr.mxu0 0.0
      %3462 = vmatpush1.msra.mxu0 0.0
      %3463 = vmatprep.subr.mxu0 0.0
      %3464 = vmatpush1.msra.mxu0 0.0
      %3465 = vmatprep.subr.mxu0 0.0
      %3466 = vmatpush1.msra.mxu0 0.0
      %3467 = vmatprep.subr.mxu0 0.0
      %3468 = vmatpush1.msra.mxu0 0.0
      %3469 = vmatprep.subr.mxu0 0.0
      %3470 = vmatpush1.msra.mxu0 0.0
      %3471 = vmatprep.subr.mxu0 0.0
      %3472 = vmatpush1.msra.mxu0 0.0
      %3473 = vmatprep.subr.mxu0 0.0
      %3474 = vmatpush1.msra.mxu0 0.0
      %3475 = vmatprep.subr.mxu0 0.0
      %3476 = vmatpush1.msra.mxu0 0.0
      %3477 = vmatprep.subr.mxu0 0.0
      %3478 = vmatpush1.msra.mxu0 0.0
      %3479 = vmatprep.subr.mxu0 0.0
      %3480 = vmatpush1.msra.mxu0 0.0
      %3481 = vmatprep.subr.mxu0 0.0
      %3482 = vmatpush1.msra.mxu0 0.0
      %3483 = vmatprep.subr.mxu0 0.0
      %3484 = vmatpush1.msra.mxu0 0.0
      %3485 = vmatprep.mubr.f32.mxu0 0.0
      %3486 = vmatmul.mubr.f32.gmra.mrb[0].mxu0 %v3335
      %v3487 = vpop.f32.mrb[0].mxu0
      %v3488 = vadd.f32 0.0, %v3487
      %v3489 = vpop.f32.mrb[0].mxu0
      %3490 = vmatprep.mubr.f32.mxu0 0.0
      %3491 = vmatmul.mubr.f32.gmra.mrb[0].mxu0 %v3337
      %v3492 = vpop.f32.mrb[0].mxu0
      %v3493 = vadd.f32 0.0, %v3492
      %v3494 = vpop.f32.mrb[0].mxu0
      %3495 = vmatprep.mubr.f32.mxu0 0.0
      %3496 = vmatmul.mubr.f32.gmra.mrb[0].mxu0 %v3339
      %v3497 = vpop.f32.mrb[0].mxu0
      %v3498 = vadd.f32 0.0, %v3497
      %v3499 = vpop.f32.mrb[0].mxu0
      %3500 = vdwg.mxu0
      %v3501 = vmax.f32 %v3408, %v3488
      %v3502 = vmax.f32 %v3413, %v3493
      %v3503 = vmax.f32 %v3418, %v3498
      %v3504 = vmax.f32 %v3501, 0.0
      %v3505 = vmax.f32 %v3502, 0.0
      %v3506 = vmax.f32 %v3503, 0.0
      %3510 = vrot.lane.b32.xlu0 %v1373, 100
      %v3511 = vpop.permute.xlu0 %3510
      %3512 = vrot.lane.b32.xlu0 %v1377, 100
      %v3513 = vpop.permute.xlu0 %3512
      %3514 = vrot.lane.b32.xlu0 %v1383, 100
      %v3515 = vpop.permute.xlu0 %3514
      %v3519 = vmax.f32 %v1371, %v3511
      %v3520 = vmax.f32 %v1375, %v3513
      %v3521 = vmax.f32 %v1381, %v3515
      %3525 = vrot.lane.b32.xlu0 %v3519, 24
      %v3526 = vpop.permute.xlu0 %3525
      %3527 = vrot.lane.b32.xlu0 %v3520, 24
      %v3528 = vpop.permute.xlu0 %3527
      %3529 = vrot.lane.b32.xlu0 %v3521, 24
      %v3530 = vpop.permute.xlu0 %3529
      %v3531 = vsel %vm1422, %v3526, 0
      %v3533 = vsel %vm1422, %v3528, 0
      %v3535 = vsel %vm1422, %v3530, 0
      %3537 = vmatprep.subr.mxu0 0.0
      %3538 = vmatpush1.msra.mxu0 %v1397
      %3539 = vmatprep.subr.mxu0 0.0
      %3540 = vmatpush1.msra.mxu0 %v1398
      %3541 = vmatprep.subr.mxu0 0.0
      %3542 = vmatpush1.msra.mxu0 %v1399
      %3543 = vmatprep.subr.mxu0 0.0
      %3544 = vmatpush1.msra.mxu0 0.0
      %3545 = vmatprep.subr.mxu0 0.0
      %3546 = vmatpush1.msra.mxu0 0.0
      %3547 = vmatprep.subr.mxu0 0.0
      %3548 = vmatpush1.msra.mxu0 0.0
      %3549 = vmatprep.subr.mxu0 0.0
      %3550 = vmatpush1.msra.mxu0 0.0
      %3551 = vmatprep.subr.mxu0 0.0
      %3552 = vmatpush1.msra.mxu0 0.0
      %3553 = vmatprep.subr.mxu0 0.0
      %3554 = vmatpush1.msra.mxu0 0.0
      %3555 = vmatprep.subr.mxu0 0.0
      %3556 = vmatpush1.msra.mxu0 0.0
      %3557 = vmatprep.subr.mxu0 0.0
      %3558 = vmatpush1.msra.mxu0 0.0
      %3559 = vmatprep.subr.mxu0 0.0
      %3560 = vmatpush1.msra.mxu0 0.0
      %3561 = vmatprep.subr.mxu0 0.0
      %3562 = vmatpush1.msra.mxu0 0.0
      %3563 = vmatprep.subr.mxu0 0.0
      %3564 = vmatpush1.msra.mxu0 0.0
      %3565 = vmatprep.subr.mxu0 0.0
      %3566 = vmatpush1.msra.mxu0 0.0
      %3567 = vmatprep.subr.mxu0 0.0
      %3568 = vmatpush1.msra.mxu0 0.0
      %3569 = vmatprep.subr.mxu0 0.0
      %3570 = vmatpush1.msra.mxu0 0.0
      %3571 = vmatprep.subr.mxu0 0.0
      %3572 = vmatpush1.msra.mxu0 0.0
      %3573 = vmatprep.subr.mxu0 0.0
      %3574 = vmatpush1.msra.mxu0 0.0
      %3575 = vmatprep.subr.mxu0 0.0
      %3576 = vmatpush1.msra.mxu0 0.0
      %3577 = vmatprep.subr.mxu0 0.0
      %3578 = vmatpush1.msra.mxu0 0.0
      %3579 = vmatprep.subr.mxu0 0.0
      %3580 = vmatpush1.msra.mxu0 0.0
      %3581 = vmatprep.subr.mxu0 0.0
      %3582 = vmatpush1.msra.mxu0 0.0
      %3583 = vmatprep.subr.mxu0 0.0
      %3584 = vmatpush1.msra.mxu0 0.0
      %3585 = vmatprep.subr.mxu0 0.0
      %3586 = vmatpush1.msra.mxu0 0.0
      %3587 = vmatprep.subr.mxu0 0.0
      %3588 = vmatpush1.msra.mxu0 0.0
      %3589 = vmatprep.subr.mxu0 0.0
      %3590 = vmatpush1.msra.mxu0 0.0
      %3591 = vmatprep.subr.mxu0 0.0
      %3592 = vmatpush1.msra.mxu0 0.0
      %3593 = vmatprep.subr.mxu0 0.0
      %3594 = vmatpush1.msra.mxu0 0.0
      %3595 = vmatprep.subr.mxu0 0.0
      %3596 = vmatpush1.msra.mxu0 0.0
      %3597 = vmatprep.subr.mxu0 0.0
      %3598 = vmatpush1.msra.mxu0 0.0
      %3599 = vmatprep.subr.mxu0 0.0
      %3600 = vmatpush1.msra.mxu0 0.0
      %3601 = vmatprep.mubr.f32.mxu0 0.0
      %3602 = vmatmul.mubr.f32.gmra.mrb[0].mxu0 %v3531
      %v3603 = vpop.f32.mrb[0].mxu0
      %v3604 = vadd.f32 0.0, %v3603
      %v3605 = vpop.f32.mrb[0].mxu0
      %3606 = vmatprep.mubr.f32.mxu0 0.0
      %3607 = vmatmul.mubr.f32.gmra.mrb[0].mxu0 %v3533
      %v3608 = vpop.f32.mrb[0].mxu0
      %v3609 = vadd.f32 0.0, %v3608
      %v3610 = vpop.f32.mrb[0].mxu0
      %3611 = vmatprep.mubr.f32.mxu0 0.0
      %3612 = vmatmul.mubr.f32.gmra.mrb[0].mxu0 %v3535
      %v3613 = vpop.f32.mrb[0].mxu0
      %v3614 = vadd.f32 0.0, %v3613
      %v3615 = vpop.f32.mrb[0].mxu0
      %3616 = vdwg.mxu0
      %3617 = vmatprep.subr.mxu0 0.0
      %3618 = vmatpush1.msra.mxu0 %v1404
      %3619 = vmatprep.subr.mxu0 0.0
      %3620 = vmatpush1.msra.mxu0 %v1405
      %3621 = vmatprep.subr.mxu0 0.0
      %3622 = vmatpush1.msra.mxu0 %v1406
      %3623 = vmatprep.subr.mxu0 0.0
      %3624 = vmatpush1.msra.mxu0 0.0
      %3625 = vmatprep.subr.mxu0 0.0
      %3626 = vmatpush1.msra.mxu0 0.0
      %3627 = vmatprep.subr.mxu0 0.0
      %3628 = vmatpush1.msra.mxu0 0.0
      %3629 = vmatprep.subr.mxu0 0.0
      %3630 = vmatpush1.msra.mxu0 0.0
      %3631 = vmatprep.subr.mxu0 0.0
      %3632 = vmatpush1.msra.mxu0 0.0
      %3633 = vmatprep.subr.mxu0 0.0
      %3634 = vmatpush1.msra.mxu0 0.0
      %3635 = vmatprep.subr.mxu0 0.0
      %3636 = vmatpush1.msra.mxu0 0.0
      %3637 = vmatprep.subr.mxu0 0.0
      %3638 = vmatpush1.msra.mxu0 0.0
      %3639 = vmatprep.subr.mxu0 0.0
      %3640 = vmatpush1.msra.mxu0 0.0
      %3641 = vmatprep.subr.mxu0 0.0
      %3642 = vmatpush1.msra.mxu0 0.0
      %3643 = vmatprep.subr.mxu0 0.0
      %3644 = vmatpush1.msra.mxu0 0.0
      %3645 = vmatprep.subr.mxu0 0.0
      %3646 = vmatpush1.msra.mxu0 0.0
      %3647 = vmatprep.subr.mxu0 0.0
      %3648 = vmatpush1.msra.mxu0 0.0
      %3649 = vmatprep.subr.mxu0 0.0
      %3650 = vmatpush1.msra.mxu0 0.0
      %3651 = vmatprep.subr.mxu0 0.0
      %3652 = vmatpush1.msra.mxu0 0.0
      %3653 = vmatprep.subr.mxu0 0.0
      %3654 = vmatpush1.msra.mxu0 0.0
      %3655 = vmatprep.subr.mxu0 0.0
      %3656 = vmatpush1.msra.mxu0 0.0
      %3657 = vmatprep.subr.mxu0 0.0
      %3658 = vmatpush1.msra.mxu0 0.0
      %3659 = vmatprep.subr.mxu0 0.0
      %3660 = vmatpush1.msra.mxu0 0.0
      %3661 = vmatprep.subr.mxu0 0.0
      %3662 = vmatpush1.msra.mxu0 0.0
      %3663 = vmatprep.subr.mxu0 0.0
      %3664 = vmatpush1.msra.mxu0 0.0
      %3665 = vmatprep.subr.mxu0 0.0
      %3666 = vmatpush1.msra.mxu0 0.0
      %3667 = vmatprep.subr.mxu0 0.0
      %3668 = vmatpush1.msra.mxu0 0.0
      %3669 = vmatprep.subr.mxu0 0.0
      %3670 = vmatpush1.msra.mxu0 0.0
      %3671 = vmatprep.subr.mxu0 0.0
      %3672 = vmatpush1.msra.mxu0 0.0
      %3673 = vmatprep.subr.mxu0 0.0
      %3674 = vmatpush1.msra.mxu0 0.0
      %3675 = vmatprep.subr.mxu0 0.0
      %3676 = vmatpush1.msra.mxu0 0.0
      %3677 = vmatprep.subr.mxu0 0.0
      %3678 = vmatpush1.msra.mxu0 0.0
      %3679 = vmatprep.subr.mxu0 0.0
      %3680 = vmatpush1.msra.mxu0 0.0
      %3681 = vmatprep.mubr.f32.mxu0 0.0
      %3682 = vmatmul.mubr.f32.gmra.mrb[0].mxu0 %v3531
      %v3683 = vpop.f32.mrb[0].mxu0
      %v3684 = vadd.f32 0.0, %v3683
      %v3685 = vpop.f32.mrb[0].mxu0
      %3686 = vmatprep.mubr.f32.mxu0 0.0
      %3687 = vmatmul.mubr.f32.gmra.mrb[0].mxu0 %v3533
      %v3688 = vpop.f32.mrb[0].mxu0
      %v3689 = vadd.f32 0.0, %v3688
      %v3690 = vpop.f32.mrb[0].mxu0
      %3691 = vmatprep.mubr.f32.mxu0 0.0
      %3692 = vmatmul.mubr.f32.gmra.mrb[0].mxu0 %v3535
      %v3693 = vpop.f32.mrb[0].mxu0
      %v3694 = vadd.f32 0.0, %v3693
      %v3695 = vpop.f32.mrb[0].mxu0
      %3696 = vdwg.mxu0
      %v3697 = vmax.f32 %v3604, %v3684
      %v3698 = vmax.f32 %v3609, %v3689
      %v3699 = vmax.f32 %v3614, %v3694
      %v3700 = vmax.f32 %v3697, 0.0
      %v3701 = vmax.f32 %v3698, 0.0
      %v3702 = vmax.f32 %v3699, 0.0
      %3706 = vrot.lane.b32.xlu0 %v1773, 12
      %v3707 = vpop.permute.xlu0 %3706
      %3708 = vrot.lane.b32.xlu0 %v1774, 12
      %v3709 = vpop.permute.xlu0 %3708
      %3710 = vrot.lane.b32.xlu0 %v1775, 12
      %v3711 = vpop.permute.xlu0 %3710
      %3718 = vrot.lane.b32.xlu0 %v1985, 24
      %v3719 = vpop.permute.xlu0 %3718
      %3720 = vrot.lane.b32.xlu0 %v1986, 24
      %v3721 = vpop.permute.xlu0 %3720
      %3722 = vrot.lane.b32.xlu0 %v1987, 24
      %v3723 = vpop.permute.xlu0 %3722
      %3730 = vrot.lane.b32.xlu0 %v2163, 36
      %v3731 = vpop.permute.xlu0 %3730
      %3732 = vrot.lane.b32.xlu0 %v2164, 36
      %v3733 = vpop.permute.xlu0 %3732
      %3734 = vrot.lane.b32.xlu0 %v2165, 36
      %v3735 = vpop.permute.xlu0 %3734
      %3742 = vrot.lane.b32.xlu0 %v2363, 48
      %v3743 = vpop.permute.xlu0 %3742
      %3744 = vrot.lane.b32.xlu0 %v2364, 48
      %v3745 = vpop.permute.xlu0 %3744
      %3746 = vrot.lane.b32.xlu0 %v2365, 48
      %v3747 = vpop.permute.xlu0 %3746
      %3754 = vrot.lane.b32.xlu0 %v2550, 60
      %v3755 = vpop.permute.xlu0 %3754
      %3756 = vrot.lane.b32.xlu0 %v2551, 60
      %v3757 = vpop.permute.xlu0 %3756
      %3758 = vrot.lane.b32.xlu0 %v2552, 60
      %v3759 = vpop.permute.xlu0 %3758
      %3766 = vrot.lane.b32.xlu0 %v2749, 72
      %v3767 = vpop.permute.xlu0 %3766
      %3768 = vrot.lane.b32.xlu0 %v2750, 72
      %v3769 = vpop.permute.xlu0 %3768
      %3770 = vrot.lane.b32.xlu0 %v2751, 72
      %v3771 = vpop.permute.xlu0 %3770
      %3778 = vrot.lane.b32.xlu0 %v2936, 84
      %v3779 = vpop.permute.xlu0 %3778
      %3780 = vrot.lane.b32.xlu0 %v2937, 84
      %v3781 = vpop.permute.xlu0 %3780
      %3782 = vrot.lane.b32.xlu0 %v2938, 84
      %v3783 = vpop.permute.xlu0 %3782
      %3790 = vrot.lane.b32.xlu0 %v3114, 96
      %v3791 = vpop.permute.xlu0 %3790
      %3792 = vrot.lane.b32.xlu0 %v3115, 96
      %v3793 = vpop.permute.xlu0 %3792
      %3794 = vrot.lane.b32.xlu0 %v3116, 96
      %v3795 = vpop.permute.xlu0 %3794
      %3802 = vrot.lane.b32.xlu0 %v3326, 108
      %v3803 = vpop.permute.xlu0 %3802
      %3804 = vrot.lane.b32.xlu0 %v3327, 108
      %v3805 = vpop.permute.xlu0 %3804
      %3806 = vrot.lane.b32.xlu0 %v3328, 108
      %v3807 = vpop.permute.xlu0 %3806
      %3814 = vrot.lane.b32.xlu0 %v3504, 120
      %v3815 = vpop.permute.xlu0 %3814
      %3816 = vrot.lane.b32.xlu0 %v3505, 120
      %v3817 = vpop.permute.xlu0 %3816
      %3818 = vrot.lane.b32.xlu0 %v3506, 120
      %v3819 = vpop.permute.xlu0 %3818
      %3826 = vrot.lane.b32.xlu0 %v3700, 4
      %v3827 = vpop.permute.xlu0 %3826
      %3828 = vrot.lane.b32.xlu0 %v3701, 4
      %v3829 = vpop.permute.xlu0 %3828
      %3830 = vrot.lane.b32.xlu0 %v3702, 4
      %v3831 = vpop.permute.xlu0 %3830
      %vm3835 = vcmask 97280
      %v3836 = vsel %vm3835, %v1595, %v3707
      %v3837 = vsel %vm3835, %v1596, %v3709
      %v3838 = vsel %vm3835, %v1597, %v3711
      %v3839 = vsel %vm1422, %v3836, %v3719
      %v3840 = vsel %vm1422, %v3837, %v3721
      %v3841 = vsel %vm1422, %v3838, %v3723
      %vm3842 = vcmask 293888
      %v3843 = vsel %vm3842, %v3839, %v3731
      %v3844 = vsel %vm3842, %v3840, %v3733
      %v3845 = vsel %vm3842, %v3841, %v3735
      %vm3846 = vcmask 392192
      %v3847 = vsel %vm3846, %v3843, %v3743
      %v3848 = vsel %vm3846, %v3844, %v3745
      %v3849 = vsel %vm3846, %v3845, %v3747
      %vm3850 = vcmask 490496
      %v3851 = vsel %vm3850, %v3847, %v3755
      %v3852 = vsel %vm3850, %v3848, %v3757
      %v3853 = vsel %vm3850, %v3849, %v3759
      %vm3854 = vcmask 588800
      %v3855 = vsel %vm3854, %v3851, %v3767
      %v3856 = vsel %vm3854, %v3852, %v3769
      %v3857 = vsel %vm3854, %v3853, %v3771
      %vm3858 = vcmask 687104
      %v3859 = vsel %vm3858, %v3855, %v3779
      %v3860 = vsel %vm3858, %v3856, %v3781
      %v3861 = vsel %vm3858, %v3857, %v3783
      %vm3862 = vcmask 785408
      %v3863 = vsel %vm3862, %v3859, %v3791
      %v3864 = vsel %vm3862, %v3860, %v3793
      %v3865 = vsel %vm3862, %v3861, %v3795
      %vm3866 = vcmask 883712
      %v3867 = vsel %vm3866, %v3863, %v3803
      %v3868 = vsel %vm3866, %v3864, %v3805
      %v3869 = vsel %vm3866, %v3865, %v3807
      %vm3870 = vcmask 982016
      %v3871 = vsel %vm3870, %v3867, %v3815
      %v3872 = vsel %vm3870, %v3868, %v3817
      %v3873 = vsel %vm3870, %v3869, %v3819
      %vm3874 = vcmask 31744
      %v3875 = vsel %vm3874, %v3815, %v3827
      %v3876 = vsel %vm3874, %v3817, %v3829
      %v3877 = vsel %vm3874, %v3819, %v3831
      %v3878 = vpack.c.bf16 %v3872, %v3871
      %v3879 = vpack.c.bf16 %v3876, %v3875
      %v3880 = vpack.c.bf16 %v3873, %v3873
      %v3881 = vpack.c.bf16 %v3877, %v3877
      %v3884 = vrot.slane %v3878, 6
      %v3885 = vrot.slane %v3880, 6
      %v3886 = vsel %vm835, %v3884, %v3885
      %3887 = vrot.lane.b32.xlu0 %v3884, 127
      %v3888 = vpop.permute.xlu0 %3887
      %3889 = vrot.lane.b32.xlu0 %v3886, 127
      %v3890 = vpop.permute.xlu0 %3889
      %v3891 = vrot.slane %v3878, 4
      %v3892 = vrot.slane %v3880, 4
      %v3893 = vsel %vm903, %v3891, %v3892
      %3894 = vrot.lane.b32.xlu0 %v3891, 126
      %v3895 = vpop.permute.xlu0 %3894
      %3896 = vrot.lane.b32.xlu0 %v3893, 126
      %v3897 = vpop.permute.xlu0 %3896
      %v3898 = vrot.slane %v3878, 2
      %v3899 = vrot.slane %v3880, 2
      %v3900 = vsel %vm971, %v3898, %v3899
      %3901 = vrot.lane.b32.xlu0 %v3898, 125
      %v3902 = vpop.permute.xlu0 %3901
      %3903 = vrot.lane.b32.xlu0 %v3900, 125
      %v3904 = vpop.permute.xlu0 %3903
      %3906 = vrot.lane.b32.xlu0 %v3878, 124
      %v3907 = vpop.permute.xlu0 %3906
      %3908 = vrot.lane.b32.xlu0 %v3880, 124
      %v3909 = vpop.permute.xlu0 %3908
      %3911 = vrot.lane.b32.xlu0 %v3884, 116
      %v3912 = vpop.permute.xlu0 %3911
      %3913 = vrot.lane.b32.xlu0 %v3886, 116
      %v3914 = vpop.permute.xlu0 %3913
      %3915 = vrot.lane.b32.xlu0 %v3891, 115
      %v3916 = vpop.permute.xlu0 %3915
      %3917 = vrot.lane.b32.xlu0 %v3893, 115
      %v3918 = vpop.permute.xlu0 %3917
      %3919 = vrot.lane.b32.xlu0 %v3898, 114
      %v3920 = vpop.permute.xlu0 %3919
      %3921 = vrot.lane.b32.xlu0 %v3900, 114
      %v3922 = vpop.permute.xlu0 %3921
      %3924 = vrot.lane.b32.xlu0 %v3878, 113
      %v3925 = vpop.permute.xlu0 %3924
      %3926 = vrot.lane.b32.xlu0 %v3880, 113
      %v3927 = vpop.permute.xlu0 %3926
      %3929 = vrot.lane.b32.xlu0 %v3884, 112
      %v3930 = vpop.permute.xlu0 %3929
      %3931 = vrot.lane.b32.xlu0 %v3886, 112
      %v3932 = vpop.permute.xlu0 %3931
      %3933 = vrot.lane.b32.xlu0 %v3891, 104
      %v3934 = vpop.permute.xlu0 %3933
      %3935 = vrot.lane.b32.xlu0 %v3893, 104
      %v3936 = vpop.permute.xlu0 %3935
      %3937 = vrot.lane.b32.xlu0 %v3898, 103
      %v3938 = vpop.permute.xlu0 %3937
      %3939 = vrot.lane.b32.xlu0 %v3900, 103
      %v3940 = vpop.permute.xlu0 %3939
      %3942 = vrot.lane.b32.xlu0 %v3878, 102
      %v3943 = vpop.permute.xlu0 %3942
      %3944 = vrot.lane.b32.xlu0 %v3880, 102
      %v3945 = vpop.permute.xlu0 %3944
      %3947 = vrot.lane.b32.xlu0 %v3884, 101
      %v3948 = vpop.permute.xlu0 %3947
      %3949 = vrot.lane.b32.xlu0 %v3886, 101
      %v3950 = vpop.permute.xlu0 %3949
      %3951 = vrot.lane.b32.xlu0 %v3891, 100
      %v3952 = vpop.permute.xlu0 %3951
      %3953 = vrot.lane.b32.xlu0 %v3893, 100
      %v3954 = vpop.permute.xlu0 %3953
      %3955 = vrot.lane.b32.xlu0 %v3898, 92
      %v3956 = vpop.permute.xlu0 %3955
      %3957 = vrot.lane.b32.xlu0 %v3900, 92
      %v3958 = vpop.permute.xlu0 %3957
      %v3962 = vsel %vm844, %v3880, %v3888
      %v3966 = vsel %vm912, %v3890, %v3895
      %v3970 = vsel %vm980, %v3897, %v3902
      %v3974 = vsel %vm844, %v3909, %v3912
      %v3978 = vsel %vm912, %v3914, %v3916
      %v3982 = vsel %vm980, %v3918, %v3920
      %v3986 = vsel %vm844, %v3927, %v3930
      %v3990 = vsel %vm912, %v3932, %v3934
      %v3994 = vsel %vm980, %v3936, %v3938
      %v3998 = vsel %vm844, %v3945, %v3948
      %v4002 = vsel %vm912, %v3950, %v3952
      %v4006 = vsel %vm980, %v3954, %v3956
      %v4010 = vrot.slane %v3879, 6
      %v4011 = vrot.slane %v3881, 6
      %v4012 = vsel %vm835, %v4010, %v4011
      %4013 = vrot.lane.b32.xlu0 %v4010, 127
      %v4014 = vpop.permute.xlu0 %4013
      %4015 = vrot.lane.b32.xlu0 %v4012, 127
      %v4016 = vpop.permute.xlu0 %4015
      %v4017 = vsel %vm405, %v3888, %v4014
      %v4018 = vsel %vm405, %v3890, %v4016
      %v4019 = vrot.slane %v3879, 4
      %v4020 = vrot.slane %v3881, 4
      %v4021 = vsel %vm903, %v4019, %v4020
      %4022 = vrot.lane.b32.xlu0 %v4019, 126
      %v4023 = vpop.permute.xlu0 %4022
      %4024 = vrot.lane.b32.xlu0 %v4021, 126
      %v4025 = vpop.permute.xlu0 %4024
      %v4026 = vsel %vm441, %v3895, %v4023
      %v4027 = vsel %vm441, %v3897, %v4025
      %v4028 = vrot.slane %v3879, 2
      %v4029 = vrot.slane %v3881, 2
      %v4030 = vsel %vm971, %v4028, %v4029
      %4031 = vrot.lane.b32.xlu0 %v4028, 125
      %v4032 = vpop.permute.xlu0 %4031
      %4033 = vrot.lane.b32.xlu0 %v4030, 125
      %v4034 = vpop.permute.xlu0 %4033
      %v4035 = vsel %vm465, %v3902, %v4032
      %v4036 = vsel %vm465, %v3904, %v4034
      %4037 = vrot.lane.b32.xlu0 %v3878, 117
      %v4038 = vpop.permute.xlu0 %4037
      %4039 = vrot.lane.b32.xlu0 %v3879, 117
      %v4040 = vpop.permute.xlu0 %4039
      %4041 = vrot.lane.b32.xlu0 %v3880, 117
      %v4042 = vpop.permute.xlu0 %4041
      %4043 = vrot.lane.b32.xlu0 %v3881, 117
      %v4044 = vpop.permute.xlu0 %4043
      %vm4045 = vcmask 957440
      %v4046 = vsel %vm4045, %v4038, %v4040
      %v4047 = vsel %vm4045, %v4042, %v4044
      %4048 = vrot.lane.b32.xlu0 %v4010, 116
      %v4049 = vpop.permute.xlu0 %4048
      %4050 = vrot.lane.b32.xlu0 %v4012, 116
      %v4051 = vpop.permute.xlu0 %4050
      %vm4052 = vcmask 949248
      %v4053 = vsel %vm4052, %v3912, %v4049
      %v4054 = vsel %vm4052, %v3914, %v4051
      %4055 = vrot.lane.b32.xlu0 %v4019, 115
      %v4056 = vpop.permute.xlu0 %4055
      %4057 = vrot.lane.b32.xlu0 %v4021, 115
      %v4058 = vpop.permute.xlu0 %4057
      %vm4059 = vcmask 941056
      %v4060 = vsel %vm4059, %v3916, %v4056
      %v4061 = vsel %vm4059, %v3918, %v4058
      %4062 = vrot.lane.b32.xlu0 %v4028, 114
      %v4063 = vpop.permute.xlu0 %4062
      %4064 = vrot.lane.b32.xlu0 %v4030, 114
      %v4065 = vpop.permute.xlu0 %4064
      %vm4066 = vcmask 932864
      %v4067 = vsel %vm4066, %v3920, %v4063
      %v4068 = vsel %vm4066, %v3922, %v4065
      %4069 = vrot.lane.b32.xlu0 %v3879, 113
      %v4070 = vpop.permute.xlu0 %4069
      %4071 = vrot.lane.b32.xlu0 %v3881, 113
      %v4072 = vpop.permute.xlu0 %4071
      %vm4073 = vcmask 924672
      %v4074 = vsel %vm4073, %v3925, %v4070
      %v4075 = vsel %vm4073, %v3927, %v4072
      %v4077 = vsel %vm844, %v3880, %v4017
      %v4080 = vsel %vm844, %v3881, %v4014
      %v4083 = vsel %vm912, %v4018, %v4026
      %v4086 = vsel %vm912, %v4016, %v4023
      %v4089 = vsel %vm980, %v4027, %v4035
      %v4092 = vsel %vm980, %v4025, %v4032
      %v4095 = vsel %vm844, %v4047, %v4053
      %v4098 = vsel %vm844, %v4044, %v4049
      %v4101 = vsel %vm912, %v4054, %v4060
      %v4104 = vsel %vm912, %v4051, %v4056
      %v4107 = vsel %vm980, %v4061, %v4067
      %v4110 = vsel %vm980, %v4058, %v4063
      %4123 = vrot.lane.b32.xlu0 %v3878, 91
      %v4124 = vpop.permute.xlu0 %4123
      %4125 = vrot.lane.b32.xlu0 %v3879, 91
      %v4126 = vpop.permute.xlu0 %4125
      %4127 = vrot.lane.b32.xlu0 %v4077, 91
      %v4128 = vpop.permute.xlu0 %4127
      %4129 = vrot.lane.b32.xlu0 %v4080, 91
      %v4130 = vpop.permute.xlu0 %4129
      %4131 = vrot.lane.b32.xlu0 %v4083, 91
      %v4132 = vpop.permute.xlu0 %4131
      %4133 = vrot.lane.b32.xlu0 %v4086, 91
      %v4134 = vpop.permute.xlu0 %4133
      %4135 = vrot.lane.b32.xlu0 %v4089, 91
      %v4136 = vpop.permute.xlu0 %4135
      %4137 = vrot.lane.b32.xlu0 %v4092, 91
      %v4138 = vpop.permute.xlu0 %4137
      %4139 = vrot.lane.b32.xlu0 %v4036, 91
      %v4140 = vpop.permute.xlu0 %4139
      %4141 = vrot.lane.b32.xlu0 %v4034, 91
      %v4142 = vpop.permute.xlu0 %4141
      %4143 = vrot.lane.b32.xlu0 %v4046, 91
      %v4144 = vpop.permute.xlu0 %4143
      %4145 = vrot.lane.b32.xlu0 %v4040, 91
      %v4146 = vpop.permute.xlu0 %4145
      %4147 = vrot.lane.b32.xlu0 %v4095, 91
      %v4148 = vpop.permute.xlu0 %4147
      %4149 = vrot.lane.b32.xlu0 %v4098, 91
      %v4150 = vpop.permute.xlu0 %4149
      %4151 = vrot.lane.b32.xlu0 %v4101, 91
      %v4152 = vpop.permute.xlu0 %4151
      %4153 = vrot.lane.b32.xlu0 %v4104, 91
      %v4154 = vpop.permute.xlu0 %4153
      %4155 = vrot.lane.b32.xlu0 %v4107, 91
      %v4156 = vpop.permute.xlu0 %4155
      %4157 = vrot.lane.b32.xlu0 %v4110, 91
      %v4158 = vpop.permute.xlu0 %4157
      %4159 = vrot.lane.b32.xlu0 %v4068, 91
      %v4160 = vpop.permute.xlu0 %4159
      %4161 = vrot.lane.b32.xlu0 %v4065, 91
      %v4162 = vpop.permute.xlu0 %4161
      %4163 = vrot.lane.b32.xlu0 %v4074, 91
      %v4164 = vpop.permute.xlu0 %4163
      %4165 = vrot.lane.b32.xlu0 %v4070, 91
      %v4166 = vpop.permute.xlu0 %4165
      %4167 = vrot.lane.b32.xlu0 %v4075, 91
      %v4168 = vpop.permute.xlu0 %4167
      %4169 = vrot.lane.b32.xlu0 %v4072, 91
      %v4170 = vpop.permute.xlu0 %4169
      %vm4171 = vcmask 744448
      %v4172 = vsel %vm4171, %v4124, %v4126
      %v4173 = vsel %vm4171, %v4128, %v4130
      %v4174 = vsel %vm4171, %v4132, %v4134
      %v4175 = vsel %vm4171, %v4136, %v4138
      %v4176 = vsel %vm4171, %v4140, %v4142
      %v4177 = vsel %vm4171, %v4144, %v4146
      %v4178 = vsel %vm4171, %v4148, %v4150
      %v4179 = vsel %vm4171, %v4152, %v4154
      %v4180 = vsel %vm4171, %v4156, %v4158
      %v4181 = vsel %vm4171, %v4160, %v4162
      %v4182 = vsel %vm4171, %v4164, %v4166
      %v4183 = vsel %vm4171, %v4168, %v4170
      %v4195 = vld [vmem:[%s3] sm:$0xff]
      %v4196 = vld [vmem:[%s3 + $0x8] sm:$0xff]
      %v4197 = vld [vmem:[%s3 + $0x10] sm:$0xff]
      %v4198 = vld [vmem:[%s3 + $0x18] sm:$0xff]
      %v4199 = vld [vmem:[%s3 + $0x20] sm:$0x33]
      %v4200 = vld [vmem:[%s3 + $0x28] sm:$0x33]
      %v4201 = vld [vmem:[%s4] sm:$0xff]
      %v4202 = vld [vmem:[%s4 + $0x8] sm:$0xff]
      %v4203 = vld [vmem:[%s4 + $0x10] sm:$0xf]
      %4205 = vset.pattern.permute.xlu0 0
      %4206 = vperm.xlu0 %4205, %v4201
      %v4207 = vpop.permute.xlu0 %4206
      %4210 = vset.pattern.permute.xlu0 0
      %4211 = vperm.xlu0 %4210, %v4202
      %v4212 = vpop.permute.xlu0 %4211
      %4215 = vset.pattern.permute.xlu0 0
      %4216 = vperm.xlu0 %4215, %v4203
      %v4217 = vpop.permute.xlu0 %4216
      %v4225 = vunpack.c.l.b16 %v4195
      %v4226 = vunpack.c.h.b16 %v4195
      %v4227 = vunpack.c.l.b16 %v4196
      %v4228 = vunpack.c.h.b16 %v4196
      %v4229 = vunpack.c.l.b16 %v4197
      %v4230 = vunpack.c.h.b16 %v4197
      %v4231 = vunpack.c.l.b16 %v4198
      %v4232 = vunpack.c.h.b16 %v4198
      %v4233 = vunpack.c.l.b16 %v4199
      %v4234 = vunpack.c.h.b16 %v4199
      %v4235 = vunpack.c.l.b16 %v4200
      %v4236 = vunpack.c.h.b16 %v4200
      %v4237 = vpack.c.b16 %v4229, %v4225
      %v4238 = vpack.c.b16 %v4230, %v4226
      %v4239 = vpack.c.b16 %v4231, %v4227
      %v4240 = vpack.c.b16 %v4232, %v4228
      %v4241 = vpack.c.b16 %v4233, %v4233
      %v4242 = vpack.c.b16 %v4234, %v4234
      %v4243 = vpack.c.b16 %v4235, %v4235
      %v4244 = vpack.c.b16 %v4236, %v4236
      %vm4251 = vcmask 949248
      %v4253 = vsel %vm4251, %v4240, 0
      %v4256 = vsel %vm4251, %v4244, 0
      %v4259 = vsel %vm844, %v4183, 0
      %4261 = vmatprep.subr.bf16.mxu0 0
      %4262 = vmatpush1.bf16.msra.mxu0 %v3878
      %4263 = vmatprep.subr.bf16.mxu0 0
      %4264 = vmatpush1.bf16.msra.mxu0 %v3962
      %4265 = vmatprep.subr.bf16.mxu0 0
      %4266 = vmatpush1.bf16.msra.mxu0 %v3966
      %4267 = vmatprep.subr.bf16.mxu0 0
      %4268 = vmatpush1.bf16.msra.mxu0 %v3970
      %4269 = vmatprep.subr.bf16.mxu0 0
      %4270 = vmatpush1.bf16.msra.mxu0 %v3904
      %4271 = vmatprep.subr.bf16.mxu0 0
      %4272 = vmatpush1.bf16.msra.mxu0 %v3907
      %4273 = vmatprep.subr.bf16.mxu0 0
      %4274 = vmatpush1.bf16.msra.mxu0 %v3974
      %4275 = vmatprep.subr.bf16.mxu0 0
      %4276 = vmatpush1.bf16.msra.mxu0 %v3978
      %4277 = vmatprep.subr.bf16.mxu0 0
      %4278 = vmatpush1.bf16.msra.mxu0 %v3982
      %4279 = vmatprep.subr.bf16.mxu0 0
      %4280 = vmatpush1.bf16.msra.mxu0 %v3922
      %4281 = vmatprep.subr.bf16.mxu0 0
      %4282 = vmatpush1.bf16.msra.mxu0 %v3925
      %4283 = vmatprep.subr.bf16.mxu0 0
      %4284 = vmatpush1.bf16.msra.mxu0 %v3986
      %4285 = vmatprep.subr.bf16.mxu0 0
      %4286 = vmatpush1.bf16.msra.mxu0 %v3990
      %4287 = vmatprep.subr.bf16.mxu0 0
      %4288 = vmatpush1.bf16.msra.mxu0 %v3994
      %4289 = vmatprep.subr.bf16.mxu0 0
      %4290 = vmatpush1.bf16.msra.mxu0 %v3940
      %4291 = vmatprep.subr.bf16.mxu0 0
      %4292 = vmatpush1.bf16.msra.mxu0 %v3943
      %4293 = vmatprep.mubr.bf16.mxu0 %v4238
      %4294 = vmatmul.mubr.bf16.gmra.mrb[0].mxu0 %v4237
      %v4295 = vpop.f32.mrb[0].mxu0
      %v4296 = vadd.f32 %v4207, %v4295
      %v4297 = vpop.f32.mrb[0].mxu0
      %v4298 = vpop.f32.mrb[0].mxu0
      %v4299 = vadd.f32 %v4212, %v4298
      %v4300 = vpop.f32.mrb[0].mxu0
      %4301 = vmatprep.mubr.bf16.mxu0 %v4242
      %4302 = vmatmul.mubr.bf16.gmra.mrb[0].mxu0 %v4241
      %v4303 = vpop.f32.mrb[0].mxu0
      %v4304 = vadd.f32 %v4217, %v4303
      %v4305 = vpop.f32.mrb[0].mxu0
      %v4306 = vpop.f32.mrb[0].mxu0
      %v4307 = vpop.f32.mrb[0].mxu0
      %4308 = vdwg.mxu0
      %4309 = vmatprep.subr.bf16.mxu0 0
      %4310 = vmatpush1.bf16.msra.mxu0 %v3998
      %4311 = vmatprep.subr.bf16.mxu0 0
      %4312 = vmatpush1.bf16.msra.mxu0 %v4002
      %4313 = vmatprep.subr.bf16.mxu0 0
      %4314 = vmatpush1.bf16.msra.mxu0 %v4006
      %4315 = vmatprep.subr.bf16.mxu0 0
      %4316 = vmatpush1.bf16.msra.mxu0 %v3958
      %4317 = vmatprep.subr.bf16.mxu0 0
      %4318 = vmatpush1.bf16.msra.mxu0 %v4172
      %4319 = vmatprep.subr.bf16.mxu0 0
      %4320 = vmatpush1.bf16.msra.mxu0 %v4173
      %4321 = vmatprep.subr.bf16.mxu0 0
      %4322 = vmatpush1.bf16.msra.mxu0 %v4174
      %4323 = vmatprep.subr.bf16.mxu0 0
      %4324 = vmatpush1.bf16.msra.mxu0 %v4175
      %4325 = vmatprep.subr.bf16.mxu0 0
      %4326 = vmatpush1.bf16.msra.mxu0 %v4176
      %4327 = vmatprep.subr.bf16.mxu0 0
      %4328 = vmatpush1.bf16.msra.mxu0 %v4177
      %4329 = vmatprep.subr.bf16.mxu0 0
      %4330 = vmatpush1.bf16.msra.mxu0 %v4178
      %4331 = vmatprep.subr.bf16.mxu0 0
      %4332 = vmatpush1.bf16.msra.mxu0 %v4179
      %4333 = vmatprep.subr.bf16.mxu0 0
      %4334 = vmatpush1.bf16.msra.mxu0 %v4180
      %4335 = vmatprep.subr.bf16.mxu0 0
      %4336 = vmatpush1.bf16.msra.mxu0 %v4181
      %4337 = vmatprep.subr.bf16.mxu0 0
      %4338 = vmatpush1.bf16.msra.mxu0 %v4182
      %4339 = vmatprep.subr.bf16.mxu0 0
      %4340 = vmatpush1.bf16.msra.mxu0 %v4259
      %4341 = vmatprep.mubr.bf16.mxu0 %v4253
      %4342 = vmatmul.mubr.bf16.gmra.mrb[0].mxu0 %v4239
      %v4343 = vpop.f32.mrb[0].mxu0
      %v4344 = vadd.f32 %v4296, %v4343
      %v4345 = vpop.f32.mrb[0].mxu0
      %v4346 = vpop.f32.mrb[0].mxu0
      %v4347 = vadd.f32 %v4299, %v4346
      %v4348 = vpop.f32.mrb[0].mxu0
      %4349 = vmatprep.mubr.bf16.mxu0 %v4256
      %4350 = vmatmul.mubr.bf16.gmra.mrb[0].mxu0 %v4243
      %v4351 = vpop.f32.mrb[0].mxu0
      %v4352 = vadd.f32 %v4304, %v4351
      %v4353 = vpop.f32.mrb[0].mxu0
      %v4354 = vpop.f32.mrb[0].mxu0
      %v4355 = vpop.f32.mrb[0].mxu0
      %4356 = vdwg.mxu0
      %4360 = vrot.lane.b32.xlu0 %v4344, 116
      %v4361 = vpop.permute.xlu0 %4360
      %4362 = vrot.lane.b32.xlu0 %v4347, 116
      %v4363 = vpop.permute.xlu0 %4362
      %4364 = vrot.lane.b32.xlu0 %v4352, 116
      %v4365 = vpop.permute.xlu0 %4364
      %v4369 = vmax.f32 %v4344, %v4361
      %v4370 = vmax.f32 %v4347, %v4363
      %v4371 = vmax.f32 %v4352, %v4365
      %v4373 = vsel %vm3153, %v4369, 0
      %v4376 = vsel %vm3153, %v4370, 0
      %v4379 = vsel %vm3153, %v4371, 0
      %4381 = vmatprep.subr.mxu0 0.0
      %4382 = vmatpush1.msra.mxu0 %v1397
      %4383 = vmatprep.subr.mxu0 0.0
      %4384 = vmatpush1.msra.mxu0 0.0
      %4385 = vmatprep.subr.mxu0 0.0
      %4386 = vmatpush1.msra.mxu0 0.0
      %4387 = vmatprep.subr.mxu0 0.0
      %4388 = vmatpush1.msra.mxu0 0.0
      %4389 = vmatprep.subr.mxu0 0.0
      %4390 = vmatpush1.msra.mxu0 0.0
      %4391 = vmatprep.subr.mxu0 0.0
      %4392 = vmatpush1.msra.mxu0 0.0
      %4393 = vmatprep.subr.mxu0 0.0
      %4394 = vmatpush1.msra.mxu0 0.0
      %4395 = vmatprep.subr.mxu0 0.0
      %4396 = vmatpush1.msra.mxu0 0.0
      %4397 = vmatprep.subr.mxu0 0.0
      %4398 = vmatpush1.msra.mxu0 0.0
      %4399 = vmatprep.subr.mxu0 0.0
      %4400 = vmatpush1.msra.mxu0 0.0
      %4401 = vmatprep.subr.mxu0 0.0
      %4402 = vmatpush1.msra.mxu0 0.0
      %4403 = vmatprep.subr.mxu0 0.0
      %4404 = vmatpush1.msra.mxu0 0.0
      %4405 = vmatprep.subr.mxu0 0.0
      %4406 = vmatpush1.msra.mxu0 0.0
      %4407 = vmatprep.subr.mxu0 0.0
      %4408 = vmatpush1.msra.mxu0 0.0
      %4409 = vmatprep.subr.mxu0 0.0
      %4410 = vmatpush1.msra.mxu0 0.0
      %4411 = vmatprep.subr.mxu0 0.0
      %4412 = vmatpush1.msra.mxu0 0.0
      %4413 = vmatprep.subr.mxu0 0.0
      %4414 = vmatpush1.msra.mxu0 0.0
      %4415 = vmatprep.subr.mxu0 0.0
      %4416 = vmatpush1.msra.mxu0 0.0
      %4417 = vmatprep.subr.mxu0 0.0
      %4418 = vmatpush1.msra.mxu0 0.0
      %4419 = vmatprep.subr.mxu0 0.0
      %4420 = vmatpush1.msra.mxu0 0.0
      %4421 = vmatprep.subr.mxu0 0.0
      %4422 = vmatpush1.msra.mxu0 0.0
      %4423 = vmatprep.subr.mxu0 0.0
      %4424 = vmatpush1.msra.mxu0 0.0
      %4425 = vmatprep.subr.mxu0 0.0
      %4426 = vmatpush1.msra.mxu0 0.0
      %4427 = vmatprep.subr.mxu0 0.0
      %4428 = vmatpush1.msra.mxu0 0.0
      %4429 = vmatprep.subr.mxu0 0.0
      %4430 = vmatpush1.msra.mxu0 0.0
      %4431 = vmatprep.subr.mxu0 0.0
      %4432 = vmatpush1.msra.mxu0 0.0
      %4433 = vmatprep.subr.mxu0 0.0
      %4434 = vmatpush1.msra.mxu0 0.0
      %4435 = vmatprep.subr.mxu0 0.0
      %4436 = vmatpush1.msra.mxu0 0.0
      %4437 = vmatprep.subr.mxu0 0.0
      %4438 = vmatpush1.msra.mxu0 0.0
      %4439 = vmatprep.subr.mxu0 0.0
      %4440 = vmatpush1.msra.mxu0 0.0
      %4441 = vmatprep.subr.mxu0 0.0
      %4442 = vmatpush1.msra.mxu0 0.0
      %4443 = vmatprep.subr.mxu0 0.0
      %4444 = vmatpush1.msra.mxu0 0.0
      %4445 = vmatprep.mubr.f32.mxu0 0.0
      %4446 = vmatmul.mubr.f32.gmra.mrb[0].mxu0 %v4373
      %v4447 = vpop.f32.mrb[0].mxu0
      %v4448 = vadd.f32 0.0, %v4447
      %v4449 = vpop.f32.mrb[0].mxu0
      %4450 = vmatprep.mubr.f32.mxu0 0.0
      %4451 = vmatmul.mubr.f32.gmra.mrb[0].mxu0 %v4376
      %v4452 = vpop.f32.mrb[0].mxu0
      %v4453 = vadd.f32 0.0, %v4452
      %v4454 = vpop.f32.mrb[0].mxu0
      %4455 = vmatprep.mubr.f32.mxu0 0.0
      %4456 = vmatmul.mubr.f32.gmra.mrb[0].mxu0 %v4379
      %v4457 = vpop.f32.mrb[0].mxu0
      %v4458 = vadd.f32 0.0, %v4457
      %v4459 = vpop.f32.mrb[0].mxu0
      %4460 = vdwg.mxu0
      %4461 = vmatprep.subr.mxu0 0.0
      %4462 = vmatpush1.msra.mxu0 %v1404
      %4463 = vmatprep.subr.mxu0 0.0
      %4464 = vmatpush1.msra.mxu0 0.0
      %4465 = vmatprep.subr.mxu0 0.0
      %4466 = vmatpush1.msra.mxu0 0.0
      %4467 = vmatprep.subr.mxu0 0.0
      %4468 = vmatpush1.msra.mxu0 0.0
      %4469 = vmatprep.subr.mxu0 0.0
      %4470 = vmatpush1.msra.mxu0 0.0
      %4471 = vmatprep.subr.mxu0 0.0
      %4472 = vmatpush1.msra.mxu0 0.0
      %4473 = vmatprep.subr.mxu0 0.0
      %4474 = vmatpush1.msra.mxu0 0.0
      %4475 = vmatprep.subr.mxu0 0.0
      %4476 = vmatpush1.msra.mxu0 0.0
      %4477 = vmatprep.subr.mxu0 0.0
      %4478 = vmatpush1.msra.mxu0 0.0
      %4479 = vmatprep.subr.mxu0 0.0
      %4480 = vmatpush1.msra.mxu0 0.0
      %4481 = vmatprep.subr.mxu0 0.0
      %4482 = vmatpush1.msra.mxu0 0.0
      %4483 = vmatprep.subr.mxu0 0.0
      %4484 = vmatpush1.msra.mxu0 0.0
      %4485 = vmatprep.subr.mxu0 0.0
      %4486 = vmatpush1.msra.mxu0 0.0
      %4487 = vmatprep.subr.mxu0 0.0
      %4488 = vmatpush1.msra.mxu0 0.0
      %4489 = vmatprep.subr.mxu0 0.0
      %4490 = vmatpush1.msra.mxu0 0.0
      %4491 = vmatprep.subr.mxu0 0.0
      %4492 = vmatpush1.msra.mxu0 0.0
      %4493 = vmatprep.subr.mxu0 0.0
      %4494 = vmatpush1.msra.mxu0 0.0
      %4495 = vmatprep.subr.mxu0 0.0
      %4496 = vmatpush1.msra.mxu0 0.0
      %4497 = vmatprep.subr.mxu0 0.0
      %4498 = vmatpush1.msra.mxu0 0.0
      %4499 = vmatprep.subr.mxu0 0.0
      %4500 = vmatpush1.msra.mxu0 0.0
      %4501 = vmatprep.subr.mxu0 0.0
      %4502 = vmatpush1.msra.mxu0 0.0
      %4503 = vmatprep.subr.mxu0 0.0
      %4504 = vmatpush1.msra.mxu0 0.0
      %4505 = vmatprep.subr.mxu0 0.0
      %4506 = vmatpush1.msra.mxu0 0.0
      %4507 = vmatprep.subr.mxu0 0.0
      %4508 = vmatpush1.msra.mxu0 0.0
      %4509 = vmatprep.subr.mxu0 0.0
      %4510 = vmatpush1.msra.mxu0 0.0
      %4511 = vmatprep.subr.mxu0 0.0
      %4512 = vmatpush1.msra.mxu0 0.0
      %4513 = vmatprep.subr.mxu0 0.0
      %4514 = vmatpush1.msra.mxu0 0.0
      %4515 = vmatprep.subr.mxu0 0.0
      %4516 = vmatpush1.msra.mxu0 0.0
      %4517 = vmatprep.subr.mxu0 0.0
      %4518 = vmatpush1.msra.mxu0 0.0
      %4519 = vmatprep.subr.mxu0 0.0
      %4520 = vmatpush1.msra.mxu0 0.0
      %4521 = vmatprep.subr.mxu0 0.0
      %4522 = vmatpush1.msra.mxu0 0.0
      %4523 = vmatprep.subr.mxu0 0.0
      %4524 = vmatpush1.msra.mxu0 0.0
      %4525 = vmatprep.mubr.f32.mxu0 0.0
      %4526 = vmatmul.mubr.f32.gmra.mrb[0].mxu0 %v4373
      %v4527 = vpop.f32.mrb[0].mxu0
      %v4528 = vadd.f32 0.0, %v4527
      %v4529 = vpop.f32.mrb[0].mxu0
      %4530 = vmatprep.mubr.f32.mxu0 0.0
      %4531 = vmatmul.mubr.f32.gmra.mrb[0].mxu0 %v4376
      %v4532 = vpop.f32.mrb[0].mxu0
      %v4533 = vadd.f32 0.0, %v4532
      %v4534 = vpop.f32.mrb[0].mxu0
      %4535 = vmatprep.mubr.f32.mxu0 0.0
      %4536 = vmatmul.mubr.f32.gmra.mrb[0].mxu0 %v4379
      %v4537 = vpop.f32.mrb[0].mxu0
      %v4538 = vadd.f32 0.0, %v4537
      %v4539 = vpop.f32.mrb[0].mxu0
      %4540 = vdwg.mxu0
      %v4541 = vmax.f32 %v4448, %v4528
      %v4542 = vmax.f32 %v4453, %v4533
      %v4543 = vmax.f32 %v4458, %v4538
      %v4544 = vmax.f32 %v4541, 0.0
      %v4545 = vmax.f32 %v4542, 0.0
      %v4546 = vmax.f32 %v4543, 0.0
      %4547 = vrot.lane.b32.xlu0 %v4369, 104
      %v4548 = vpop.permute.xlu0 %4547
      %4549 = vrot.lane.b32.xlu0 %v4370, 104
      %v4550 = vpop.permute.xlu0 %4549
      %4551 = vrot.lane.b32.xlu0 %v4371, 104
      %v4552 = vpop.permute.xlu0 %4551
      %v4553 = vsel %vm3153, %v4548, 0
      %v4555 = vsel %vm3153, %v4550, 0
      %v4557 = vsel %vm3153, %v4552, 0
      %4559 = vmatprep.subr.mxu0 0.0
      %4560 = vmatpush1.msra.mxu0 %v1397
      %4561 = vmatprep.subr.mxu0 0.0
      %4562 = vmatpush1.msra.mxu0 0.0
      %4563 = vmatprep.subr.mxu0 0.0
      %4564 = vmatpush1.msra.mxu0 0.0
      %4565 = vmatprep.subr.mxu0 0.0
      %4566 = vmatpush1.msra.mxu0 0.0
      %4567 = vmatprep.subr.mxu0 0.0
      %4568 = vmatpush1.msra.mxu0 0.0
      %4569 = vmatprep.subr.mxu0 0.0
      %4570 = vmatpush1.msra.mxu0 0.0
      %4571 = vmatprep.subr.mxu0 0.0
      %4572 = vmatpush1.msra.mxu0 0.0
      %4573 = vmatprep.subr.mxu0 0.0
      %4574 = vmatpush1.msra.mxu0 0.0
      %4575 = vmatprep.subr.mxu0 0.0
      %4576 = vmatpush1.msra.mxu0 0.0
      %4577 = vmatprep.subr.mxu0 0.0
      %4578 = vmatpush1.msra.mxu0 0.0
      %4579 = vmatprep.subr.mxu0 0.0
      %4580 = vmatpush1.msra.mxu0 0.0
      %4581 = vmatprep.subr.mxu0 0.0
      %4582 = vmatpush1.msra.mxu0 0.0
      %4583 = vmatprep.subr.mxu0 0.0
      %4584 = vmatpush1.msra.mxu0 0.0
      %4585 = vmatprep.subr.mxu0 0.0
      %4586 = vmatpush1.msra.mxu0 0.0
      %4587 = vmatprep.subr.mxu0 0.0
      %4588 = vmatpush1.msra.mxu0 0.0
      %4589 = vmatprep.subr.mxu0 0.0
      %4590 = vmatpush1.msra.mxu0 0.0
      %4591 = vmatprep.subr.mxu0 0.0
      %4592 = vmatpush1.msra.mxu0 0.0
      %4593 = vmatprep.subr.mxu0 0.0
      %4594 = vmatpush1.msra.mxu0 0.0
      %4595 = vmatprep.subr.mxu0 0.0
      %4596 = vmatpush1.msra.mxu0 0.0
      %4597 = vmatprep.subr.mxu0 0.0
      %4598 = vmatpush1.msra.mxu0 0.0
      %4599 = vmatprep.subr.mxu0 0.0
      %4600 = vmatpush1.msra.mxu0 0.0
      %4601 = vmatprep.subr.mxu0 0.0
      %4602 = vmatpush1.msra.mxu0 0.0
      %4603 = vmatprep.subr.mxu0 0.0
      %4604 = vmatpush1.msra.mxu0 0.0
      %4605 = vmatprep.subr.mxu0 0.0
      %4606 = vmatpush1.msra.mxu0 0.0
      %4607 = vmatprep.subr.mxu0 0.0
      %4608 = vmatpush1.msra.mxu0 0.0
      %4609 = vmatprep.subr.mxu0 0.0
      %4610 = vmatpush1.msra.mxu0 0.0
      %4611 = vmatprep.subr.mxu0 0.0
      %4612 = vmatpush1.msra.mxu0 0.0
      %4613 = vmatprep.subr.mxu0 0.0
      %4614 = vmatpush1.msra.mxu0 0.0
      %4615 = vmatprep.subr.mxu0 0.0
      %4616 = vmatpush1.msra.mxu0 0.0
      %4617 = vmatprep.subr.mxu0 0.0
      %4618 = vmatpush1.msra.mxu0 0.0
      %4619 = vmatprep.subr.mxu0 0.0
      %4620 = vmatpush1.msra.mxu0 0.0
      %4621 = vmatprep.subr.mxu0 0.0
      %4622 = vmatpush1.msra.mxu0 0.0
      %4623 = vmatprep.mubr.f32.mxu0 0.0
      %4624 = vmatmul.mubr.f32.gmra.mrb[0].mxu0 %v4553
      %v4625 = vpop.f32.mrb[0].mxu0
      %v4626 = vadd.f32 0.0, %v4625
      %v4627 = vpop.f32.mrb[0].mxu0
      %4628 = vmatprep.mubr.f32.mxu0 0.0
      %4629 = vmatmul.mubr.f32.gmra.mrb[0].mxu0 %v4555
      %v4630 = vpop.f32.mrb[0].mxu0
      %v4631 = vadd.f32 0.0, %v4630
      %v4632 = vpop.f32.mrb[0].mxu0
      %4633 = vmatprep.mubr.f32.mxu0 0.0
      %4634 = vmatmul.mubr.f32.gmra.mrb[0].mxu0 %v4557
      %v4635 = vpop.f32.mrb[0].mxu0
      %v4636 = vadd.f32 0.0, %v4635
      %v4637 = vpop.f32.mrb[0].mxu0
      %4638 = vdwg.mxu0
      %4639 = vmatprep.subr.mxu0 0.0
      %4640 = vmatpush1.msra.mxu0 %v1404
      %4641 = vmatprep.subr.mxu0 0.0
      %4642 = vmatpush1.msra.mxu0 0.0
      %4643 = vmatprep.subr.mxu0 0.0
      %4644 = vmatpush1.msra.mxu0 0.0
      %4645 = vmatprep.subr.mxu0 0.0
      %4646 = vmatpush1.msra.mxu0 0.0
      %4647 = vmatprep.subr.mxu0 0.0
      %4648 = vmatpush1.msra.mxu0 0.0
      %4649 = vmatprep.subr.mxu0 0.0
      %4650 = vmatpush1.msra.mxu0 0.0
      %4651 = vmatprep.subr.mxu0 0.0
      %4652 = vmatpush1.msra.mxu0 0.0
      %4653 = vmatprep.subr.mxu0 0.0
      %4654 = vmatpush1.msra.mxu0 0.0
      %4655 = vmatprep.subr.mxu0 0.0
      %4656 = vmatpush1.msra.mxu0 0.0
      %4657 = vmatprep.subr.mxu0 0.0
      %4658 = vmatpush1.msra.mxu0 0.0
      %4659 = vmatprep.subr.mxu0 0.0
      %4660 = vmatpush1.msra.mxu0 0.0
      %4661 = vmatprep.subr.mxu0 0.0
      %4662 = vmatpush1.msra.mxu0 0.0
      %4663 = vmatprep.subr.mxu0 0.0
      %4664 = vmatpush1.msra.mxu0 0.0
      %4665 = vmatprep.subr.mxu0 0.0
      %4666 = vmatpush1.msra.mxu0 0.0
      %4667 = vmatprep.subr.mxu0 0.0
      %4668 = vmatpush1.msra.mxu0 0.0
      %4669 = vmatprep.subr.mxu0 0.0
      %4670 = vmatpush1.msra.mxu0 0.0
      %4671 = vmatprep.subr.mxu0 0.0
      %4672 = vmatpush1.msra.mxu0 0.0
      %4673 = vmatprep.subr.mxu0 0.0
      %4674 = vmatpush1.msra.mxu0 0.0
      %4675 = vmatprep.subr.mxu0 0.0
      %4676 = vmatpush1.msra.mxu0 0.0
      %4677 = vmatprep.subr.mxu0 0.0
      %4678 = vmatpush1.msra.mxu0 0.0
      %4679 = vmatprep.subr.mxu0 0.0
      %4680 = vmatpush1.msra.mxu0 0.0
      %4681 = vmatprep.subr.mxu0 0.0
      %4682 = vmatpush1.msra.mxu0 0.0
      %4683 = vmatprep.subr.mxu0 0.0
      %4684 = vmatpush1.msra.mxu0 0.0
      %4685 = vmatprep.subr.mxu0 0.0
      %4686 = vmatpush1.msra.mxu0 0.0
      %4687 = vmatprep.subr.mxu0 0.0
      %4688 = vmatpush1.msra.mxu0 0.0
      %4689 = vmatprep.subr.mxu0 0.0
      %4690 = vmatpush1.msra.mxu0 0.0
      %4691 = vmatprep.subr.mxu0 0.0
      %4692 = vmatpush1.msra.mxu0 0.0
      %4693 = vmatprep.subr.mxu0 0.0
      %4694 = vmatpush1.msra.mxu0 0.0
      %4695 = vmatprep.subr.mxu0 0.0
      %4696 = vmatpush1.msra.mxu0 0.0
      %4697 = vmatprep.subr.mxu0 0.0
      %4698 = vmatpush1.msra.mxu0 0.0
      %4699 = vmatprep.subr.mxu0 0.0
      %4700 = vmatpush1.msra.mxu0 0.0
      %4701 = vmatprep.subr.mxu0 0.0
      %4702 = vmatpush1.msra.mxu0 0.0
      %4703 = vmatprep.mubr.f32.mxu0 0.0
      %4704 = vmatmul.mubr.f32.gmra.mrb[0].mxu0 %v4553
      %v4705 = vpop.f32.mrb[0].mxu0
      %v4706 = vadd.f32 0.0, %v4705
      %v4707 = vpop.f32.mrb[0].mxu0
      %4708 = vmatprep.mubr.f32.mxu0 0.0
      %4709 = vmatmul.mubr.f32.gmra.mrb[0].mxu0 %v4555
      %v4710 = vpop.f32.mrb[0].mxu0
      %v4711 = vadd.f32 0.0, %v4710
      %v4712 = vpop.f32.mrb[0].mxu0
      %4713 = vmatprep.mubr.f32.mxu0 0.0
      %4714 = vmatmul.mubr.f32.gmra.mrb[0].mxu0 %v4557
      %v4715 = vpop.f32.mrb[0].mxu0
      %v4716 = vadd.f32 0.0, %v4715
      %v4717 = vpop.f32.mrb[0].mxu0
      %4718 = vdwg.mxu0
      %v4719 = vmax.f32 %v4626, %v4706
      %v4720 = vmax.f32 %v4631, %v4711
      %v4721 = vmax.f32 %v4636, %v4716
      %v4722 = vmax.f32 %v4719, 0.0
      %v4723 = vmax.f32 %v4720, 0.0
      %v4724 = vmax.f32 %v4721, 0.0
      %4725 = vrot.lane.b32.xlu0 %v4369, 80
      %v4726 = vpop.permute.xlu0 %4725
      %4727 = vrot.lane.b32.xlu0 %v4370, 80
      %v4728 = vpop.permute.xlu0 %4727
      %4729 = vrot.lane.b32.xlu0 %v4371, 80
      %v4730 = vpop.permute.xlu0 %4729
      %v4731 = vsel %vm3153, %v4726, 0
      %v4733 = vsel %vm3153, %v4728, 0
      %v4735 = vsel %vm3153, %v4730, 0
      %4737 = vmatprep.subr.mxu0 0.0
      %4738 = vmatpush1.msra.mxu0 %v1397
      %4739 = vmatprep.subr.mxu0 0.0
      %4740 = vmatpush1.msra.mxu0 0.0
      %4741 = vmatprep.subr.mxu0 0.0
      %4742 = vmatpush1.msra.mxu0 0.0
      %4743 = vmatprep.subr.mxu0 0.0
      %4744 = vmatpush1.msra.mxu0 0.0
      %4745 = vmatprep.subr.mxu0 0.0
      %4746 = vmatpush1.msra.mxu0 0.0
      %4747 = vmatprep.subr.mxu0 0.0
      %4748 = vmatpush1.msra.mxu0 0.0
      %4749 = vmatprep.subr.mxu0 0.0
      %4750 = vmatpush1.msra.mxu0 0.0
      %4751 = vmatprep.subr.mxu0 0.0
      %4752 = vmatpush1.msra.mxu0 0.0
      %4753 = vmatprep.subr.mxu0 0.0
      %4754 = vmatpush1.msra.mxu0 0.0
      %4755 = vmatprep.subr.mxu0 0.0
      %4756 = vmatpush1.msra.mxu0 0.0
      %4757 = vmatprep.subr.mxu0 0.0
      %4758 = vmatpush1.msra.mxu0 0.0
      %4759 = vmatprep.subr.mxu0 0.0
      %4760 = vmatpush1.msra.mxu0 0.0
      %4761 = vmatprep.subr.mxu0 0.0
      %4762 = vmatpush1.msra.mxu0 0.0
      %4763 = vmatprep.subr.mxu0 0.0
      %4764 = vmatpush1.msra.mxu0 0.0
      %4765 = vmatprep.subr.mxu0 0.0
      %4766 = vmatpush1.msra.mxu0 0.0
      %4767 = vmatprep.subr.mxu0 0.0
      %4768 = vmatpush1.msra.mxu0 0.0
      %4769 = vmatprep.subr.mxu0 0.0
      %4770 = vmatpush1.msra.mxu0 0.0
      %4771 = vmatprep.subr.mxu0 0.0
      %4772 = vmatpush1.msra.mxu0 0.0
      %4773 = vmatprep.subr.mxu0 0.0
      %4774 = vmatpush1.msra.mxu0 0.0
      %4775 = vmatprep.subr.mxu0 0.0
      %4776 = vmatpush1.msra.mxu0 0.0
      %4777 = vmatprep.subr.mxu0 0.0
      %4778 = vmatpush1.msra.mxu0 0.0
      %4779 = vmatprep.subr.mxu0 0.0
      %4780 = vmatpush1.msra.mxu0 0.0
      %4781 = vmatprep.subr.mxu0 0.0
      %4782 = vmatpush1.msra.mxu0 0.0
      %4783 = vmatprep.subr.mxu0 0.0
      %4784 = vmatpush1.msra.mxu0 0.0
      %4785 = vmatprep.subr.mxu0 0.0
      %4786 = vmatpush1.msra.mxu0 0.0
      %4787 = vmatprep.subr.mxu0 0.0
      %4788 = vmatpush1.msra.mxu0 0.0
      %4789 = vmatprep.subr.mxu0 0.0
      %4790 = vmatpush1.msra.mxu0 0.0
      %4791 = vmatprep.subr.mxu0 0.0
      %4792 = vmatpush1.msra.mxu0 0.0
      %4793 = vmatprep.subr.mxu0 0.0
      %4794 = vmatpush1.msra.mxu0 0.0
      %4795 = vmatprep.subr.mxu0 0.0
      %4796 = vmatpush1.msra.mxu0 0.0
      %4797 = vmatprep.subr.mxu0 0.0
      %4798 = vmatpush1.msra.mxu0 0.0
      %4799 = vmatprep.subr.mxu0 0.0
      %4800 = vmatpush1.msra.mxu0 0.0
      %4801 = vmatprep.mubr.f32.mxu0 0.0
      %4802 = vmatmul.mubr.f32.gmra.mrb[0].mxu0 %v4731
      %v4803 = vpop.f32.mrb[0].mxu0
      %v4804 = vadd.f32 0.0, %v4803
      %v4805 = vpop.f32.mrb[0].mxu0
      %4806 = vmatprep.mubr.f32.mxu0 0.0
      %4807 = vmatmul.mubr.f32.gmra.mrb[0].mxu0 %v4733
      %v4808 = vpop.f32.mrb[0].mxu0
      %v4809 = vadd.f32 0.0, %v4808
      %v4810 = vpop.f32.mrb[0].mxu0
      %4811 = vmatprep.mubr.f32.mxu0 0.0
      %4812 = vmatmul.mubr.f32.gmra.mrb[0].mxu0 %v4735
      %v4813 = vpop.f32.mrb[0].mxu0
      %v4814 = vadd.f32 0.0, %v4813
      %v4815 = vpop.f32.mrb[0].mxu0
      %4816 = vdwg.mxu0
      %4817 = vmatprep.subr.mxu0 0.0
      %4818 = vmatpush1.msra.mxu0 %v1404
      %4819 = vmatprep.subr.mxu0 0.0
      %4820 = vmatpush1.msra.mxu0 0.0
      %4821 = vmatprep.subr.mxu0 0.0
      %4822 = vmatpush1.msra.mxu0 0.0
      %4823 = vmatprep.subr.mxu0 0.0
      %4824 = vmatpush1.msra.mxu0 0.0
      %4825 = vmatprep.subr.mxu0 0.0
      %4826 = vmatpush1.msra.mxu0 0.0
      %4827 = vmatprep.subr.mxu0 0.0
      %4828 = vmatpush1.msra.mxu0 0.0
      %4829 = vmatprep.subr.mxu0 0.0
      %4830 = vmatpush1.msra.mxu0 0.0
      %4831 = vmatprep.subr.mxu0 0.0
      %4832 = vmatpush1.msra.mxu0 0.0
      %4833 = vmatprep.subr.mxu0 0.0
      %4834 = vmatpush1.msra.mxu0 0.0
      %4835 = vmatprep.subr.mxu0 0.0
      %4836 = vmatpush1.msra.mxu0 0.0
      %4837 = vmatprep.subr.mxu0 0.0
      %4838 = vmatpush1.msra.mxu0 0.0
      %4839 = vmatprep.subr.mxu0 0.0
      %4840 = vmatpush1.msra.mxu0 0.0
      %4841 = vmatprep.subr.mxu0 0.0
      %4842 = vmatpush1.msra.mxu0 0.0
      %4843 = vmatprep.subr.mxu0 0.0
      %4844 = vmatpush1.msra.mxu0 0.0
      %4845 = vmatprep.subr.mxu0 0.0
      %4846 = vmatpush1.msra.mxu0 0.0
      %4847 = vmatprep.subr.mxu0 0.0
      %4848 = vmatpush1.msra.mxu0 0.0
      %4849 = vmatprep.subr.mxu0 0.0
      %4850 = vmatpush1.msra.mxu0 0.0
      %4851 = vmatprep.subr.mxu0 0.0
      %4852 = vmatpush1.msra.mxu0 0.0
      %4853 = vmatprep.subr.mxu0 0.0
      %4854 = vmatpush1.msra.mxu0 0.0
      %4855 = vmatprep.subr.mxu0 0.0
      %4856 = vmatpush1.msra.mxu0 0.0
      %4857 = vmatprep.subr.mxu0 0.0
      %4858 = vmatpush1.msra.mxu0 0.0
      %4859 = vmatprep.subr.mxu0 0.0
      %4860 = vmatpush1.msra.mxu0 0.0
      %4861 = vmatprep.subr.mxu0 0.0
      %4862 = vmatpush1.msra.mxu0 0.0
      %4863 = vmatprep.subr.mxu0 0.0
      %4864 = vmatpush1.msra.mxu0 0.0
      %4865 = vmatprep.subr.mxu0 0.0
      %4866 = vmatpush1.msra.mxu0 0.0
      %4867 = vmatprep.subr.mxu0 0.0
      %4868 = vmatpush1.msra.mxu0 0.0
      %4869 = vmatprep.subr.mxu0 0.0
      %4870 = vmatpush1.msra.mxu0 0.0
      %4871 = vmatprep.subr.mxu0 0.0
      %4872 = vmatpush1.msra.mxu0 0.0
      %4873 = vmatprep.subr.mxu0 0.0
      %4874 = vmatpush1.msra.mxu0 0.0
      %4875 = vmatprep.subr.mxu0 0.0
      %4876 = vmatpush1.msra.mxu0 0.0
      %4877 = vmatprep.subr.mxu0 0.0
      %4878 = vmatpush1.msra.mxu0 0.0
      %4879 = vmatprep.subr.mxu0 0.0
      %4880 = vmatpush1.msra.mxu0 0.0
      %4881 = vmatprep.mubr.f32.mxu0 0.0
      %4882 = vmatmul.mubr.f32.gmra.mrb[0].mxu0 %v4731
      %v4883 = vpop.f32.mrb[0].mxu0
      %v4884 = vadd.f32 0.0, %v4883
      %v4885 = vpop.f32.mrb[0].mxu0
      %4886 = vmatprep.mubr.f32.mxu0 0.0
      %4887 = vmatmul.mubr.f32.gmra.mrb[0].mxu0 %v4733
      %v4888 = vpop.f32.mrb[0].mxu0
      %v4889 = vadd.f32 0.0, %v4888
      %v4890 = vpop.f32.mrb[0].mxu0
      %4891 = vmatprep.mubr.f32.mxu0 0.0
      %4892 = vmatmul.mubr.f32.gmra.mrb[0].mxu0 %v4735
      %v4893 = vpop.f32.mrb[0].mxu0
      %v4894 = vadd.f32 0.0, %v4893
      %v4895 = vpop.f32.mrb[0].mxu0
      %4896 = vdwg.mxu0
      %v4897 = vmax.f32 %v4804, %v4884
      %v4898 = vmax.f32 %v4809, %v4889
      %v4899 = vmax.f32 %v4814, %v4894
      %v4900 = vmax.f32 %v4897, 0.0
      %v4901 = vmax.f32 %v4898, 0.0
      %v4902 = vmax.f32 %v4899, 0.0
      %4903 = vrot.lane.b32.xlu0 %v4369, 56
      %v4904 = vpop.permute.xlu0 %4903
      %4905 = vrot.lane.b32.xlu0 %v4370, 56
      %v4906 = vpop.permute.xlu0 %4905
      %4907 = vrot.lane.b32.xlu0 %v4371, 56
      %v4908 = vpop.permute.xlu0 %4907
      %v4909 = vsel %vm3153, %v4904, 0
      %v4911 = vsel %vm3153, %v4906, 0
      %v4913 = vsel %vm3153, %v4908, 0
      %4915 = vmatprep.subr.mxu0 0.0
      %4916 = vmatpush1.msra.mxu0 %v1397
      %4917 = vmatprep.subr.mxu0 0.0
      %4918 = vmatpush1.msra.mxu0 0.0
      %4919 = vmatprep.subr.mxu0 0.0
      %4920 = vmatpush1.msra.mxu0 0.0
      %4921 = vmatprep.subr.mxu0 0.0
      %4922 = vmatpush1.msra.mxu0 0.0
      %4923 = vmatprep.subr.mxu0 0.0
      %4924 = vmatpush1.msra.mxu0 0.0
      %4925 = vmatprep.subr.mxu0 0.0
      %4926 = vmatpush1.msra.mxu0 0.0
      %4927 = vmatprep.subr.mxu0 0.0
      %4928 = vmatpush1.msra.mxu0 0.0
      %4929 = vmatprep.subr.mxu0 0.0
      %4930 = vmatpush1.msra.mxu0 0.0
      %4931 = vmatprep.subr.mxu0 0.0
      %4932 = vmatpush1.msra.mxu0 0.0
      %4933 = vmatprep.subr.mxu0 0.0
      %4934 = vmatpush1.msra.mxu0 0.0
      %4935 = vmatprep.subr.mxu0 0.0
      %4936 = vmatpush1.msra.mxu0 0.0
      %4937 = vmatprep.subr.mxu0 0.0
      %4938 = vmatpush1.msra.mxu0 0.0
      %4939 = vmatprep.subr.mxu0 0.0
      %4940 = vmatpush1.msra.mxu0 0.0
      %4941 = vmatprep.subr.mxu0 0.0
      %4942 = vmatpush1.msra.mxu0 0.0
      %4943 = vmatprep.subr.mxu0 0.0
      %4944 = vmatpush1.msra.mxu0 0.0
      %4945 = vmatprep.subr.mxu0 0.0
      %4946 = vmatpush1.msra.mxu0 0.0
      %4947 = vmatprep.subr.mxu0 0.0
      %4948 = vmatpush1.msra.mxu0 0.0
      %4949 = vmatprep.subr.mxu0 0.0
      %4950 = vmatpush1.msra.mxu0 0.0
      %4951 = vmatprep.subr.mxu0 0.0
      %4952 = vmatpush1.msra.mxu0 0.0
      %4953 = vmatprep.subr.mxu0 0.0
      %4954 = vmatpush1.msra.mxu0 0.0
      %4955 = vmatprep.subr.mxu0 0.0
      %4956 = vmatpush1.msra.mxu0 0.0
      %4957 = vmatprep.subr.mxu0 0.0
      %4958 = vmatpush1.msra.mxu0 0.0
      %4959 = vmatprep.subr.mxu0 0.0
      %4960 = vmatpush1.msra.mxu0 0.0
      %4961 = vmatprep.subr.mxu0 0.0
      %4962 = vmatpush1.msra.mxu0 0.0
      %4963 = vmatprep.subr.mxu0 0.0
      %4964 = vmatpush1.msra.mxu0 0.0
      %4965 = vmatprep.subr.mxu0 0.0
      %4966 = vmatpush1.msra.mxu0 0.0
      %4967 = vmatprep.subr.mxu0 0.0
      %4968 = vmatpush1.msra.mxu0 0.0
      %4969 = vmatprep.subr.mxu0 0.0
      %4970 = vmatpush1.msra.mxu0 0.0
      %4971 = vmatprep.subr.mxu0 0.0
      %4972 = vmatpush1.msra.mxu0 0.0
      %4973 = vmatprep.subr.mxu0 0.0
      %4974 = vmatpush1.msra.mxu0 0.0
      %4975 = vmatprep.subr.mxu0 0.0
      %4976 = vmatpush1.msra.mxu0 0.0
      %4977 = vmatprep.subr.mxu0 0.0
      %4978 = vmatpush1.msra.mxu0 0.0
      %4979 = vmatprep.mubr.f32.mxu0 0.0
      %4980 = vmatmul.mubr.f32.gmra.mrb[0].mxu0 %v4909
      %v4981 = vpop.f32.mrb[0].mxu0
      %v4982 = vadd.f32 0.0, %v4981
      %v4983 = vpop.f32.mrb[0].mxu0
      %4984 = vmatprep.mubr.f32.mxu0 0.0
      %4985 = vmatmul.mubr.f32.gmra.mrb[0].mxu0 %v4911
      %v4986 = vpop.f32.mrb[0].mxu0
      %v4987 = vadd.f32 0.0, %v4986
      %v4988 = vpop.f32.mrb[0].mxu0
      %4989 = vmatprep.mubr.f32.mxu0 0.0
      %4990 = vmatmul.mubr.f32.gmra.mrb[0].mxu0 %v4913
      %v4991 = vpop.f32.mrb[0].mxu0
      %v4992 = vadd.f32 0.0, %v4991
      %v4993 = vpop.f32.mrb[0].mxu0
      %4994 = vdwg.mxu0
      %4995 = vmatprep.subr.mxu0 0.0
      %4996 = vmatpush1.msra.mxu0 %v1404
      %4997 = vmatprep.subr.mxu0 0.0
      %4998 = vmatpush1.msra.mxu0 0.0
      %4999 = vmatprep.subr.mxu0 0.0
      %5000 = vmatpush1.msra.mxu0 0.0
      %5001 = vmatprep.subr.mxu0 0.0
      %5002 = vmatpush1.msra.mxu0 0.0
      %5003 = vmatprep.subr.mxu0 0.0
      %5004 = vmatpush1.msra.mxu0 0.0
      %5005 = vmatprep.subr.mxu0 0.0
      %5006 = vmatpush1.msra.mxu0 0.0
      %5007 = vmatprep.subr.mxu0 0.0
      %5008 = vmatpush1.msra.mxu0 0.0
      %5009 = vmatprep.subr.mxu0 0.0
      %5010 = vmatpush1.msra.mxu0 0.0
      %5011 = vmatprep.subr.mxu0 0.0
      %5012 = vmatpush1.msra.mxu0 0.0
      %5013 = vmatprep.subr.mxu0 0.0
      %5014 = vmatpush1.msra.mxu0 0.0
      %5015 = vmatprep.subr.mxu0 0.0
      %5016 = vmatpush1.msra.mxu0 0.0
      %5017 = vmatprep.subr.mxu0 0.0
      %5018 = vmatpush1.msra.mxu0 0.0
      %5019 = vmatprep.subr.mxu0 0.0
      %5020 = vmatpush1.msra.mxu0 0.0
      %5021 = vmatprep.subr.mxu0 0.0
      %5022 = vmatpush1.msra.mxu0 0.0
      %5023 = vmatprep.subr.mxu0 0.0
      %5024 = vmatpush1.msra.mxu0 0.0
      %5025 = vmatprep.subr.mxu0 0.0
      %5026 = vmatpush1.msra.mxu0 0.0
      %5027 = vmatprep.subr.mxu0 0.0
      %5028 = vmatpush1.msra.mxu0 0.0
      %5029 = vmatprep.subr.mxu0 0.0
      %5030 = vmatpush1.msra.mxu0 0.0
      %5031 = vmatprep.subr.mxu0 0.0
      %5032 = vmatpush1.msra.mxu0 0.0
      %5033 = vmatprep.subr.mxu0 0.0
      %5034 = vmatpush1.msra.mxu0 0.0
      %5035 = vmatprep.subr.mxu0 0.0
      %5036 = vmatpush1.msra.mxu0 0.0
      %5037 = vmatprep.subr.mxu0 0.0
      %5038 = vmatpush1.msra.mxu0 0.0
      %5039 = vmatprep.subr.mxu0 0.0
      %5040 = vmatpush1.msra.mxu0 0.0
      %5041 = vmatprep.subr.mxu0 0.0
      %5042 = vmatpush1.msra.mxu0 0.0
      %5043 = vmatprep.subr.mxu0 0.0
      %5044 = vmatpush1.msra.mxu0 0.0
      %5045 = vmatprep.subr.mxu0 0.0
      %5046 = vmatpush1.msra.mxu0 0.0
      %5047 = vmatprep.subr.mxu0 0.0
      %5048 = vmatpush1.msra.mxu0 0.0
      %5049 = vmatprep.subr.mxu0 0.0
      %5050 = vmatpush1.msra.mxu0 0.0
      %5051 = vmatprep.subr.mxu0 0.0
      %5052 = vmatpush1.msra.mxu0 0.0
      %5053 = vmatprep.subr.mxu0 0.0
      %5054 = vmatpush1.msra.mxu0 0.0
      %5055 = vmatprep.subr.mxu0 0.0
      %5056 = vmatpush1.msra.mxu0 0.0
      %5057 = vmatprep.subr.mxu0 0.0
      %5058 = vmatpush1.msra.mxu0 0.0
      %5059 = vmatprep.mubr.f32.mxu0 0.0
      %5060 = vmatmul.mubr.f32.gmra.mrb[0].mxu0 %v4909
      %v5061 = vpop.f32.mrb[0].mxu0
      %v5062 = vadd.f32 0.0, %v5061
      %v5063 = vpop.f32.mrb[0].mxu0
      %5064 = vmatprep.mubr.f32.mxu0 0.0
      %5065 = vmatmul.mubr.f32.gmra.mrb[0].mxu0 %v4911
      %v5066 = vpop.f32.mrb[0].mxu0
      %v5067 = vadd.f32 0.0, %v5066
      %v5068 = vpop.f32.mrb[0].mxu0
      %5069 = vmatprep.mubr.f32.mxu0 0.0
      %5070 = vmatmul.mubr.f32.gmra.mrb[0].mxu0 %v4913
      %v5071 = vpop.f32.mrb[0].mxu0
      %v5072 = vadd.f32 0.0, %v5071
      %v5073 = vpop.f32.mrb[0].mxu0
      %5074 = vdwg.mxu0
      %v5075 = vmax.f32 %v4982, %v5062
      %v5076 = vmax.f32 %v4987, %v5067
      %v5077 = vmax.f32 %v4992, %v5072
      %v5078 = vmax.f32 %v5075, 0.0
      %v5079 = vmax.f32 %v5076, 0.0
      %v5080 = vmax.f32 %v5077, 0.0
      %v5084 = vrot.slane %v4544, 4
      %v5085 = vrot.slane %v4545, 4
      %v5086 = vsel %vm912, %v5084, %v5085
      %v5087 = vrot.slane %v4546, 4
      %v5088 = vsel %vm912, %v5085, %v5087
      %5089 = vrot.lane.b32.xlu0 %v5084, 127
      %v5090 = vpop.permute.xlu0 %5089
      %5091 = vrot.lane.b32.xlu0 %v5086, 127
      %v5092 = vpop.permute.xlu0 %5091
      %5093 = vrot.lane.b32.xlu0 %v5088, 127
      %v5094 = vpop.permute.xlu0 %5093
      %5098 = vrot.lane.b32.xlu0 %v4544, 126
      %v5099 = vpop.permute.xlu0 %5098
      %5100 = vrot.lane.b32.xlu0 %v4545, 126
      %v5101 = vpop.permute.xlu0 %5100
      %5102 = vrot.lane.b32.xlu0 %v4546, 126
      %v5103 = vpop.permute.xlu0 %5102
      %5107 = vrot.lane.b32.xlu0 %v5084, 125
      %v5108 = vpop.permute.xlu0 %5107
      %5109 = vrot.lane.b32.xlu0 %v5086, 125
      %v5110 = vpop.permute.xlu0 %5109
      %5111 = vrot.lane.b32.xlu0 %v5088, 125
      %v5112 = vpop.permute.xlu0 %5111
      %v5119 = vrot.slane %v4722, 4
      %v5120 = vrot.slane %v4723, 4
      %v5121 = vsel %vm912, %v5119, %v5120
      %v5122 = vrot.slane %v4724, 4
      %v5123 = vsel %vm912, %v5120, %v5122
      %5124 = vrot.lane.b32.xlu0 %v5119, 127
      %v5125 = vpop.permute.xlu0 %5124
      %5126 = vrot.lane.b32.xlu0 %v5121, 127
      %v5127 = vpop.permute.xlu0 %5126
      %5128 = vrot.lane.b32.xlu0 %v5123, 127
      %v5129 = vpop.permute.xlu0 %5128
      %5133 = vrot.lane.b32.xlu0 %v4722, 126
      %v5134 = vpop.permute.xlu0 %5133
      %5135 = vrot.lane.b32.xlu0 %v4723, 126
      %v5136 = vpop.permute.xlu0 %5135
      %5137 = vrot.lane.b32.xlu0 %v4724, 126
      %v5138 = vpop.permute.xlu0 %5137
      %5142 = vrot.lane.b32.xlu0 %v5119, 125
      %v5143 = vpop.permute.xlu0 %5142
      %5144 = vrot.lane.b32.xlu0 %v5121, 125
      %v5145 = vpop.permute.xlu0 %5144
      %5146 = vrot.lane.b32.xlu0 %v5123, 125
      %v5147 = vpop.permute.xlu0 %5146
      %v5154 = vrot.slane %v4900, 4
      %v5155 = vrot.slane %v4901, 4
      %v5156 = vsel %vm912, %v5154, %v5155
      %v5157 = vrot.slane %v4902, 4
      %v5158 = vsel %vm912, %v5155, %v5157
      %5159 = vrot.lane.b32.xlu0 %v5154, 127
      %v5160 = vpop.permute.xlu0 %5159
      %5161 = vrot.lane.b32.xlu0 %v5156, 127
      %v5162 = vpop.permute.xlu0 %5161
      %5163 = vrot.lane.b32.xlu0 %v5158, 127
      %v5164 = vpop.permute.xlu0 %5163
      %5168 = vrot.lane.b32.xlu0 %v4900, 126
      %v5169 = vpop.permute.xlu0 %5168
      %5170 = vrot.lane.b32.xlu0 %v4901, 126
      %v5171 = vpop.permute.xlu0 %5170
      %5172 = vrot.lane.b32.xlu0 %v4902, 126
      %v5173 = vpop.permute.xlu0 %5172
      %5177 = vrot.lane.b32.xlu0 %v5154, 125
      %v5178 = vpop.permute.xlu0 %5177
      %5179 = vrot.lane.b32.xlu0 %v5156, 125
      %v5180 = vpop.permute.xlu0 %5179
      %5181 = vrot.lane.b32.xlu0 %v5158, 125
      %v5182 = vpop.permute.xlu0 %5181
      %v5189 = vrot.slane %v5078, 4
      %v5190 = vrot.slane %v5079, 4
      %v5191 = vsel %vm912, %v5189, %v5190
      %v5192 = vrot.slane %v5080, 4
      %v5193 = vsel %vm912, %v5190, %v5192
      %5194 = vrot.lane.b32.xlu0 %v5189, 127
      %v5195 = vpop.permute.xlu0 %5194
      %5196 = vrot.lane.b32.xlu0 %v5191, 127
      %v5197 = vpop.permute.xlu0 %5196
      %5198 = vrot.lane.b32.xlu0 %v5193, 127
      %v5199 = vpop.permute.xlu0 %5198
      %5203 = vrot.lane.b32.xlu0 %v5078, 126
      %v5204 = vpop.permute.xlu0 %5203
      %5205 = vrot.lane.b32.xlu0 %v5079, 126
      %v5206 = vpop.permute.xlu0 %5205
      %5207 = vrot.lane.b32.xlu0 %v5080, 126
      %v5208 = vpop.permute.xlu0 %5207
      %5212 = vrot.lane.b32.xlu0 %v5189, 125
      %v5213 = vpop.permute.xlu0 %5212
      %5214 = vrot.lane.b32.xlu0 %v5191, 125
      %v5215 = vpop.permute.xlu0 %5214
      %5216 = vrot.lane.b32.xlu0 %v5193, 125
      %v5217 = vpop.permute.xlu0 %5216
      %v5221 = vsel %vm912, %v4546, %v5090
      %v5222 = vsel %vm912, %v5103, %v5108
      %v5223 = vsel %vm912, %v4724, %v5125
      %v5224 = vsel %vm912, %v5138, %v5143
      %v5225 = vsel %vm912, %v4902, %v5160
      %v5226 = vsel %vm912, %v5173, %v5178
      %v5227 = vsel %vm912, %v5080, %v5195
      %v5228 = vsel %vm912, %v5208, %v5213
      %v5229 = vld [vmem:[%s5] sm:$0xff]
      %v5230 = vld [vmem:[%s5 + $0x8] sm:$0xff]
      %v5231 = vld [vmem:[%s5 + $0x10] sm:$0xff]
      %v5232 = vld [vmem:[%s5 + $0x18] sm:$0xff]
      %v5233 = vld [vmem:[%s5 + $0x20] sm:$0xff]
      %v5234 = vld [vmem:[%s5 + $0x28] sm:$0xff]
      %v5235 = vld [vmem:[%s5 + $0x30] sm:$0xff]
      %v5236 = vld [vmem:[%s5 + $0x38] sm:$0xff]
      %v5237 = vld [vmem:[%s5 + $0x40] sm:$0xff]
      %v5238 = vld [vmem:[%s5 + $0x48] sm:$0xff]
      %v5239 = vld [vmem:[%s5 + $0x50] sm:$0xff]
      %v5240 = vld [vmem:[%s5 + $0x58] sm:$0xff]
      %v5241 = vld [vmem:[%s5 + $0x60] sm:$0xff]
      %v5242 = vld [vmem:[%s5 + $0x68] sm:$0xff]
      %v5243 = vld [vmem:[%s5 + $0x70] sm:$0xff]
      %v5244 = vld [vmem:[%s5 + $0x78] sm:$0xff]
      %v5245 = vld [vmem:[%s5 + $0x80] sm:$0xff]
      %v5246 = vld [vmem:[%s5 + $0x88] sm:$0xff]
      %v5247 = vld [vmem:[%s5 + $0x90] sm:$0x3]
      %v5248 = vld [vmem:[%s5 + $0x98] sm:$0x3]
      %v5249 = vld [vmem:[%s5 + $0xa0] sm:$0x3]
      %v5250 = vld [vmem:[%s6] sm:$0xff]
      %v5251 = vld [vmem:[%s6 + $0x8] sm:$0xff]
      %v5252 = vld [vmem:[%s6 + $0x10] sm:$0xff]
      %v5253 = vld [vmem:[%s6 + $0x18] sm:$0xff]
      %v5254 = vld [vmem:[%s6 + $0x20] sm:$0xff]
      %v5255 = vld [vmem:[%s6 + $0x28] sm:$0xff]
      %v5256 = vld [vmem:[%s6 + $0x30] sm:$0x3]
      %vm5257 = vcmask 523264
      %v5259 = vsel %vm5257, %v5231, 0
      %v5262 = vsel %vm5257, %v5234, 0
      %v5265 = vsel %vm5257, %v5237, 0
      %v5268 = vsel %vm5257, %v5240, 0
      %v5271 = vsel %vm5257, %v5243, 0
      %v5274 = vsel %vm5257, %v5246, 0
      %v5277 = vsel %vm5257, %v5249, 0
      %5279 = vmatprep.subr.mxu0 0.0
      %5280 = vmatpush1.msra.mxu0 %v4544
      %5281 = vmatprep.subr.mxu0 0.0
      %5282 = vmatpush1.msra.mxu0 %v4545
      %5283 = vmatprep.subr.mxu0 0.0
      %5284 = vmatpush1.msra.mxu0 %v5221
      %5285 = vmatprep.subr.mxu0 0.0
      %5286 = vmatpush1.msra.mxu0 %v5092
      %5287 = vmatprep.subr.mxu0 0.0
      %5288 = vmatpush1.msra.mxu0 %v5094
      %5289 = vmatprep.subr.mxu0 0.0
      %5290 = vmatpush1.msra.mxu0 %v5099
      %5291 = vmatprep.subr.mxu0 0.0
      %5292 = vmatpush1.msra.mxu0 %v5101
      %5293 = vmatprep.subr.mxu0 0.0
      %5294 = vmatpush1.msra.mxu0 %v5222
      %5295 = vmatprep.subr.mxu0 0.0
      %5296 = vmatpush1.msra.mxu0 %v5110
      %5297 = vmatprep.subr.mxu0 0.0
      %5298 = vmatpush1.msra.mxu0 %v5112
      %5299 = vmatprep.subr.mxu0 0.0
      %5300 = vmatpush1.msra.mxu0 %v4722
      %5301 = vmatprep.subr.mxu0 0.0
      %5302 = vmatpush1.msra.mxu0 %v4723
      %5303 = vmatprep.subr.mxu0 0.0
      %5304 = vmatpush1.msra.mxu0 %v5223
      %5305 = vmatprep.subr.mxu0 0.0
      %5306 = vmatpush1.msra.mxu0 %v5127
      %5307 = vmatprep.subr.mxu0 0.0
      %5308 = vmatpush1.msra.mxu0 %v5129
      %5309 = vmatprep.subr.mxu0 0.0
      %5310 = vmatpush1.msra.mxu0 %v5134
      %5311 = vmatprep.subr.mxu0 0.0
      %5312 = vmatpush1.msra.mxu0 %v5136
      %5313 = vmatprep.subr.mxu0 0.0
      %5314 = vmatpush1.msra.mxu0 %v5224
      %5315 = vmatprep.subr.mxu0 0.0
      %5316 = vmatpush1.msra.mxu0 %v5145
      %5317 = vmatprep.subr.mxu0 0.0
      %5318 = vmatpush1.msra.mxu0 %v5147
      %5319 = vmatprep.subr.mxu0 0.0
      %5320 = vmatpush1.msra.mxu0 %v4900
      %5321 = vmatprep.subr.mxu0 0.0
      %5322 = vmatpush1.msra.mxu0 %v4901
      %5323 = vmatprep.subr.mxu0 0.0
      %5324 = vmatpush1.msra.mxu0 %v5225
      %5325 = vmatprep.subr.mxu0 0.0
      %5326 = vmatpush1.msra.mxu0 %v5162
      %5327 = vmatprep.subr.mxu0 0.0
      %5328 = vmatpush1.msra.mxu0 %v5164
      %5329 = vmatprep.subr.mxu0 0.0
      %5330 = vmatpush1.msra.mxu0 %v5169
      %5331 = vmatprep.subr.mxu0 0.0
      %5332 = vmatpush1.msra.mxu0 %v5171
      %5333 = vmatprep.subr.mxu0 0.0
      %5334 = vmatpush1.msra.mxu0 %v5226
      %5335 = vmatprep.subr.mxu0 0.0
      %5336 = vmatpush1.msra.mxu0 %v5180
      %5337 = vmatprep.subr.mxu0 0.0
      %5338 = vmatpush1.msra.mxu0 %v5182
      %5339 = vmatprep.subr.mxu0 0.0
      %5340 = vmatpush1.msra.mxu0 %v5078
      %5341 = vmatprep.subr.mxu0 0.0
      %5342 = vmatpush1.msra.mxu0 %v5079
      %5343 = vmatprep.mubr.f32.mxu0 %v5230
      %5344 = vmatmul.mubr.f32.gmra.mrb[0].mxu0 %v5229
      %v5345 = vpop.f32.mrb[0].mxu0
      %v5346 = vadd.f32 %v5250, %v5345
      %v5347 = vpop.f32.mrb[0].mxu0
      %5348 = vmatprep.mubr.f32.mxu0 %v5233
      %5349 = vmatmul.mubr.f32.gmra.mrb[0].mxu0 %v5232
      %v5350 = vpop.f32.mrb[0].mxu0
      %v5351 = vadd.f32 %v5251, %v5350
      %v5352 = vpop.f32.mrb[0].mxu0
      %5353 = vmatprep.mubr.f32.mxu0 %v5236
      %5354 = vmatmul.mubr.f32.gmra.mrb[0].mxu0 %v5235
      %v5355 = vpop.f32.mrb[0].mxu0
      %v5356 = vadd.f32 %v5252, %v5355
      %v5357 = vpop.f32.mrb[0].mxu0
      %5358 = vmatprep.mubr.f32.mxu0 %v5239
      %5359 = vmatmul.mubr.f32.gmra.mrb[0].mxu0 %v5238
      %v5360 = vpop.f32.mrb[0].mxu0
      %v5361 = vadd.f32 %v5253, %v5360
      %v5362 = vpop.f32.mrb[0].mxu0
      %5363 = vmatprep.mubr.f32.mxu0 %v5242
      %5364 = vmatmul.mubr.f32.gmra.mrb[0].mxu0 %v5241
      %v5365 = vpop.f32.mrb[0].mxu0
      %v5366 = vadd.f32 %v5254, %v5365
      %v5367 = vpop.f32.mrb[0].mxu0
      %5368 = vmatprep.mubr.f32.mxu0 %v5245
      %5369 = vmatmul.mubr.f32.gmra.mrb[0].mxu0 %v5244
      %v5370 = vpop.f32.mrb[0].mxu0
      %v5371 = vadd.f32 %v5255, %v5370
      %v5372 = vpop.f32.mrb[0].mxu0
      %5373 = vmatprep.mubr.f32.mxu0 %v5248
      %5374 = vmatmul.mubr.f32.gmra.mrb[0].mxu0 %v5247
      %v5375 = vpop.f32.mrb[0].mxu0
      %v5376 = vadd.f32 %v5256, %v5375
      %v5377 = vpop.f32.mrb[0].mxu0
      %5378 = vdwg.mxu0
      %5379 = vmatprep.subr.mxu0 0.0
      %5380 = vmatpush1.msra.mxu0 %v5227
      %5381 = vmatprep.subr.mxu0 0.0
      %5382 = vmatpush1.msra.mxu0 %v5197
      %5383 = vmatprep.subr.mxu0 0.0
      %5384 = vmatpush1.msra.mxu0 %v5199
      %5385 = vmatprep.subr.mxu0 0.0
      %5386 = vmatpush1.msra.mxu0 %v5204
      %5387 = vmatprep.subr.mxu0 0.0
      %5388 = vmatpush1.msra.mxu0 %v5206
      %5389 = vmatprep.subr.mxu0 0.0
      %5390 = vmatpush1.msra.mxu0 %v5228
      %5391 = vmatprep.subr.mxu0 0.0
      %5392 = vmatpush1.msra.mxu0 %v5215
      %5393 = vmatprep.subr.mxu0 0.0
      %5394 = vmatpush1.msra.mxu0 %v5217
      %5395 = vmatprep.subr.mxu0 0.0
      %5396 = vmatpush1.msra.mxu0 0.0
      %5397 = vmatprep.subr.mxu0 0.0
      %5398 = vmatpush1.msra.mxu0 0.0
      %5399 = vmatprep.subr.mxu0 0.0
      %5400 = vmatpush1.msra.mxu0 0.0
      %5401 = vmatprep.subr.mxu0 0.0
      %5402 = vmatpush1.msra.mxu0 0.0
      %5403 = vmatprep.subr.mxu0 0.0
      %5404 = vmatpush1.msra.mxu0 0.0
      %5405 = vmatprep.subr.mxu0 0.0
      %5406 = vmatpush1.msra.mxu0 0.0
      %5407 = vmatprep.subr.mxu0 0.0
      %5408 = vmatpush1.msra.mxu0 0.0
      %5409 = vmatprep.subr.mxu0 0.0
      %5410 = vmatpush1.msra.mxu0 0.0
      %5411 = vmatprep.subr.mxu0 0.0
      %5412 = vmatpush1.msra.mxu0 0.0
      %5413 = vmatprep.subr.mxu0 0.0
      %5414 = vmatpush1.msra.mxu0 0.0
      %5415 = vmatprep.subr.mxu0 0.0
      %5416 = vmatpush1.msra.mxu0 0.0
      %5417 = vmatprep.subr.mxu0 0.0
      %5418 = vmatpush1.msra.mxu0 0.0
      %5419 = vmatprep.subr.mxu0 0.0
      %5420 = vmatpush1.msra.mxu0 0.0
      %5421 = vmatprep.subr.mxu0 0.0
      %5422 = vmatpush1.msra.mxu0 0.0
      %5423 = vmatprep.subr.mxu0 0.0
      %5424 = vmatpush1.msra.mxu0 0.0
      %5425 = vmatprep.subr.mxu0 0.0
      %5426 = vmatpush1.msra.mxu0 0.0
      %5427 = vmatprep.subr.mxu0 0.0
      %5428 = vmatpush1.msra.mxu0 0.0
      %5429 = vmatprep.subr.mxu0 0.0
      %5430 = vmatpush1.msra.mxu0 0.0
      %5431 = vmatprep.subr.mxu0 0.0
      %5432 = vmatpush1.msra.mxu0 0.0
      %5433 = vmatprep.subr.mxu0 0.0
      %5434 = vmatpush1.msra.mxu0 0.0
      %5435 = vmatprep.subr.mxu0 0.0
      %5436 = vmatpush1.msra.mxu0 0.0
      %5437 = vmatprep.subr.mxu0 0.0
      %5438 = vmatpush1.msra.mxu0 0.0
      %5439 = vmatprep.subr.mxu0 0.0
      %5440 = vmatpush1.msra.mxu0 0.0
      %5441 = vmatprep.subr.mxu0 0.0
      %5442 = vmatpush1.msra.mxu0 0.0
      %5443 = vmatprep.mubr.f32.mxu0 0.0
      %5444 = vmatmul.mubr.f32.gmra.mrb[0].mxu0 %v5259
      %v5445 = vpop.f32.mrb[0].mxu0
      %v5446 = vadd.f32 %v5346, %v5445
      %v5447 = vpop.f32.mrb[0].mxu0
      %5448 = vmatprep.mubr.f32.mxu0 0.0
      %5449 = vmatmul.mubr.f32.gmra.mrb[0].mxu0 %v5262
      %v5450 = vpop.f32.mrb[0].mxu0
      %v5451 = vadd.f32 %v5351, %v5450
      %v5452 = vpop.f32.mrb[0].mxu0
      %5453 = vmatprep.mubr.f32.mxu0 0.0
      %5454 = vmatmul.mubr.f32.gmra.mrb[0].mxu0 %v5265
      %v5455 = vpop.f32.mrb[0].mxu0
      %v5456 = vadd.f32 %v5356, %v5455
      %v5457 = vpop.f32.mrb[0].mxu0
      %5458 = vmatprep.mubr.f32.mxu0 0.0
      %5459 = vmatmul.mubr.f32.gmra.mrb[0].mxu0 %v5268
      %v5460 = vpop.f32.mrb[0].mxu0
      %v5461 = vadd.f32 %v5361, %v5460
      %v5462 = vpop.f32.mrb[0].mxu0
      %5463 = vmatprep.mubr.f32.mxu0 0.0
      %5464 = vmatmul.mubr.f32.gmra.mrb[0].mxu0 %v5271
      %v5465 = vpop.f32.mrb[0].mxu0
      %v5466 = vadd.f32 %v5366, %v5465
      %v5467 = vpop.f32.mrb[0].mxu0
      %5468 = vmatprep.mubr.f32.mxu0 0.0
      %5469 = vmatmul.mubr.f32.gmra.mrb[0].mxu0 %v5274
      %v5470 = vpop.f32.mrb[0].mxu0
      %v5471 = vadd.f32 %v5371, %v5470
      %v5472 = vpop.f32.mrb[0].mxu0
      %5473 = vmatprep.mubr.f32.mxu0 0.0
      %5474 = vmatmul.mubr.f32.gmra.mrb[0].mxu0 %v5277
      %v5475 = vpop.f32.mrb[0].mxu0
      %v5476 = vadd.f32 %v5376, %v5475
      %v5477 = vpop.f32.mrb[0].mxu0
      %5478 = vdwg.mxu0
      %v5479 = vmax.f32 %v5446, 0.0
      %v5480 = vmax.f32 %v5451, 0.0
      %v5481 = vmax.f32 %v5456, 0.0
      %v5482 = vmax.f32 %v5461, 0.0
      %v5483 = vmax.f32 %v5466, 0.0
      %v5484 = vmax.f32 %v5471, 0.0
      %v5485 = vmax.f32 %v5476, 0.0
      %v5486 = vld [vmem:[%s7] sm:$0xff]
      %v5487 = vld [vmem:[%s7 + $0x8] sm:$0x3]
      %v5488 = vld [vmem:[%s8] sm:$0xff]
      %v5489 = vld [vmem:[%s8 + $0x8] sm:$0x3]
      %vm5490 = vcmask 408576
      %v5492 = vsel %vm5490, %v5486, 0
      %v5495 = vsel %vm5490, %v5487, 0
      %v5498 = vsel %vm844, %v5485, 0
      %5500 = vmatprep.subr.mxu0 0.0
      %5501 = vmatpush1.msra.mxu0 %v5479
      %5502 = vmatprep.subr.mxu0 0.0
      %5503 = vmatpush1.msra.mxu0 %v5480
      %5504 = vmatprep.subr.mxu0 0.0
      %5505 = vmatpush1.msra.mxu0 %v5481
      %5506 = vmatprep.subr.mxu0 0.0
      %5507 = vmatpush1.msra.mxu0 %v5482
      %5508 = vmatprep.subr.mxu0 0.0
      %5509 = vmatpush1.msra.mxu0 %v5483
      %5510 = vmatprep.subr.mxu0 0.0
      %5511 = vmatpush1.msra.mxu0 %v5484
      %5512 = vmatprep.subr.mxu0 0.0
      %5513 = vmatpush1.msra.mxu0 %v5498
      %5514 = vmatprep.subr.mxu0 0.0
      %5515 = vmatpush1.msra.mxu0 0.0
      %5516 = vmatprep.subr.mxu0 0.0
      %5517 = vmatpush1.msra.mxu0 0.0
      %5518 = vmatprep.subr.mxu0 0.0
      %5519 = vmatpush1.msra.mxu0 0.0
      %5520 = vmatprep.subr.mxu0 0.0
      %5521 = vmatpush1.msra.mxu0 0.0
      %5522 = vmatprep.subr.mxu0 0.0
      %5523 = vmatpush1.msra.mxu0 0.0
      %5524 = vmatprep.subr.mxu0 0.0
      %5525 = vmatpush1.msra.mxu0 0.0
      %5526 = vmatprep.subr.mxu0 0.0
      %5527 = vmatpush1.msra.mxu0 0.0
      %5528 = vmatprep.subr.mxu0 0.0
      %5529 = vmatpush1.msra.mxu0 0.0
      %5530 = vmatprep.subr.mxu0 0.0
      %5531 = vmatpush1.msra.mxu0 0.0
      %5532 = vmatprep.subr.mxu0 0.0
      %5533 = vmatpush1.msra.mxu0 0.0
      %5534 = vmatprep.subr.mxu0 0.0
      %5535 = vmatpush1.msra.mxu0 0.0
      %5536 = vmatprep.subr.mxu0 0.0
      %5537 = vmatpush1.msra.mxu0 0.0
      %5538 = vmatprep.subr.mxu0 0.0
      %5539 = vmatpush1.msra.mxu0 0.0
      %5540 = vmatprep.subr.mxu0 0.0
      %5541 = vmatpush1.msra.mxu0 0.0
      %5542 = vmatprep.subr.mxu0 0.0
      %5543 = vmatpush1.msra.mxu0 0.0
      %5544 = vmatprep.subr.mxu0 0.0
      %5545 = vmatpush1.msra.mxu0 0.0
      %5546 = vmatprep.subr.mxu0 0.0
      %5547 = vmatpush1.msra.mxu0 0.0
      %5548 = vmatprep.subr.mxu0 0.0
      %5549 = vmatpush1.msra.mxu0 0.0
      %5550 = vmatprep.subr.mxu0 0.0
      %5551 = vmatpush1.msra.mxu0 0.0
      %5552 = vmatprep.subr.mxu0 0.0
      %5553 = vmatpush1.msra.mxu0 0.0
      %5554 = vmatprep.subr.mxu0 0.0
      %5555 = vmatpush1.msra.mxu0 0.0
      %5556 = vmatprep.subr.mxu0 0.0
      %5557 = vmatpush1.msra.mxu0 0.0
      %5558 = vmatprep.subr.mxu0 0.0
      %5559 = vmatpush1.msra.mxu0 0.0
      %5560 = vmatprep.subr.mxu0 0.0
      %5561 = vmatpush1.msra.mxu0 0.0
      %5562 = vmatprep.subr.mxu0 0.0
      %5563 = vmatpush1.msra.mxu0 0.0
      %5564 = vmatprep.mubr.f32.mxu0 0.0
      %5565 = vmatmul.mubr.f32.gmra.mrb[0].mxu0 %v5492
      %v5566 = vpop.f32.mrb[0].mxu0
      %v5567 = vadd.f32 %v5488, %v5566
      %v5568 = vpop.f32.mrb[0].mxu0
      %5569 = vmatprep.mubr.f32.mxu0 0.0
      %5570 = vmatmul.mubr.f32.gmra.mrb[0].mxu0 %v5495
      %v5571 = vpop.f32.mrb[0].mxu0
      %v5572 = vadd.f32 %v5489, %v5571
      %v5573 = vpop.f32.mrb[0].mxu0
      %5574 = vdwg.mxu0
      %v5575 = vmax.f32 %v5567, 0.0
      %v5576 = vmax.f32 %v5572, 0.0
      %vm5577 = vcmask 7168
      %5578 = vst.msk [vmem:[%s329] sm:$0xff] %vm5577, %v5575
      %vm5579 = vcmask 1024
      %5580 = vst.msk [vmem:[%s329 + $0x8] sm:$0x3] %vm5579, %v5576
      %p5581 = scmp.lt.s32.totalorder %s20, 1
      %s5582 = scalar_select %p5581, %s20, 1
      %s5583 = smul.addr %s5582, 2
      %s5584 = smul.addr %s5583, 8
      %s5585 = scalar_lea.vmem %s9, %s5584
      // Predicated region
      $region57: #{net_forward.1} parent=55 // pred_check
        %p5586 = pneg %p232
      $region58: #{net_forward.1} parent=55 // pred_check_branch
        %5588 = sbr.rel (%p5586) target = $region60
      $region59: #{net_forward.1} parent=55 // pred_region
        _
      $region60: #{net_forward.1} parent=55 // pred_fallthru
        _
    $region56: #{net_forward.1} parent=5 // pred_fallthru
      _
    %p5589 = scmp.le.s32.totalorder 2, %s15
    // Predicated region
    $region61: #{net_forward.1} parent=5 // pred_check
      %p5590 = pneg %p5589
    $region62: #{net_forward.1} parent=5 // pred_check_branch
      %5592 = sbr.rel (%p5590) target = $region64
    $region63: #{net_forward.1} parent=5 // pred_region
      %s5593 = ssub.s32 %s15, 2
      // Predicated region
      $region65: #{net_forward.1} parent=63 // pred_check
        %p5594 = pneg %p238
      $region66: #{net_forward.1} parent=63 // pred_check_branch
        %5596 = sbr.rel (%p5594) target = $region68
      $region67: #{net_forward.1} parent=63 // pred_region
        %p5597 = scmp.lt.s32.totalorder %s21, 1
        %s5598 = scalar_select %p5597, %s21, 1
        %s5599 = smul.addr %s5598, 2
        %s5600 = smul.addr %s5599, 8
        %s5601 = scalar_lea.vmem %s9, %s5600
      $region68: #{net_forward.1} parent=63 // pred_fallthru
        _
    $region64: #{net_forward.1} parent=5 // pred_fallthru
      _
  $region6: #{net_forward.1} parent=0 // loop_footer
    %s19 = sadd.s32 1, %s15
  $region7: #{net_forward.1} parent=0 // loop_footer_branch
    %14 = sbr.rel target = $region3
  $region8: #{net_forward.1} parent=0 // loop_exit
    _

</llo_original>
